<compile_context>
chip_gen: v7x
topology: tpu7x:2x2x1
jax: 0.10.0
libtpu: 0.0.40
codegen_flags: <defaults>
</compile_context>

<pallas_src>
import jax
import jax.numpy as jnp
from jax.experimental import pallas as pl
from jax.experimental.pallas import tpu as pltpu


def _sigmoid(x):
    return 1.0 / (1.0 + jnp.exp(-x))


def _make_encoder_lstm_kernel(T, B, H):
    """Kernel specialized to (T, B, H). The time loop is unrolled statically
    (T is small here); for long sequences switch to pl.loop with VMEM scratch
    state for (h, c)."""

    def kernel(emb_ref, len_ref,
               wih_f_ref, whh_f_ref, b_f_ref,
               wih_b_ref, whh_b_ref, b_b_ref,
               out_ref, h_out_ref, c_out_ref):
        # emb_ref:   (T*B, E)  time-major flattened embeddings (row = t*B + b)
        # len_ref:   (B, 1)    int32 lengths, sorted descending
        # w*_ref:    pre-transposed LSTM weights; b_* = (b_ih + b_hh), (1, 4H)
        # out_ref:   (T, B, H) fwd+bwd summed outputs (zeros at padded steps)
        # h_out/c_out: (2, B, H) final states, [0]=forward, [1]=backward
        emb = emb_ref[...]                                   # (T*B, E)
        lengths = len_ref[...]                               # (B, 1) int32

        # Input projections for every timestep of both directions: two big MXU
        # matmuls instead of 2*T tiny (B, E) @ (E, 4H) ones.
        xg_f = jnp.dot(emb, wih_f_ref[...],
                       preferred_element_type=jnp.float32) + b_f_ref[...]
        xg_b = jnp.dot(emb, wih_b_ref[...],
                       preferred_element_type=jnp.float32) + b_b_ref[...]

        whh_f = whh_f_ref[...]                               # (H, 4H)
        whh_b = whh_b_ref[...]

        def cell(xg, h, c, whh):
            gates = xg + jnp.dot(h, whh, preferred_element_type=jnp.float32)
            i = _sigmoid(gates[:, 0 * H:1 * H])
            f = _sigmoid(gates[:, 1 * H:2 * H])
            g = jnp.tanh(gates[:, 2 * H:3 * H])
            o = _sigmoid(gates[:, 3 * H:4 * H])
            c_new = f * c + i * g
            h_new = o * jnp.tanh(c_new)
            return h_new, c_new

        # ---- forward direction (packed semantics: state only advances while
        #      t < length; padded positions produce zero output) ----
        h = jnp.zeros((B, H), jnp.float32)
        c = jnp.zeros((B, H), jnp.float32)
        for t in range(T):
            h_new, c_new = cell(xg_f[t * B:(t + 1) * B, :], h, c, whh_f)
            m = (lengths > t).astype(jnp.float32)            # (B, 1)
            h = m * h_new + (1.0 - m) * h
            c = m * c_new + (1.0 - m) * c
            out_ref[t] = m * h_new
        h_out_ref[0] = h
        c_out_ref[0] = c

        # ---- backward direction (starts fresh at t = length-1 per sequence) --
        h = jnp.zeros((B, H), jnp.float32)
        c = jnp.zeros((B, H), jnp.float32)
        for t in range(T - 1, -1, -1):
            h_new, c_new = cell(xg_b[t * B:(t + 1) * B, :], h, c, whh_b)
            m = (lengths > t).astype(jnp.float32)
            h = m * h_new + (1.0 - m) * h
            c = m * c_new + (1.0 - m) * c
            out_ref[t] = out_ref[t] + m * h_new              # fwd + bwd sum
        h_out_ref[1] = h
        c_out_ref[1] = c

    return kernel


def encoder_rnn_forward(input_seq, input_lengths, emb_matrix, params):
    """JAX/Pallas equivalent of EncoderRNN.forward (rnn_type='LSTM', 1 layer,
    bidirectional). Returns (output, (h_n, c_n)) in length-sorted order, like
    the PyTorch module (which sorts and never unsorts)."""
    # torch: input_lengths.sort(descending=True) + reorder input_seq
    order = jnp.argsort(-input_lengths)
    seq_sorted = input_seq[order]                            # (B, T)
    lengths_sorted = input_lengths[order].astype(jnp.int32)

    # embedding lookup (gather stays in the wrapper)
    embedded = emb_matrix[seq_sorted].astype(jnp.float32)    # (B, T, E)
    B, T, E = embedded.shape
    H = params["whh_f"].shape[1]

    # Time-major flat layout so the kernel does one (T*B, E) @ (E, 4H) matmul
    # per direction; row index = t * B + b.
    emb_tm = jnp.transpose(embedded, (1, 0, 2)).reshape(T * B, E)
    lengths2d = lengths_sorted.reshape(B, 1)

    wih_f_t = params["wih_f"].T                              # (E, 4H)
    whh_f_t = params["whh_f"].T                              # (H, 4H)
    b_f = (params["bih_f"] + params["bhh_f"]).reshape(1, 4 * H)
    wih_b_t = params["wih_b"].T
    whh_b_t = params["whh_b"].T
    b_b = (params["bih_b"] + params["bhh_b"]).reshape(1, 4 * H)

    kernel = _make_encoder_lstm_kernel(T, B, H)

    out_tbh, h_n, c_n = pl.pallas_call(
        kernel,
        out_shape=(
            jax.ShapeDtypeStruct((T, B, H), jnp.float32),
            jax.ShapeDtypeStruct((2, B, H), jnp.float32),
            jax.ShapeDtypeStruct((2, B, H), jnp.float32),
        ),
        grid_spec=pltpu.PrefetchScalarGridSpec(
            num_scalar_prefetch=0,
            grid=(1,),                       # whole batch in one invocation
            in_specs=[
                pl.BlockSpec((T * B, E), lambda i: (0, 0)),  # embeddings
                pl.BlockSpec((B, 1), lambda i: (0, 0)),      # lengths
                pl.BlockSpec((E, 4 * H), lambda i: (0, 0)),  # W_ih fwd^T
                pl.BlockSpec((H, 4 * H), lambda i: (0, 0)),  # W_hh fwd^T
                pl.BlockSpec((1, 4 * H), lambda i: (0, 0)),  # bias fwd
                pl.BlockSpec((E, 4 * H), lambda i: (0, 0)),  # W_ih bwd^T
                pl.BlockSpec((H, 4 * H), lambda i: (0, 0)),  # W_hh bwd^T
                pl.BlockSpec((1, 4 * H), lambda i: (0, 0)),  # bias bwd
            ],
            out_specs=(
                pl.BlockSpec((T, B, H), lambda i: (0, 0, 0)),
                pl.BlockSpec((2, B, H), lambda i: (0, 0, 0)),
                pl.BlockSpec((2, B, H), lambda i: (0, 0, 0)),
            ),
        ),
        compiler_params=pltpu.CompilerParams(
            dimension_semantics=("arbitrary",)),
    )(emb_tm, lengths2d, wih_f_t, whh_f_t, b_f, wih_b_t, whh_b_t, b_b)

    output = jnp.transpose(out_tbh, (1, 0, 2))               # (B, T, H)
    return output, (h_n, c_n)


def reference_forward(input_seq, input_lengths, emb_matrix, params):
    """Pure-JAX emulation of the PyTorch module (packed biLSTM + fwd/bwd sum)."""
    order = jnp.argsort(-input_lengths)
    seq = input_seq[order]
    lengths = input_lengths[order]
    emb = emb_matrix[seq].astype(jnp.float32)                # (B, T, E)
    B, T, _ = emb.shape
    H = params["whh_f"].shape[1]

    def run(wih, whh, bih, bhh, reverse):
        h = jnp.zeros((B, H), jnp.float32)
        c = jnp.zeros((B, H), jnp.float32)
        outs = [None] * T
        steps = range(T - 1, -1, -1) if reverse else range(T)
        for t in steps:
            gates = emb[:, t, :] @ wih.T + bih + h @ whh.T + bhh
            i = _sigmoid(gates[:, :H])
            f = _sigmoid(gates[:, H:2 * H])
            g = jnp.tanh(gates[:, 2 * H:3 * H])
            o = _sigmoid(gates[:, 3 * H:])
            c_new = f * c + i * g
            h_new = o * jnp.tanh(c_new)
            m = (lengths > t).astype(jnp.float32)[:, None]
            h = m * h_new + (1.0 - m) * h
            c = m * c_new + (1.0 - m) * c
            outs[t] = m * h_new
        return jnp.stack(outs, axis=1), h, c

    out_f, h_f, c_f = run(params["wih_f"], params["whh_f"],
                          params["bih_f"], params["bhh_f"], False)
    out_b, h_b, c_b = run(params["wih_b"], params["whh_b"],
                          params["bih_b"], params["bhh_b"], True)
    return out_f + out_b, (jnp.stack([h_f, h_b]), jnp.stack([c_f, c_b]))


if __name__ == "__main__":
    B, T = 2, 8              # batch, max sequence length
    V, E, H = 20, 32, 32     # vocab, input_size (= embedding dim), hidden_size

    key = jax.random.PRNGKey(0)
    keys = jax.random.split(key, 10)

    input_seq = jax.random.randint(keys[0], (B, T), 0, V, dtype=jnp.int32)
    input_lengths = jnp.array([5, 8], dtype=jnp.int32)       # unsorted, max == T

    emb_matrix = jax.random.normal(keys[1], (V, E), dtype=jnp.float32)

    bound = 1.0 / jnp.sqrt(jnp.float32(H))

    def uni(k, shape):
        return jax.random.uniform(k, shape, jnp.float32, -bound, bound)

    params = {
        "wih_f": uni(keys[2], (4 * H, E)),
        "whh_f": uni(keys[3], (4 * H, H)),
        "bih_f": uni(keys[4], (4 * H,)),
        "bhh_f": uni(keys[5], (4 * H,)),
        "wih_b": uni(keys[6], (4 * H, E)),
        "whh_b": uni(keys[7], (4 * H, H)),
        "bih_b": uni(keys[8], (4 * H,)),
        "bhh_b": uni(keys[9], (4 * H,)),
    }

    output, (h_n, c_n) = encoder_rnn_forward(input_seq, input_lengths,
                                             emb_matrix, params)
    output = jax.block_until_ready(output)
    h_n = jax.block_until_ready(h_n)
    c_n = jax.block_until_ready(c_n)

    ref_out, (ref_h, ref_c) = reference_forward(input_seq, input_lengths,
                                                emb_matrix, params)

    assert output.shape == (B, T, H)
    assert h_n.shape == (2, B, H) and c_n.shape == (2, B, H)
    assert jnp.allclose(output, ref_out, atol=1e-4, rtol=1e-4)
    assert jnp.allclose(h_n, ref_h, atol=1e-4, rtol=1e-4)
    assert jnp.allclose(c_n, ref_c, atol=1e-4, rtol=1e-4)

    print("KERNEL_OK")
</pallas_src>

<mosaic_0001>
module attributes {stable_mosaic.version = 11 : i64} {
  func.func @kernel(%arg0: i32, %arg1: memref<16x32xf32, #tpu.memory_space<vmem>>, %arg2: memref<2x1xi32, #tpu.memory_space<vmem>>, %arg3: memref<32x128xf32, #tpu.memory_space<vmem>>, %arg4: memref<32x128xf32, #tpu.memory_space<vmem>>, %arg5: memref<1x128xf32, #tpu.memory_space<vmem>>, %arg6: memref<32x128xf32, #tpu.memory_space<vmem>>, %arg7: memref<32x128xf32, #tpu.memory_space<vmem>>, %arg8: memref<1x128xf32, #tpu.memory_space<vmem>>, %arg9: memref<8x2x32xf32, #tpu.memory_space<vmem>>, %arg10: memref<2x2x32xf32, #tpu.memory_space<vmem>>, %arg11: memref<2x2x32xf32, #tpu.memory_space<vmem>>) attributes {dimension_semantics = [#tpu.dimension_semantics<arbitrary>], iteration_bounds = array<i64: 1>, scalar_prefetch = 0 : i64, scratch_operands = 0 : i64, tpu.core_type = #tpu.core_type<tc>, window_params = [{pipeline_mode = #tpu.pipeline_mode<synchronous>, transform_indices = @transform_0, window_bounds = array<i64: 16, 32>}, {pipeline_mode = #tpu.pipeline_mode<synchronous>, transform_indices = @transform_1, window_bounds = array<i64: 2, 1>}, {pipeline_mode = #tpu.pipeline_mode<synchronous>, transform_indices = @transform_2, window_bounds = array<i64: 32, 128>}, {pipeline_mode = #tpu.pipeline_mode<synchronous>, transform_indices = @transform_3, window_bounds = array<i64: 32, 128>}, {pipeline_mode = #tpu.pipeline_mode<synchronous>, transform_indices = @transform_4, window_bounds = array<i64: 1, 128>}, {pipeline_mode = #tpu.pipeline_mode<synchronous>, transform_indices = @transform_5, window_bounds = array<i64: 32, 128>}, {pipeline_mode = #tpu.pipeline_mode<synchronous>, transform_indices = @transform_6, window_bounds = array<i64: 32, 128>}, {pipeline_mode = #tpu.pipeline_mode<synchronous>, transform_indices = @transform_7, window_bounds = array<i64: 1, 128>}, {pipeline_mode = #tpu.pipeline_mode<synchronous>, transform_indices = @transform_8, window_bounds = array<i64: 8, 2, 32>}, {pipeline_mode = #tpu.pipeline_mode<synchronous>, transform_indices = @transform_9, window_bounds = array<i64: 2, 2, 32>}, {pipeline_mode = #tpu.pipeline_mode<synchronous>, transform_indices = @transform_10, window_bounds = array<i64: 2, 2, 32>}]} {
    %c0 = arith.constant 0 : index
    %c0_0 = arith.constant 0 : index
    %0 = vector.load %arg1[%c0, %c0_0] : memref<16x32xf32, #tpu.memory_space<vmem>>, vector<16x32xf32>
    %c0_1 = arith.constant 0 : index
    %c0_2 = arith.constant 0 : index
    %1 = vector.load %arg2[%c0_1, %c0_2] : memref<2x1xi32, #tpu.memory_space<vmem>>, vector<2x1xi32>
    %c0_3 = arith.constant 0 : index
    %c0_4 = arith.constant 0 : index
    %2 = vector.load %arg3[%c0_3, %c0_4] : memref<32x128xf32, #tpu.memory_space<vmem>>, vector<32x128xf32>
    %cst = arith.constant dense<0.000000e+00> : vector<16x128xf32>
    %3 = tpu.matmul %0, %2, %cst {dimension_numbers = #tpu.dot_dimension_numbers<[1], [0], [0], [1], [0, 0, 1, 1], [], []>} : vector<16x32xf32>, vector<32x128xf32>, vector<16x128xf32> -> vector<16x128xf32>
    %c0_5 = arith.constant 0 : index
    %c0_6 = arith.constant 0 : index
    %4 = vector.load %arg5[%c0_5, %c0_6] : memref<1x128xf32, #tpu.memory_space<vmem>>, vector<1x128xf32>
    %5 = vector.broadcast %4 : vector<1x128xf32> to vector<16x128xf32>
    %6 = arith.addf %3, %5 : vector<16x128xf32>
    %c0_7 = arith.constant 0 : index
    %c0_8 = arith.constant 0 : index
    %7 = vector.load %arg6[%c0_7, %c0_8] : memref<32x128xf32, #tpu.memory_space<vmem>>, vector<32x128xf32>
    %cst_9 = arith.constant dense<0.000000e+00> : vector<16x128xf32>
    %8 = tpu.matmul %0, %7, %cst_9 {dimension_numbers = #tpu.dot_dimension_numbers<[1], [0], [0], [1], [0, 0, 1, 1], [], []>} : vector<16x32xf32>, vector<32x128xf32>, vector<16x128xf32> -> vector<16x128xf32>
    %c0_10 = arith.constant 0 : index
    %c0_11 = arith.constant 0 : index
    %9 = vector.load %arg8[%c0_10, %c0_11] : memref<1x128xf32, #tpu.memory_space<vmem>>, vector<1x128xf32>
    %10 = vector.broadcast %9 : vector<1x128xf32> to vector<16x128xf32>
    %11 = arith.addf %8, %10 : vector<16x128xf32>
    %c0_12 = arith.constant 0 : index
    %c0_13 = arith.constant 0 : index
    %12 = vector.load %arg4[%c0_12, %c0_13] : memref<32x128xf32, #tpu.memory_space<vmem>>, vector<32x128xf32>
    %c0_14 = arith.constant 0 : index
    %c0_15 = arith.constant 0 : index
    %13 = vector.load %arg7[%c0_14, %c0_15] : memref<32x128xf32, #tpu.memory_space<vmem>>, vector<32x128xf32>
    %cst_16 = arith.constant 0.000000e+00 : f32
    %14 = vector.broadcast %cst_16 : f32 to vector<2x32xf32>
    %cst_17 = arith.constant 0.000000e+00 : f32
    %15 = vector.broadcast %cst_17 : f32 to vector<2x32xf32>
    %16 = vector.extract_strided_slice %6 {offsets = [0, 0], sizes = [2, 128], strides = [1, 1]} : vector<16x128xf32> to vector<2x128xf32>
    %cst_18 = arith.constant dense<0.000000e+00> : vector<2x128xf32>
    %17 = tpu.matmul %14, %12, %cst_18 {dimension_numbers = #tpu.dot_dimension_numbers<[1], [0], [0], [1], [0, 0, 1, 1], [], []>} : vector<2x32xf32>, vector<32x128xf32>, vector<2x128xf32> -> vector<2x128xf32>
    %18 = arith.addf %16, %17 : vector<2x128xf32>
    %19 = vector.extract_strided_slice %18 {offsets = [0, 0], sizes = [2, 32], strides = [1, 1]} : vector<2x128xf32> to vector<2x32xf32>
    %cst_19 = arith.constant 0.000000e+00 : f32
    %20 = vector.broadcast %cst_19 : f32 to vector<2x32xf32>
    %21 = arith.subf %20, %19 : vector<2x32xf32>
    %22 = math.exp %21 : vector<2x32xf32>
    %cst_20 = arith.constant 1.000000e+00 : f32
    %23 = vector.broadcast %cst_20 : f32 to vector<2x32xf32>
    %24 = arith.addf %23, %22 : vector<2x32xf32>
    %cst_21 = arith.constant 1.000000e+00 : f32
    %25 = vector.broadcast %cst_21 : f32 to vector<2x32xf32>
    %26 = arith.divf %25, %24 : vector<2x32xf32>
    %27 = vector.extract_strided_slice %18 {offsets = [0, 32], sizes = [2, 32], strides = [1, 1]} : vector<2x128xf32> to vector<2x32xf32>
    %cst_22 = arith.constant 0.000000e+00 : f32
    %28 = vector.broadcast %cst_22 : f32 to vector<2x32xf32>
    %29 = arith.subf %28, %27 : vector<2x32xf32>
    %30 = math.exp %29 : vector<2x32xf32>
    %cst_23 = arith.constant 1.000000e+00 : f32
    %31 = vector.broadcast %cst_23 : f32 to vector<2x32xf32>
    %32 = arith.addf %31, %30 : vector<2x32xf32>
    %cst_24 = arith.constant 1.000000e+00 : f32
    %33 = vector.broadcast %cst_24 : f32 to vector<2x32xf32>
    %34 = arith.divf %33, %32 : vector<2x32xf32>
    %35 = vector.extract_strided_slice %18 {offsets = [0, 64], sizes = [2, 32], strides = [1, 1]} : vector<2x128xf32> to vector<2x32xf32>
    %36 = math.tanh %35 : vector<2x32xf32>
    %37 = vector.extract_strided_slice %18 {offsets = [0, 96], sizes = [2, 32], strides = [1, 1]} : vector<2x128xf32> to vector<2x32xf32>
    %cst_25 = arith.constant 0.000000e+00 : f32
    %38 = vector.broadcast %cst_25 : f32 to vector<2x32xf32>
    %39 = arith.subf %38, %37 : vector<2x32xf32>
    %40 = math.exp %39 : vector<2x32xf32>
    %cst_26 = arith.constant 1.000000e+00 : f32
    %41 = vector.broadcast %cst_26 : f32 to vector<2x32xf32>
    %42 = arith.addf %41, %40 : vector<2x32xf32>
    %cst_27 = arith.constant 1.000000e+00 : f32
    %43 = vector.broadcast %cst_27 : f32 to vector<2x32xf32>
    %44 = arith.divf %43, %42 : vector<2x32xf32>
    %45 = arith.mulf %34, %15 : vector<2x32xf32>
    %46 = arith.mulf %26, %36 : vector<2x32xf32>
    %47 = arith.addf %45, %46 : vector<2x32xf32>
    %48 = math.tanh %47 : vector<2x32xf32>
    %49 = arith.mulf %44, %48 : vector<2x32xf32>
    %c0_i32 = arith.constant 0 : i32
    %50 = vector.broadcast %c0_i32 : i32 to vector<2x1xi32>
    %51 = arith.cmpi sgt, %1, %50 : vector<2x1xi32>
    %52 = arith.extui %51 : vector<2x1xi1> to vector<2x1xi32>
    %53 = arith.sitofp %52 : vector<2x1xi32> to vector<2x1xf32>
    %54 = vector.broadcast %53 : vector<2x1xf32> to vector<2x32xf32>
    %55 = arith.mulf %54, %49 : vector<2x32xf32>
    %cst_28 = arith.constant 1.000000e+00 : f32
    %56 = vector.broadcast %cst_28 : f32 to vector<2x1xf32>
    %57 = arith.subf %56, %53 : vector<2x1xf32>
    %58 = vector.broadcast %57 : vector<2x1xf32> to vector<2x32xf32>
    %59 = arith.mulf %58, %14 : vector<2x32xf32>
    %60 = arith.addf %55, %59 : vector<2x32xf32>
    %61 = vector.broadcast %53 : vector<2x1xf32> to vector<2x32xf32>
    %62 = arith.mulf %61, %47 : vector<2x32xf32>
    %cst_29 = arith.constant 1.000000e+00 : f32
    %63 = vector.broadcast %cst_29 : f32 to vector<2x1xf32>
    %64 = arith.subf %63, %53 : vector<2x1xf32>
    %65 = vector.broadcast %64 : vector<2x1xf32> to vector<2x32xf32>
    %66 = arith.mulf %65, %15 : vector<2x32xf32>
    %67 = arith.addf %62, %66 : vector<2x32xf32>
    %68 = vector.broadcast %53 : vector<2x1xf32> to vector<2x32xf32>
    %69 = arith.mulf %68, %49 : vector<2x32xf32>
    %c0_30 = arith.constant 0 : index
    %c0_31 = arith.constant 0 : index
    %c0_32 = arith.constant 0 : index
    %70 = vector.load %arg9[%c0_30, %c0_31, %c0_32] : memref<8x2x32xf32, #tpu.memory_space<vmem>>, vector<1x2x32xf32>
    %71 = vector.shape_cast %70 : vector<1x2x32xf32> to vector<2x32xf32>
    %72 = vector.shape_cast %69 : vector<2x32xf32> to vector<1x2x32xf32>
    tpu.vector_store %arg9[%c0_30, %c0_31, %c0_32], %72 {strides = array<i32>} : memref<8x2x32xf32, #tpu.memory_space<vmem>>, vector<1x2x32xf32>,
    %73 = vector.extract_strided_slice %6 {offsets = [2, 0], sizes = [2, 128], strides = [1, 1]} : vector<16x128xf32> to vector<2x128xf32>
    %cst_33 = arith.constant dense<0.000000e+00> : vector<2x128xf32>
    %74 = tpu.matmul %60, %12, %cst_33 {dimension_numbers = #tpu.dot_dimension_numbers<[1], [0], [0], [1], [0, 0, 1, 1], [], []>} : vector<2x32xf32>, vector<32x128xf32>, vector<2x128xf32> -> vector<2x128xf32>
    %75 = arith.addf %73, %74 : vector<2x128xf32>
    %76 = vector.extract_strided_slice %75 {offsets = [0, 0], sizes = [2, 32], strides = [1, 1]} : vector<2x128xf32> to vector<2x32xf32>
    %cst_34 = arith.constant 0.000000e+00 : f32
    %77 = vector.broadcast %cst_34 : f32 to vector<2x32xf32>
    %78 = arith.subf %77, %76 : vector<2x32xf32>
    %79 = math.exp %78 : vector<2x32xf32>
    %cst_35 = arith.constant 1.000000e+00 : f32
    %80 = vector.broadcast %cst_35 : f32 to vector<2x32xf32>
    %81 = arith.addf %80, %79 : vector<2x32xf32>
    %cst_36 = arith.constant 1.000000e+00 : f32
    %82 = vector.broadcast %cst_36 : f32 to vector<2x32xf32>
    %83 = arith.divf %82, %81 : vector<2x32xf32>
    %84 = vector.extract_strided_slice %75 {offsets = [0, 32], sizes = [2, 32], strides = [1, 1]} : vector<2x128xf32> to vector<2x32xf32>
    %cst_37 = arith.constant 0.000000e+00 : f32
    %85 = vector.broadcast %cst_37 : f32 to vector<2x32xf32>
    %86 = arith.subf %85, %84 : vector<2x32xf32>
    %87 = math.exp %86 : vector<2x32xf32>
    %cst_38 = arith.constant 1.000000e+00 : f32
    %88 = vector.broadcast %cst_38 : f32 to vector<2x32xf32>
    %89 = arith.addf %88, %87 : vector<2x32xf32>
    %cst_39 = arith.constant 1.000000e+00 : f32
    %90 = vector.broadcast %cst_39 : f32 to vector<2x32xf32>
    %91 = arith.divf %90, %89 : vector<2x32xf32>
    %92 = vector.extract_strided_slice %75 {offsets = [0, 64], sizes = [2, 32], strides = [1, 1]} : vector<2x128xf32> to vector<2x32xf32>
    %93 = math.tanh %92 : vector<2x32xf32>
    %94 = vector.extract_strided_slice %75 {offsets = [0, 96], sizes = [2, 32], strides = [1, 1]} : vector<2x128xf32> to vector<2x32xf32>
    %cst_40 = arith.constant 0.000000e+00 : f32
    %95 = vector.broadcast %cst_40 : f32 to vector<2x32xf32>
    %96 = arith.subf %95, %94 : vector<2x32xf32>
    %97 = math.exp %96 : vector<2x32xf32>
    %cst_41 = arith.constant 1.000000e+00 : f32
    %98 = vector.broadcast %cst_41 : f32 to vector<2x32xf32>
    %99 = arith.addf %98, %97 : vector<2x32xf32>
    %cst_42 = arith.constant 1.000000e+00 : f32
    %100 = vector.broadcast %cst_42 : f32 to vector<2x32xf32>
    %101 = arith.divf %100, %99 : vector<2x32xf32>
    %102 = arith.mulf %91, %67 : vector<2x32xf32>
    %103 = arith.mulf %83, %93 : vector<2x32xf32>
    %104 = arith.addf %102, %103 : vector<2x32xf32>
    %105 = math.tanh %104 : vector<2x32xf32>
    %106 = arith.mulf %101, %105 : vector<2x32xf32>
    %c1_i32 = arith.constant 1 : i32
    %107 = vector.broadcast %c1_i32 : i32 to vector<2x1xi32>
    %108 = arith.cmpi sgt, %1, %107 : vector<2x1xi32>
    %109 = arith.extui %108 : vector<2x1xi1> to vector<2x1xi32>
    %110 = arith.sitofp %109 : vector<2x1xi32> to vector<2x1xf32>
    %111 = vector.broadcast %110 : vector<2x1xf32> to vector<2x32xf32>
    %112 = arith.mulf %111, %106 : vector<2x32xf32>
    %cst_43 = arith.constant 1.000000e+00 : f32
    %113 = vector.broadcast %cst_43 : f32 to vector<2x1xf32>
    %114 = arith.subf %113, %110 : vector<2x1xf32>
    %115 = vector.broadcast %114 : vector<2x1xf32> to vector<2x32xf32>
    %116 = arith.mulf %115, %60 : vector<2x32xf32>
    %117 = arith.addf %112, %116 : vector<2x32xf32>
    %118 = vector.broadcast %110 : vector<2x1xf32> to vector<2x32xf32>
    %119 = arith.mulf %118, %104 : vector<2x32xf32>
    %cst_44 = arith.constant 1.000000e+00 : f32
    %120 = vector.broadcast %cst_44 : f32 to vector<2x1xf32>
    %121 = arith.subf %120, %110 : vector<2x1xf32>
    %122 = vector.broadcast %121 : vector<2x1xf32> to vector<2x32xf32>
    %123 = arith.mulf %122, %67 : vector<2x32xf32>
    %124 = arith.addf %119, %123 : vector<2x32xf32>
    %125 = vector.broadcast %110 : vector<2x1xf32> to vector<2x32xf32>
    %126 = arith.mulf %125, %106 : vector<2x32xf32>
    %c1 = arith.constant 1 : index
    %c0_45 = arith.constant 0 : index
    %c0_46 = arith.constant 0 : index
    %127 = vector.load %arg9[%c1, %c0_45, %c0_46] : memref<8x2x32xf32, #tpu.memory_space<vmem>>, vector<1x2x32xf32>
    %128 = vector.shape_cast %127 : vector<1x2x32xf32> to vector<2x32xf32>
    %129 = vector.shape_cast %126 : vector<2x32xf32> to vector<1x2x32xf32>
    tpu.vector_store %arg9[%c1, %c0_45, %c0_46], %129 {strides = array<i32>} : memref<8x2x32xf32, #tpu.memory_space<vmem>>, vector<1x2x32xf32>,
    %130 = vector.extract_strided_slice %6 {offsets = [4, 0], sizes = [2, 128], strides = [1, 1]} : vector<16x128xf32> to vector<2x128xf32>
    %cst_47 = arith.constant dense<0.000000e+00> : vector<2x128xf32>
    %131 = tpu.matmul %117, %12, %cst_47 {dimension_numbers = #tpu.dot_dimension_numbers<[1], [0], [0], [1], [0, 0, 1, 1], [], []>} : vector<2x32xf32>, vector<32x128xf32>, vector<2x128xf32> -> vector<2x128xf32>
    %132 = arith.addf %130, %131 : vector<2x128xf32>
    %133 = vector.extract_strided_slice %132 {offsets = [0, 0], sizes = [2, 32], strides = [1, 1]} : vector<2x128xf32> to vector<2x32xf32>
    %cst_48 = arith.constant 0.000000e+00 : f32
    %134 = vector.broadcast %cst_48 : f32 to vector<2x32xf32>
    %135 = arith.subf %134, %133 : vector<2x32xf32>
    %136 = math.exp %135 : vector<2x32xf32>
    %cst_49 = arith.constant 1.000000e+00 : f32
    %137 = vector.broadcast %cst_49 : f32 to vector<2x32xf32>
    %138 = arith.addf %137, %136 : vector<2x32xf32>
    %cst_50 = arith.constant 1.000000e+00 : f32
    %139 = vector.broadcast %cst_50 : f32 to vector<2x32xf32>
    %140 = arith.divf %139, %138 : vector<2x32xf32>
    %141 = vector.extract_strided_slice %132 {offsets = [0, 32], sizes = [2, 32], strides = [1, 1]} : vector<2x128xf32> to vector<2x32xf32>
    %cst_51 = arith.constant 0.000000e+00 : f32
    %142 = vector.broadcast %cst_51 : f32 to vector<2x32xf32>
    %143 = arith.subf %142, %141 : vector<2x32xf32>
    %144 = math.exp %143 : vector<2x32xf32>
    %cst_52 = arith.constant 1.000000e+00 : f32
    %145 = vector.broadcast %cst_52 : f32 to vector<2x32xf32>
    %146 = arith.addf %145, %144 : vector<2x32xf32>
    %cst_53 = arith.constant 1.000000e+00 : f32
    %147 = vector.broadcast %cst_53 : f32 to vector<2x32xf32>
    %148 = arith.divf %147, %146 : vector<2x32xf32>
    %149 = vector.extract_strided_slice %132 {offsets = [0, 64], sizes = [2, 32], strides = [1, 1]} : vector<2x128xf32> to vector<2x32xf32>
    %150 = math.tanh %149 : vector<2x32xf32>
    %151 = vector.extract_strided_slice %132 {offsets = [0, 96], sizes = [2, 32], strides = [1, 1]} : vector<2x128xf32> to vector<2x32xf32>
    %cst_54 = arith.constant 0.000000e+00 : f32
    %152 = vector.broadcast %cst_54 : f32 to vector<2x32xf32>
    %153 = arith.subf %152, %151 : vector<2x32xf32>
    %154 = math.exp %153 : vector<2x32xf32>
    %cst_55 = arith.constant 1.000000e+00 : f32
    %155 = vector.broadcast %cst_55 : f32 to vector<2x32xf32>
    %156 = arith.addf %155, %154 : vector<2x32xf32>
    %cst_56 = arith.constant 1.000000e+00 : f32
    %157 = vector.broadcast %cst_56 : f32 to vector<2x32xf32>
    %158 = arith.divf %157, %156 : vector<2x32xf32>
    %159 = arith.mulf %148, %124 : vector<2x32xf32>
    %160 = arith.mulf %140, %150 : vector<2x32xf32>
    %161 = arith.addf %159, %160 : vector<2x32xf32>
    %162 = math.tanh %161 : vector<2x32xf32>
    %163 = arith.mulf %158, %162 : vector<2x32xf32>
    %c2_i32 = arith.constant 2 : i32
    %164 = vector.broadcast %c2_i32 : i32 to vector<2x1xi32>
    %165 = arith.cmpi sgt, %1, %164 : vector<2x1xi32>
    %166 = arith.extui %165 : vector<2x1xi1> to vector<2x1xi32>
    %167 = arith.sitofp %166 : vector<2x1xi32> to vector<2x1xf32>
    %168 = vector.broadcast %167 : vector<2x1xf32> to vector<2x32xf32>
    %169 = arith.mulf %168, %163 : vector<2x32xf32>
    %cst_57 = arith.constant 1.000000e+00 : f32
    %170 = vector.broadcast %cst_57 : f32 to vector<2x1xf32>
    %171 = arith.subf %170, %167 : vector<2x1xf32>
    %172 = vector.broadcast %171 : vector<2x1xf32> to vector<2x32xf32>
    %173 = arith.mulf %172, %117 : vector<2x32xf32>
    %174 = arith.addf %169, %173 : vector<2x32xf32>
    %175 = vector.broadcast %167 : vector<2x1xf32> to vector<2x32xf32>
    %176 = arith.mulf %175, %161 : vector<2x32xf32>
    %cst_58 = arith.constant 1.000000e+00 : f32
    %177 = vector.broadcast %cst_58 : f32 to vector<2x1xf32>
    %178 = arith.subf %177, %167 : vector<2x1xf32>
    %179 = vector.broadcast %178 : vector<2x1xf32> to vector<2x32xf32>
    %180 = arith.mulf %179, %124 : vector<2x32xf32>
    %181 = arith.addf %176, %180 : vector<2x32xf32>
    %182 = vector.broadcast %167 : vector<2x1xf32> to vector<2x32xf32>
    %183 = arith.mulf %182, %163 : vector<2x32xf32>
    %c2 = arith.constant 2 : index
    %c0_59 = arith.constant 0 : index
    %c0_60 = arith.constant 0 : index
    %184 = vector.load %arg9[%c2, %c0_59, %c0_60] : memref<8x2x32xf32, #tpu.memory_space<vmem>>, vector<1x2x32xf32>
    %185 = vector.shape_cast %184 : vector<1x2x32xf32> to vector<2x32xf32>
    %186 = vector.shape_cast %183 : vector<2x32xf32> to vector<1x2x32xf32>
    tpu.vector_store %arg9[%c2, %c0_59, %c0_60], %186 {strides = array<i32>} : memref<8x2x32xf32, #tpu.memory_space<vmem>>, vector<1x2x32xf32>,
    %187 = vector.extract_strided_slice %6 {offsets = [6, 0], sizes = [2, 128], strides = [1, 1]} : vector<16x128xf32> to vector<2x128xf32>
    %cst_61 = arith.constant dense<0.000000e+00> : vector<2x128xf32>
    %188 = tpu.matmul %174, %12, %cst_61 {dimension_numbers = #tpu.dot_dimension_numbers<[1], [0], [0], [1], [0, 0, 1, 1], [], []>} : vector<2x32xf32>, vector<32x128xf32>, vector<2x128xf32> -> vector<2x128xf32>
    %189 = arith.addf %187, %188 : vector<2x128xf32>
    %190 = vector.extract_strided_slice %189 {offsets = [0, 0], sizes = [2, 32], strides = [1, 1]} : vector<2x128xf32> to vector<2x32xf32>
    %cst_62 = arith.constant 0.000000e+00 : f32
    %191 = vector.broadcast %cst_62 : f32 to vector<2x32xf32>
    %192 = arith.subf %191, %190 : vector<2x32xf32>
    %193 = math.exp %192 : vector<2x32xf32>
    %cst_63 = arith.constant 1.000000e+00 : f32
    %194 = vector.broadcast %cst_63 : f32 to vector<2x32xf32>
    %195 = arith.addf %194, %193 : vector<2x32xf32>
    %cst_64 = arith.constant 1.000000e+00 : f32
    %196 = vector.broadcast %cst_64 : f32 to vector<2x32xf32>
    %197 = arith.divf %196, %195 : vector<2x32xf32>
    %198 = vector.extract_strided_slice %189 {offsets = [0, 32], sizes = [2, 32], strides = [1, 1]} : vector<2x128xf32> to vector<2x32xf32>
    %cst_65 = arith.constant 0.000000e+00 : f32
    %199 = vector.broadcast %cst_65 : f32 to vector<2x32xf32>
    %200 = arith.subf %199, %198 : vector<2x32xf32>
    %201 = math.exp %200 : vector<2x32xf32>
    %cst_66 = arith.constant 1.000000e+00 : f32
    %202 = vector.broadcast %cst_66 : f32 to vector<2x32xf32>
    %203 = arith.addf %202, %201 : vector<2x32xf32>
    %cst_67 = arith.constant 1.000000e+00 : f32
    %204 = vector.broadcast %cst_67 : f32 to vector<2x32xf32>
    %205 = arith.divf %204, %203 : vector<2x32xf32>
    %206 = vector.extract_strided_slice %189 {offsets = [0, 64], sizes = [2, 32], strides = [1, 1]} : vector<2x128xf32> to vector<2x32xf32>
    %207 = math.tanh %206 : vector<2x32xf32>
    %208 = vector.extract_strided_slice %189 {offsets = [0, 96], sizes = [2, 32], strides = [1, 1]} : vector<2x128xf32> to vector<2x32xf32>
    %cst_68 = arith.constant 0.000000e+00 : f32
    %209 = vector.broadcast %cst_68 : f32 to vector<2x32xf32>
    %210 = arith.subf %209, %208 : vector<2x32xf32>
    %211 = math.exp %210 : vector<2x32xf32>
    %cst_69 = arith.constant 1.000000e+00 : f32
    %212 = vector.broadcast %cst_69 : f32 to vector<2x32xf32>
    %213 = arith.addf %212, %211 : vector<2x32xf32>
    %cst_70 = arith.constant 1.000000e+00 : f32
    %214 = vector.broadcast %cst_70 : f32 to vector<2x32xf32>
    %215 = arith.divf %214, %213 : vector<2x32xf32>
    %216 = arith.mulf %205, %181 : vector<2x32xf32>
    %217 = arith.mulf %197, %207 : vector<2x32xf32>
    %218 = arith.addf %216, %217 : vector<2x32xf32>
    %219 = math.tanh %218 : vector<2x32xf32>
    %220 = arith.mulf %215, %219 : vector<2x32xf32>
    %c3_i32 = arith.constant 3 : i32
    %221 = vector.broadcast %c3_i32 : i32 to vector<2x1xi32>
    %222 = arith.cmpi sgt, %1, %221 : vector<2x1xi32>
    %223 = arith.extui %222 : vector<2x1xi1> to vector<2x1xi32>
    %224 = arith.sitofp %223 : vector<2x1xi32> to vector<2x1xf32>
    %225 = vector.broadcast %224 : vector<2x1xf32> to vector<2x32xf32>
    %226 = arith.mulf %225, %220 : vector<2x32xf32>
    %cst_71 = arith.constant 1.000000e+00 : f32
    %227 = vector.broadcast %cst_71 : f32 to vector<2x1xf32>
    %228 = arith.subf %227, %224 : vector<2x1xf32>
    %229 = vector.broadcast %228 : vector<2x1xf32> to vector<2x32xf32>
    %230 = arith.mulf %229, %174 : vector<2x32xf32>
    %231 = arith.addf %226, %230 : vector<2x32xf32>
    %232 = vector.broadcast %224 : vector<2x1xf32> to vector<2x32xf32>
    %233 = arith.mulf %232, %218 : vector<2x32xf32>
    %cst_72 = arith.constant 1.000000e+00 : f32
    %234 = vector.broadcast %cst_72 : f32 to vector<2x1xf32>
    %235 = arith.subf %234, %224 : vector<2x1xf32>
    %236 = vector.broadcast %235 : vector<2x1xf32> to vector<2x32xf32>
    %237 = arith.mulf %236, %181 : vector<2x32xf32>
    %238 = arith.addf %233, %237 : vector<2x32xf32>
    %239 = vector.broadcast %224 : vector<2x1xf32> to vector<2x32xf32>
    %240 = arith.mulf %239, %220 : vector<2x32xf32>
    %c3 = arith.constant 3 : index
    %c0_73 = arith.constant 0 : index
    %c0_74 = arith.constant 0 : index
    %241 = vector.load %arg9[%c3, %c0_73, %c0_74] : memref<8x2x32xf32, #tpu.memory_space<vmem>>, vector<1x2x32xf32>
    %242 = vector.shape_cast %241 : vector<1x2x32xf32> to vector<2x32xf32>
    %243 = vector.shape_cast %240 : vector<2x32xf32> to vector<1x2x32xf32>
    tpu.vector_store %arg9[%c3, %c0_73, %c0_74], %243 {strides = array<i32>} : memref<8x2x32xf32, #tpu.memory_space<vmem>>, vector<1x2x32xf32>,
    %244 = vector.extract_strided_slice %6 {offsets = [8, 0], sizes = [2, 128], strides = [1, 1]} : vector<16x128xf32> to vector<2x128xf32>
    %cst_75 = arith.constant dense<0.000000e+00> : vector<2x128xf32>
    %245 = tpu.matmul %231, %12, %cst_75 {dimension_numbers = #tpu.dot_dimension_numbers<[1], [0], [0], [1], [0, 0, 1, 1], [], []>} : vector<2x32xf32>, vector<32x128xf32>, vector<2x128xf32> -> vector<2x128xf32>
    %246 = arith.addf %244, %245 : vector<2x128xf32>
    %247 = vector.extract_strided_slice %246 {offsets = [0, 0], sizes = [2, 32], strides = [1, 1]} : vector<2x128xf32> to vector<2x32xf32>
    %cst_76 = arith.constant 0.000000e+00 : f32
    %248 = vector.broadcast %cst_76 : f32 to vector<2x32xf32>
    %249 = arith.subf %248, %247 : vector<2x32xf32>
    %250 = math.exp %249 : vector<2x32xf32>
    %cst_77 = arith.constant 1.000000e+00 : f32
    %251 = vector.broadcast %cst_77 : f32 to vector<2x32xf32>
    %252 = arith.addf %251, %250 : vector<2x32xf32>
    %cst_78 = arith.constant 1.000000e+00 : f32
    %253 = vector.broadcast %cst_78 : f32 to vector<2x32xf32>
    %254 = arith.divf %253, %252 : vector<2x32xf32>
    %255 = vector.extract_strided_slice %246 {offsets = [0, 32], sizes = [2, 32], strides = [1, 1]} : vector<2x128xf32> to vector<2x32xf32>
    %cst_79 = arith.constant 0.000000e+00 : f32
    %256 = vector.broadcast %cst_79 : f32 to vector<2x32xf32>
    %257 = arith.subf %256, %255 : vector<2x32xf32>
    %258 = math.exp %257 : vector<2x32xf32>
    %cst_80 = arith.constant 1.000000e+00 : f32
    %259 = vector.broadcast %cst_80 : f32 to vector<2x32xf32>
    %260 = arith.addf %259, %258 : vector<2x32xf32>
    %cst_81 = arith.constant 1.000000e+00 : f32
    %261 = vector.broadcast %cst_81 : f32 to vector<2x32xf32>
    %262 = arith.divf %261, %260 : vector<2x32xf32>
    %263 = vector.extract_strided_slice %246 {offsets = [0, 64], sizes = [2, 32], strides = [1, 1]} : vector<2x128xf32> to vector<2x32xf32>
    %264 = math.tanh %263 : vector<2x32xf32>
    %265 = vector.extract_strided_slice %246 {offsets = [0, 96], sizes = [2, 32], strides = [1, 1]} : vector<2x128xf32> to vector<2x32xf32>
    %cst_82 = arith.constant 0.000000e+00 : f32
    %266 = vector.broadcast %cst_82 : f32 to vector<2x32xf32>
    %267 = arith.subf %266, %265 : vector<2x32xf32>
    %268 = math.exp %267 : vector<2x32xf32>
    %cst_83 = arith.constant 1.000000e+00 : f32
    %269 = vector.broadcast %cst_83 : f32 to vector<2x32xf32>
    %270 = arith.addf %269, %268 : vector<2x32xf32>
    %cst_84 = arith.constant 1.000000e+00 : f32
    %271 = vector.broadcast %cst_84 : f32 to vector<2x32xf32>
    %272 = arith.divf %271, %270 : vector<2x32xf32>
    %273 = arith.mulf %262, %238 : vector<2x32xf32>
    %274 = arith.mulf %254, %264 : vector<2x32xf32>
    %275 = arith.addf %273, %274 : vector<2x32xf32>
    %276 = math.tanh %275 : vector<2x32xf32>
    %277 = arith.mulf %272, %276 : vector<2x32xf32>
    %c4_i32 = arith.constant 4 : i32
    %278 = vector.broadcast %c4_i32 : i32 to vector<2x1xi32>
    %279 = arith.cmpi sgt, %1, %278 : vector<2x1xi32>
    %280 = arith.extui %279 : vector<2x1xi1> to vector<2x1xi32>
    %281 = arith.sitofp %280 : vector<2x1xi32> to vector<2x1xf32>
    %282 = vector.broadcast %281 : vector<2x1xf32> to vector<2x32xf32>
    %283 = arith.mulf %282, %277 : vector<2x32xf32>
    %cst_85 = arith.constant 1.000000e+00 : f32
    %284 = vector.broadcast %cst_85 : f32 to vector<2x1xf32>
    %285 = arith.subf %284, %281 : vector<2x1xf32>
    %286 = vector.broadcast %285 : vector<2x1xf32> to vector<2x32xf32>
    %287 = arith.mulf %286, %231 : vector<2x32xf32>
    %288 = arith.addf %283, %287 : vector<2x32xf32>
    %289 = vector.broadcast %281 : vector<2x1xf32> to vector<2x32xf32>
    %290 = arith.mulf %289, %275 : vector<2x32xf32>
    %cst_86 = arith.constant 1.000000e+00 : f32
    %291 = vector.broadcast %cst_86 : f32 to vector<2x1xf32>
    %292 = arith.subf %291, %281 : vector<2x1xf32>
    %293 = vector.broadcast %292 : vector<2x1xf32> to vector<2x32xf32>
    %294 = arith.mulf %293, %238 : vector<2x32xf32>
    %295 = arith.addf %290, %294 : vector<2x32xf32>
    %296 = vector.broadcast %281 : vector<2x1xf32> to vector<2x32xf32>
    %297 = arith.mulf %296, %277 : vector<2x32xf32>
    %c4 = arith.constant 4 : index
    %c0_87 = arith.constant 0 : index
    %c0_88 = arith.constant 0 : index
    %298 = vector.load %arg9[%c4, %c0_87, %c0_88] : memref<8x2x32xf32, #tpu.memory_space<vmem>>, vector<1x2x32xf32>
    %299 = vector.shape_cast %298 : vector<1x2x32xf32> to vector<2x32xf32>
    %300 = vector.shape_cast %297 : vector<2x32xf32> to vector<1x2x32xf32>
    tpu.vector_store %arg9[%c4, %c0_87, %c0_88], %300 {strides = array<i32>} : memref<8x2x32xf32, #tpu.memory_space<vmem>>, vector<1x2x32xf32>,
    %301 = vector.extract_strided_slice %6 {offsets = [10, 0], sizes = [2, 128], strides = [1, 1]} : vector<16x128xf32> to vector<2x128xf32>
    %cst_89 = arith.constant dense<0.000000e+00> : vector<2x128xf32>
    %302 = tpu.matmul %288, %12, %cst_89 {dimension_numbers = #tpu.dot_dimension_numbers<[1], [0], [0], [1], [0, 0, 1, 1], [], []>} : vector<2x32xf32>, vector<32x128xf32>, vector<2x128xf32> -> vector<2x128xf32>
    %303 = arith.addf %301, %302 : vector<2x128xf32>
    %304 = vector.extract_strided_slice %303 {offsets = [0, 0], sizes = [2, 32], strides = [1, 1]} : vector<2x128xf32> to vector<2x32xf32>
    %cst_90 = arith.constant 0.000000e+00 : f32
    %305 = vector.broadcast %cst_90 : f32 to vector<2x32xf32>
    %306 = arith.subf %305, %304 : vector<2x32xf32>
    %307 = math.exp %306 : vector<2x32xf32>
    %cst_91 = arith.constant 1.000000e+00 : f32
    %308 = vector.broadcast %cst_91 : f32 to vector<2x32xf32>
    %309 = arith.addf %308, %307 : vector<2x32xf32>
    %cst_92 = arith.constant 1.000000e+00 : f32
    %310 = vector.broadcast %cst_92 : f32 to vector<2x32xf32>
    %311 = arith.divf %310, %309 : vector<2x32xf32>
    %312 = vector.extract_strided_slice %303 {offsets = [0, 32], sizes = [2, 32], strides = [1, 1]} : vector<2x128xf32> to vector<2x32xf32>
    %cst_93 = arith.constant 0.000000e+00 : f32
    %313 = vector.broadcast %cst_93 : f32 to vector<2x32xf32>
    %314 = arith.subf %313, %312 : vector<2x32xf32>
    %315 = math.exp %314 : vector<2x32xf32>
    %cst_94 = arith.constant 1.000000e+00 : f32
    %316 = vector.broadcast %cst_94 : f32 to vector<2x32xf32>
    %317 = arith.addf %316, %315 : vector<2x32xf32>
    %cst_95 = arith.constant 1.000000e+00 : f32
    %318 = vector.broadcast %cst_95 : f32 to vector<2x32xf32>
    %319 = arith.divf %318, %317 : vector<2x32xf32>
    %320 = vector.extract_strided_slice %303 {offsets = [0, 64], sizes = [2, 32], strides = [1, 1]} : vector<2x128xf32> to vector<2x32xf32>
    %321 = math.tanh %320 : vector<2x32xf32>
    %322 = vector.extract_strided_slice %303 {offsets = [0, 96], sizes = [2, 32], strides = [1, 1]} : vector<2x128xf32> to vector<2x32xf32>
    %cst_96 = arith.constant 0.000000e+00 : f32
    %323 = vector.broadcast %cst_96 : f32 to vector<2x32xf32>
    %324 = arith.subf %323, %322 : vector<2x32xf32>
    %325 = math.exp %324 : vector<2x32xf32>
    %cst_97 = arith.constant 1.000000e+00 : f32
    %326 = vector.broadcast %cst_97 : f32 to vector<2x32xf32>
    %327 = arith.addf %326, %325 : vector<2x32xf32>
    %cst_98 = arith.constant 1.000000e+00 : f32
    %328 = vector.broadcast %cst_98 : f32 to vector<2x32xf32>
    %329 = arith.divf %328, %327 : vector<2x32xf32>
    %330 = arith.mulf %319, %295 : vector<2x32xf32>
    %331 = arith.mulf %311, %321 : vector<2x32xf32>
    %332 = arith.addf %330, %331 : vector<2x32xf32>
    %333 = math.tanh %332 : vector<2x32xf32>
    %334 = arith.mulf %329, %333 : vector<2x32xf32>
    %c5_i32 = arith.constant 5 : i32
    %335 = vector.broadcast %c5_i32 : i32 to vector<2x1xi32>
    %336 = arith.cmpi sgt, %1, %335 : vector<2x1xi32>
    %337 = arith.extui %336 : vector<2x1xi1> to vector<2x1xi32>
    %338 = arith.sitofp %337 : vector<2x1xi32> to vector<2x1xf32>
    %339 = vector.broadcast %338 : vector<2x1xf32> to vector<2x32xf32>
    %340 = arith.mulf %339, %334 : vector<2x32xf32>
    %cst_99 = arith.constant 1.000000e+00 : f32
    %341 = vector.broadcast %cst_99 : f32 to vector<2x1xf32>
    %342 = arith.subf %341, %338 : vector<2x1xf32>
    %343 = vector.broadcast %342 : vector<2x1xf32> to vector<2x32xf32>
    %344 = arith.mulf %343, %288 : vector<2x32xf32>
    %345 = arith.addf %340, %344 : vector<2x32xf32>
    %346 = vector.broadcast %338 : vector<2x1xf32> to vector<2x32xf32>
    %347 = arith.mulf %346, %332 : vector<2x32xf32>
    %cst_100 = arith.constant 1.000000e+00 : f32
    %348 = vector.broadcast %cst_100 : f32 to vector<2x1xf32>
    %349 = arith.subf %348, %338 : vector<2x1xf32>
    %350 = vector.broadcast %349 : vector<2x1xf32> to vector<2x32xf32>
    %351 = arith.mulf %350, %295 : vector<2x32xf32>
    %352 = arith.addf %347, %351 : vector<2x32xf32>
    %353 = vector.broadcast %338 : vector<2x1xf32> to vector<2x32xf32>
    %354 = arith.mulf %353, %334 : vector<2x32xf32>
    %c5 = arith.constant 5 : index
    %c0_101 = arith.constant 0 : index
    %c0_102 = arith.constant 0 : index
    %355 = vector.load %arg9[%c5, %c0_101, %c0_102] : memref<8x2x32xf32, #tpu.memory_space<vmem>>, vector<1x2x32xf32>
    %356 = vector.shape_cast %355 : vector<1x2x32xf32> to vector<2x32xf32>
    %357 = vector.shape_cast %354 : vector<2x32xf32> to vector<1x2x32xf32>
    tpu.vector_store %arg9[%c5, %c0_101, %c0_102], %357 {strides = array<i32>} : memref<8x2x32xf32, #tpu.memory_space<vmem>>, vector<1x2x32xf32>,
    %358 = vector.extract_strided_slice %6 {offsets = [12, 0], sizes = [2, 128], strides = [1, 1]} : vector<16x128xf32> to vector<2x128xf32>
    %cst_103 = arith.constant dense<0.000000e+00> : vector<2x128xf32>
    %359 = tpu.matmul %345, %12, %cst_103 {dimension_numbers = #tpu.dot_dimension_numbers<[1], [0], [0], [1], [0, 0, 1, 1], [], []>} : vector<2x32xf32>, vector<32x128xf32>, vector<2x128xf32> -> vector<2x128xf32>
    %360 = arith.addf %358, %359 : vector<2x128xf32>
    %361 = vector.extract_strided_slice %360 {offsets = [0, 0], sizes = [2, 32], strides = [1, 1]} : vector<2x128xf32> to vector<2x32xf32>
    %cst_104 = arith.constant 0.000000e+00 : f32
    %362 = vector.broadcast %cst_104 : f32 to vector<2x32xf32>
    %363 = arith.subf %362, %361 : vector<2x32xf32>
    %364 = math.exp %363 : vector<2x32xf32>
    %cst_105 = arith.constant 1.000000e+00 : f32
    %365 = vector.broadcast %cst_105 : f32 to vector<2x32xf32>
    %366 = arith.addf %365, %364 : vector<2x32xf32>
    %cst_106 = arith.constant 1.000000e+00 : f32
    %367 = vector.broadcast %cst_106 : f32 to vector<2x32xf32>
    %368 = arith.divf %367, %366 : vector<2x32xf32>
    %369 = vector.extract_strided_slice %360 {offsets = [0, 32], sizes = [2, 32], strides = [1, 1]} : vector<2x128xf32> to vector<2x32xf32>
    %cst_107 = arith.constant 0.000000e+00 : f32
    %370 = vector.broadcast %cst_107 : f32 to vector<2x32xf32>
    %371 = arith.subf %370, %369 : vector<2x32xf32>
    %372 = math.exp %371 : vector<2x32xf32>
    %cst_108 = arith.constant 1.000000e+00 : f32
    %373 = vector.broadcast %cst_108 : f32 to vector<2x32xf32>
    %374 = arith.addf %373, %372 : vector<2x32xf32>
    %cst_109 = arith.constant 1.000000e+00 : f32
    %375 = vector.broadcast %cst_109 : f32 to vector<2x32xf32>
    %376 = arith.divf %375, %374 : vector<2x32xf32>
    %377 = vector.extract_strided_slice %360 {offsets = [0, 64], sizes = [2, 32], strides = [1, 1]} : vector<2x128xf32> to vector<2x32xf32>
    %378 = math.tanh %377 : vector<2x32xf32>
    %379 = vector.extract_strided_slice %360 {offsets = [0, 96], sizes = [2, 32], strides = [1, 1]} : vector<2x128xf32> to vector<2x32xf32>
    %cst_110 = arith.constant 0.000000e+00 : f32
    %380 = vector.broadcast %cst_110 : f32 to vector<2x32xf32>
    %381 = arith.subf %380, %379 : vector<2x32xf32>
    %382 = math.exp %381 : vector<2x32xf32>
    %cst_111 = arith.constant 1.000000e+00 : f32
    %383 = vector.broadcast %cst_111 : f32 to vector<2x32xf32>
    %384 = arith.addf %383, %382 : vector<2x32xf32>
    %cst_112 = arith.constant 1.000000e+00 : f32
    %385 = vector.broadcast %cst_112 : f32 to vector<2x32xf32>
    %386 = arith.divf %385, %384 : vector<2x32xf32>
    %387 = arith.mulf %376, %352 : vector<2x32xf32>
    %388 = arith.mulf %368, %378 : vector<2x32xf32>
    %389 = arith.addf %387, %388 : vector<2x32xf32>
    %390 = math.tanh %389 : vector<2x32xf32>
    %391 = arith.mulf %386, %390 : vector<2x32xf32>
    %c6_i32 = arith.constant 6 : i32
    %392 = vector.broadcast %c6_i32 : i32 to vector<2x1xi32>
    %393 = arith.cmpi sgt, %1, %392 : vector<2x1xi32>
    %394 = arith.extui %393 : vector<2x1xi1> to vector<2x1xi32>
    %395 = arith.sitofp %394 : vector<2x1xi32> to vector<2x1xf32>
    %396 = vector.broadcast %395 : vector<2x1xf32> to vector<2x32xf32>
    %397 = arith.mulf %396, %391 : vector<2x32xf32>
    %cst_113 = arith.constant 1.000000e+00 : f32
    %398 = vector.broadcast %cst_113 : f32 to vector<2x1xf32>
    %399 = arith.subf %398, %395 : vector<2x1xf32>
    %400 = vector.broadcast %399 : vector<2x1xf32> to vector<2x32xf32>
    %401 = arith.mulf %400, %345 : vector<2x32xf32>
    %402 = arith.addf %397, %401 : vector<2x32xf32>
    %403 = vector.broadcast %395 : vector<2x1xf32> to vector<2x32xf32>
    %404 = arith.mulf %403, %389 : vector<2x32xf32>
    %cst_114 = arith.constant 1.000000e+00 : f32
    %405 = vector.broadcast %cst_114 : f32 to vector<2x1xf32>
    %406 = arith.subf %405, %395 : vector<2x1xf32>
    %407 = vector.broadcast %406 : vector<2x1xf32> to vector<2x32xf32>
    %408 = arith.mulf %407, %352 : vector<2x32xf32>
    %409 = arith.addf %404, %408 : vector<2x32xf32>
    %410 = vector.broadcast %395 : vector<2x1xf32> to vector<2x32xf32>
    %411 = arith.mulf %410, %391 : vector<2x32xf32>
    %c6 = arith.constant 6 : index
    %c0_115 = arith.constant 0 : index
    %c0_116 = arith.constant 0 : index
    %412 = vector.load %arg9[%c6, %c0_115, %c0_116] : memref<8x2x32xf32, #tpu.memory_space<vmem>>, vector<1x2x32xf32>
    %413 = vector.shape_cast %412 : vector<1x2x32xf32> to vector<2x32xf32>
    %414 = vector.shape_cast %411 : vector<2x32xf32> to vector<1x2x32xf32>
    tpu.vector_store %arg9[%c6, %c0_115, %c0_116], %414 {strides = array<i32>} : memref<8x2x32xf32, #tpu.memory_space<vmem>>, vector<1x2x32xf32>,
    %415 = vector.extract_strided_slice %6 {offsets = [14, 0], sizes = [2, 128], strides = [1, 1]} : vector<16x128xf32> to vector<2x128xf32>
    %cst_117 = arith.constant dense<0.000000e+00> : vector<2x128xf32>
    %416 = tpu.matmul %402, %12, %cst_117 {dimension_numbers = #tpu.dot_dimension_numbers<[1], [0], [0], [1], [0, 0, 1, 1], [], []>} : vector<2x32xf32>, vector<32x128xf32>, vector<2x128xf32> -> vector<2x128xf32>
    %417 = arith.addf %415, %416 : vector<2x128xf32>
    %418 = vector.extract_strided_slice %417 {offsets = [0, 0], sizes = [2, 32], strides = [1, 1]} : vector<2x128xf32> to vector<2x32xf32>
    %cst_118 = arith.constant 0.000000e+00 : f32
    %419 = vector.broadcast %cst_118 : f32 to vector<2x32xf32>
    %420 = arith.subf %419, %418 : vector<2x32xf32>
    %421 = math.exp %420 : vector<2x32xf32>
    %cst_119 = arith.constant 1.000000e+00 : f32
    %422 = vector.broadcast %cst_119 : f32 to vector<2x32xf32>
    %423 = arith.addf %422, %421 : vector<2x32xf32>
    %cst_120 = arith.constant 1.000000e+00 : f32
    %424 = vector.broadcast %cst_120 : f32 to vector<2x32xf32>
    %425 = arith.divf %424, %423 : vector<2x32xf32>
    %426 = vector.extract_strided_slice %417 {offsets = [0, 32], sizes = [2, 32], strides = [1, 1]} : vector<2x128xf32> to vector<2x32xf32>
    %cst_121 = arith.constant 0.000000e+00 : f32
    %427 = vector.broadcast %cst_121 : f32 to vector<2x32xf32>
    %428 = arith.subf %427, %426 : vector<2x32xf32>
    %429 = math.exp %428 : vector<2x32xf32>
    %cst_122 = arith.constant 1.000000e+00 : f32
    %430 = vector.broadcast %cst_122 : f32 to vector<2x32xf32>
    %431 = arith.addf %430, %429 : vector<2x32xf32>
    %cst_123 = arith.constant 1.000000e+00 : f32
    %432 = vector.broadcast %cst_123 : f32 to vector<2x32xf32>
    %433 = arith.divf %432, %431 : vector<2x32xf32>
    %434 = vector.extract_strided_slice %417 {offsets = [0, 64], sizes = [2, 32], strides = [1, 1]} : vector<2x128xf32> to vector<2x32xf32>
    %435 = math.tanh %434 : vector<2x32xf32>
    %436 = vector.extract_strided_slice %417 {offsets = [0, 96], sizes = [2, 32], strides = [1, 1]} : vector<2x128xf32> to vector<2x32xf32>
    %cst_124 = arith.constant 0.000000e+00 : f32
    %437 = vector.broadcast %cst_124 : f32 to vector<2x32xf32>
    %438 = arith.subf %437, %436 : vector<2x32xf32>
    %439 = math.exp %438 : vector<2x32xf32>
    %cst_125 = arith.constant 1.000000e+00 : f32
    %440 = vector.broadcast %cst_125 : f32 to vector<2x32xf32>
    %441 = arith.addf %440, %439 : vector<2x32xf32>
    %cst_126 = arith.constant 1.000000e+00 : f32
    %442 = vector.broadcast %cst_126 : f32 to vector<2x32xf32>
    %443 = arith.divf %442, %441 : vector<2x32xf32>
    %444 = arith.mulf %433, %409 : vector<2x32xf32>
    %445 = arith.mulf %425, %435 : vector<2x32xf32>
    %446 = arith.addf %444, %445 : vector<2x32xf32>
    %447 = math.tanh %446 : vector<2x32xf32>
    %448 = arith.mulf %443, %447 : vector<2x32xf32>
    %c7_i32 = arith.constant 7 : i32
    %449 = vector.broadcast %c7_i32 : i32 to vector<2x1xi32>
    %450 = arith.cmpi sgt, %1, %449 : vector<2x1xi32>
    %451 = arith.extui %450 : vector<2x1xi1> to vector<2x1xi32>
    %452 = arith.sitofp %451 : vector<2x1xi32> to vector<2x1xf32>
    %453 = vector.broadcast %452 : vector<2x1xf32> to vector<2x32xf32>
    %454 = arith.mulf %453, %448 : vector<2x32xf32>
    %cst_127 = arith.constant 1.000000e+00 : f32
    %455 = vector.broadcast %cst_127 : f32 to vector<2x1xf32>
    %456 = arith.subf %455, %452 : vector<2x1xf32>
    %457 = vector.broadcast %456 : vector<2x1xf32> to vector<2x32xf32>
    %458 = arith.mulf %457, %402 : vector<2x32xf32>
    %459 = arith.addf %454, %458 : vector<2x32xf32>
    %460 = vector.broadcast %452 : vector<2x1xf32> to vector<2x32xf32>
    %461 = arith.mulf %460, %446 : vector<2x32xf32>
    %cst_128 = arith.constant 1.000000e+00 : f32
    %462 = vector.broadcast %cst_128 : f32 to vector<2x1xf32>
    %463 = arith.subf %462, %452 : vector<2x1xf32>
    %464 = vector.broadcast %463 : vector<2x1xf32> to vector<2x32xf32>
    %465 = arith.mulf %464, %409 : vector<2x32xf32>
    %466 = arith.addf %461, %465 : vector<2x32xf32>
    %467 = vector.broadcast %452 : vector<2x1xf32> to vector<2x32xf32>
    %468 = arith.mulf %467, %448 : vector<2x32xf32>
    %c7 = arith.constant 7 : index
    %c0_129 = arith.constant 0 : index
    %c0_130 = arith.constant 0 : index
    %469 = vector.load %arg9[%c7, %c0_129, %c0_130] : memref<8x2x32xf32, #tpu.memory_space<vmem>>, vector<1x2x32xf32>
    %470 = vector.shape_cast %469 : vector<1x2x32xf32> to vector<2x32xf32>
    %471 = vector.shape_cast %468 : vector<2x32xf32> to vector<1x2x32xf32>
    tpu.vector_store %arg9[%c7, %c0_129, %c0_130], %471 {strides = array<i32>} : memref<8x2x32xf32, #tpu.memory_space<vmem>>, vector<1x2x32xf32>,
    %c0_131 = arith.constant 0 : index
    %c0_132 = arith.constant 0 : index
    %c0_133 = arith.constant 0 : index
    %472 = vector.load %arg10[%c0_131, %c0_132, %c0_133] : memref<2x2x32xf32, #tpu.memory_space<vmem>>, vector<1x2x32xf32>
    %473 = vector.shape_cast %472 : vector<1x2x32xf32> to vector<2x32xf32>
    %474 = vector.shape_cast %459 : vector<2x32xf32> to vector<1x2x32xf32>
    tpu.vector_store %arg10[%c0_131, %c0_132, %c0_133], %474 {strides = array<i32>} : memref<2x2x32xf32, #tpu.memory_space<vmem>>, vector<1x2x32xf32>,
    %c0_134 = arith.constant 0 : index
    %c0_135 = arith.constant 0 : index
    %c0_136 = arith.constant 0 : index
    %475 = vector.load %arg11[%c0_134, %c0_135, %c0_136] : memref<2x2x32xf32, #tpu.memory_space<vmem>>, vector<1x2x32xf32>
    %476 = vector.shape_cast %475 : vector<1x2x32xf32> to vector<2x32xf32>
    %477 = vector.shape_cast %466 : vector<2x32xf32> to vector<1x2x32xf32>
    tpu.vector_store %arg11[%c0_134, %c0_135, %c0_136], %477 {strides = array<i32>} : memref<2x2x32xf32, #tpu.memory_space<vmem>>, vector<1x2x32xf32>,
    %cst_137 = arith.constant 0.000000e+00 : f32
    %478 = vector.broadcast %cst_137 : f32 to vector<2x32xf32>
    %cst_138 = arith.constant 0.000000e+00 : f32
    %479 = vector.broadcast %cst_138 : f32 to vector<2x32xf32>
    %480 = vector.extract_strided_slice %11 {offsets = [14, 0], sizes = [2, 128], strides = [1, 1]} : vector<16x128xf32> to vector<2x128xf32>
    %cst_139 = arith.constant dense<0.000000e+00> : vector<2x128xf32>
    %481 = tpu.matmul %478, %13, %cst_139 {dimension_numbers = #tpu.dot_dimension_numbers<[1], [0], [0], [1], [0, 0, 1, 1], [], []>} : vector<2x32xf32>, vector<32x128xf32>, vector<2x128xf32> -> vector<2x128xf32>
    %482 = arith.addf %480, %481 : vector<2x128xf32>
    %483 = vector.extract_strided_slice %482 {offsets = [0, 0], sizes = [2, 32], strides = [1, 1]} : vector<2x128xf32> to vector<2x32xf32>
    %cst_140 = arith.constant 0.000000e+00 : f32
    %484 = vector.broadcast %cst_140 : f32 to vector<2x32xf32>
    %485 = arith.subf %484, %483 : vector<2x32xf32>
    %486 = math.exp %485 : vector<2x32xf32>
    %cst_141 = arith.constant 1.000000e+00 : f32
    %487 = vector.broadcast %cst_141 : f32 to vector<2x32xf32>
    %488 = arith.addf %487, %486 : vector<2x32xf32>
    %cst_142 = arith.constant 1.000000e+00 : f32
    %489 = vector.broadcast %cst_142 : f32 to vector<2x32xf32>
    %490 = arith.divf %489, %488 : vector<2x32xf32>
    %491 = vector.extract_strided_slice %482 {offsets = [0, 32], sizes = [2, 32], strides = [1, 1]} : vector<2x128xf32> to vector<2x32xf32>
    %cst_143 = arith.constant 0.000000e+00 : f32
    %492 = vector.broadcast %cst_143 : f32 to vector<2x32xf32>
    %493 = arith.subf %492, %491 : vector<2x32xf32>
    %494 = math.exp %493 : vector<2x32xf32>
    %cst_144 = arith.constant 1.000000e+00 : f32
    %495 = vector.broadcast %cst_144 : f32 to vector<2x32xf32>
    %496 = arith.addf %495, %494 : vector<2x32xf32>
    %cst_145 = arith.constant 1.000000e+00 : f32
    %497 = vector.broadcast %cst_145 : f32 to vector<2x32xf32>
    %498 = arith.divf %497, %496 : vector<2x32xf32>
    %499 = vector.extract_strided_slice %482 {offsets = [0, 64], sizes = [2, 32], strides = [1, 1]} : vector<2x128xf32> to vector<2x32xf32>
    %500 = math.tanh %499 : vector<2x32xf32>
    %501 = vector.extract_strided_slice %482 {offsets = [0, 96], sizes = [2, 32], strides = [1, 1]} : vector<2x128xf32> to vector<2x32xf32>
    %cst_146 = arith.constant 0.000000e+00 : f32
    %502 = vector.broadcast %cst_146 : f32 to vector<2x32xf32>
    %503 = arith.subf %502, %501 : vector<2x32xf32>
    %504 = math.exp %503 : vector<2x32xf32>
    %cst_147 = arith.constant 1.000000e+00 : f32
    %505 = vector.broadcast %cst_147 : f32 to vector<2x32xf32>
    %506 = arith.addf %505, %504 : vector<2x32xf32>
    %cst_148 = arith.constant 1.000000e+00 : f32
    %507 = vector.broadcast %cst_148 : f32 to vector<2x32xf32>
    %508 = arith.divf %507, %506 : vector<2x32xf32>
    %509 = arith.mulf %498, %479 : vector<2x32xf32>
    %510 = arith.mulf %490, %500 : vector<2x32xf32>
    %511 = arith.addf %509, %510 : vector<2x32xf32>
    %512 = math.tanh %511 : vector<2x32xf32>
    %513 = arith.mulf %508, %512 : vector<2x32xf32>
    %c7_i32_149 = arith.constant 7 : i32
    %514 = vector.broadcast %c7_i32_149 : i32 to vector<2x1xi32>
    %515 = arith.cmpi sgt, %1, %514 : vector<2x1xi32>
    %516 = arith.extui %515 : vector<2x1xi1> to vector<2x1xi32>
    %517 = arith.sitofp %516 : vector<2x1xi32> to vector<2x1xf32>
    %518 = vector.broadcast %517 : vector<2x1xf32> to vector<2x32xf32>
    %519 = arith.mulf %518, %513 : vector<2x32xf32>
    %cst_150 = arith.constant 1.000000e+00 : f32
    %520 = vector.broadcast %cst_150 : f32 to vector<2x1xf32>
    %521 = arith.subf %520, %517 : vector<2x1xf32>
    %522 = vector.broadcast %521 : vector<2x1xf32> to vector<2x32xf32>
    %523 = arith.mulf %522, %478 : vector<2x32xf32>
    %524 = arith.addf %519, %523 : vector<2x32xf32>
    %525 = vector.broadcast %517 : vector<2x1xf32> to vector<2x32xf32>
    %526 = arith.mulf %525, %511 : vector<2x32xf32>
    %cst_151 = arith.constant 1.000000e+00 : f32
    %527 = vector.broadcast %cst_151 : f32 to vector<2x1xf32>
    %528 = arith.subf %527, %517 : vector<2x1xf32>
    %529 = vector.broadcast %528 : vector<2x1xf32> to vector<2x32xf32>
    %530 = arith.mulf %529, %479 : vector<2x32xf32>
    %531 = arith.addf %526, %530 : vector<2x32xf32>
    %c7_152 = arith.constant 7 : index
    %c0_153 = arith.constant 0 : index
    %c0_154 = arith.constant 0 : index
    %532 = vector.load %arg9[%c7_152, %c0_153, %c0_154] : memref<8x2x32xf32, #tpu.memory_space<vmem>>, vector<1x2x32xf32>
    %533 = vector.shape_cast %532 : vector<1x2x32xf32> to vector<2x32xf32>
    %534 = vector.broadcast %517 : vector<2x1xf32> to vector<2x32xf32>
    %535 = arith.mulf %534, %513 : vector<2x32xf32>
    %536 = arith.addf %533, %535 : vector<2x32xf32>
    %c7_155 = arith.constant 7 : index
    %c0_156 = arith.constant 0 : index
    %c0_157 = arith.constant 0 : index
    %537 = vector.load %arg9[%c7_155, %c0_156, %c0_157] : memref<8x2x32xf32, #tpu.memory_space<vmem>>, vector<1x2x32xf32>
    %538 = vector.shape_cast %537 : vector<1x2x32xf32> to vector<2x32xf32>
    %539 = vector.shape_cast %536 : vector<2x32xf32> to vector<1x2x32xf32>
    tpu.vector_store %arg9[%c7_155, %c0_156, %c0_157], %539 {strides = array<i32>} : memref<8x2x32xf32, #tpu.memory_space<vmem>>, vector<1x2x32xf32>,
    %540 = vector.extract_strided_slice %11 {offsets = [12, 0], sizes = [2, 128], strides = [1, 1]} : vector<16x128xf32> to vector<2x128xf32>
    %cst_158 = arith.constant dense<0.000000e+00> : vector<2x128xf32>
    %541 = tpu.matmul %524, %13, %cst_158 {dimension_numbers = #tpu.dot_dimension_numbers<[1], [0], [0], [1], [0, 0, 1, 1], [], []>} : vector<2x32xf32>, vector<32x128xf32>, vector<2x128xf32> -> vector<2x128xf32>
    %542 = arith.addf %540, %541 : vector<2x128xf32>
    %543 = vector.extract_strided_slice %542 {offsets = [0, 0], sizes = [2, 32], strides = [1, 1]} : vector<2x128xf32> to vector<2x32xf32>
    %cst_159 = arith.constant 0.000000e+00 : f32
    %544 = vector.broadcast %cst_159 : f32 to vector<2x32xf32>
    %545 = arith.subf %544, %543 : vector<2x32xf32>
    %546 = math.exp %545 : vector<2x32xf32>
    %cst_160 = arith.constant 1.000000e+00 : f32
    %547 = vector.broadcast %cst_160 : f32 to vector<2x32xf32>
    %548 = arith.addf %547, %546 : vector<2x32xf32>
    %cst_161 = arith.constant 1.000000e+00 : f32
    %549 = vector.broadcast %cst_161 : f32 to vector<2x32xf32>
    %550 = arith.divf %549, %548 : vector<2x32xf32>
    %551 = vector.extract_strided_slice %542 {offsets = [0, 32], sizes = [2, 32], strides = [1, 1]} : vector<2x128xf32> to vector<2x32xf32>
    %cst_162 = arith.constant 0.000000e+00 : f32
    %552 = vector.broadcast %cst_162 : f32 to vector<2x32xf32>
    %553 = arith.subf %552, %551 : vector<2x32xf32>
    %554 = math.exp %553 : vector<2x32xf32>
    %cst_163 = arith.constant 1.000000e+00 : f32
    %555 = vector.broadcast %cst_163 : f32 to vector<2x32xf32>
    %556 = arith.addf %555, %554 : vector<2x32xf32>
    %cst_164 = arith.constant 1.000000e+00 : f32
    %557 = vector.broadcast %cst_164 : f32 to vector<2x32xf32>
    %558 = arith.divf %557, %556 : vector<2x32xf32>
    %559 = vector.extract_strided_slice %542 {offsets = [0, 64], sizes = [2, 32], strides = [1, 1]} : vector<2x128xf32> to vector<2x32xf32>
    %560 = math.tanh %559 : vector<2x32xf32>
    %561 = vector.extract_strided_slice %542 {offsets = [0, 96], sizes = [2, 32], strides = [1, 1]} : vector<2x128xf32> to vector<2x32xf32>
    %cst_165 = arith.constant 0.000000e+00 : f32
    %562 = vector.broadcast %cst_165 : f32 to vector<2x32xf32>
    %563 = arith.subf %562, %561 : vector<2x32xf32>
    %564 = math.exp %563 : vector<2x32xf32>
    %cst_166 = arith.constant 1.000000e+00 : f32
    %565 = vector.broadcast %cst_166 : f32 to vector<2x32xf32>
    %566 = arith.addf %565, %564 : vector<2x32xf32>
    %cst_167 = arith.constant 1.000000e+00 : f32
    %567 = vector.broadcast %cst_167 : f32 to vector<2x32xf32>
    %568 = arith.divf %567, %566 : vector<2x32xf32>
    %569 = arith.mulf %558, %531 : vector<2x32xf32>
    %570 = arith.mulf %550, %560 : vector<2x32xf32>
    %571 = arith.addf %569, %570 : vector<2x32xf32>
    %572 = math.tanh %571 : vector<2x32xf32>
    %573 = arith.mulf %568, %572 : vector<2x32xf32>
    %c6_i32_168 = arith.constant 6 : i32
    %574 = vector.broadcast %c6_i32_168 : i32 to vector<2x1xi32>
    %575 = arith.cmpi sgt, %1, %574 : vector<2x1xi32>
    %576 = arith.extui %575 : vector<2x1xi1> to vector<2x1xi32>
    %577 = arith.sitofp %576 : vector<2x1xi32> to vector<2x1xf32>
    %578 = vector.broadcast %577 : vector<2x1xf32> to vector<2x32xf32>
    %579 = arith.mulf %578, %573 : vector<2x32xf32>
    %cst_169 = arith.constant 1.000000e+00 : f32
    %580 = vector.broadcast %cst_169 : f32 to vector<2x1xf32>
    %581 = arith.subf %580, %577 : vector<2x1xf32>
    %582 = vector.broadcast %581 : vector<2x1xf32> to vector<2x32xf32>
    %583 = arith.mulf %582, %524 : vector<2x32xf32>
    %584 = arith.addf %579, %583 : vector<2x32xf32>
    %585 = vector.broadcast %577 : vector<2x1xf32> to vector<2x32xf32>
    %586 = arith.mulf %585, %571 : vector<2x32xf32>
    %cst_170 = arith.constant 1.000000e+00 : f32
    %587 = vector.broadcast %cst_170 : f32 to vector<2x1xf32>
    %588 = arith.subf %587, %577 : vector<2x1xf32>
    %589 = vector.broadcast %588 : vector<2x1xf32> to vector<2x32xf32>
    %590 = arith.mulf %589, %531 : vector<2x32xf32>
    %591 = arith.addf %586, %590 : vector<2x32xf32>
    %c6_171 = arith.constant 6 : index
    %c0_172 = arith.constant 0 : index
    %c0_173 = arith.constant 0 : index
    %592 = vector.load %arg9[%c6_171, %c0_172, %c0_173] : memref<8x2x32xf32, #tpu.memory_space<vmem>>, vector<1x2x32xf32>
    %593 = vector.shape_cast %592 : vector<1x2x32xf32> to vector<2x32xf32>
    %594 = vector.broadcast %577 : vector<2x1xf32> to vector<2x32xf32>
    %595 = arith.mulf %594, %573 : vector<2x32xf32>
    %596 = arith.addf %593, %595 : vector<2x32xf32>
    %c6_174 = arith.constant 6 : index
    %c0_175 = arith.constant 0 : index
    %c0_176 = arith.constant 0 : index
    %597 = vector.load %arg9[%c6_174, %c0_175, %c0_176] : memref<8x2x32xf32, #tpu.memory_space<vmem>>, vector<1x2x32xf32>
    %598 = vector.shape_cast %597 : vector<1x2x32xf32> to vector<2x32xf32>
    %599 = vector.shape_cast %596 : vector<2x32xf32> to vector<1x2x32xf32>
    tpu.vector_store %arg9[%c6_174, %c0_175, %c0_176], %599 {strides = array<i32>} : memref<8x2x32xf32, #tpu.memory_space<vmem>>, vector<1x2x32xf32>,
    %600 = vector.extract_strided_slice %11 {offsets = [10, 0], sizes = [2, 128], strides = [1, 1]} : vector<16x128xf32> to vector<2x128xf32>
    %cst_177 = arith.constant dense<0.000000e+00> : vector<2x128xf32>
    %601 = tpu.matmul %584, %13, %cst_177 {dimension_numbers = #tpu.dot_dimension_numbers<[1], [0], [0], [1], [0, 0, 1, 1], [], []>} : vector<2x32xf32>, vector<32x128xf32>, vector<2x128xf32> -> vector<2x128xf32>
    %602 = arith.addf %600, %601 : vector<2x128xf32>
    %603 = vector.extract_strided_slice %602 {offsets = [0, 0], sizes = [2, 32], strides = [1, 1]} : vector<2x128xf32> to vector<2x32xf32>
    %cst_178 = arith.constant 0.000000e+00 : f32
    %604 = vector.broadcast %cst_178 : f32 to vector<2x32xf32>
    %605 = arith.subf %604, %603 : vector<2x32xf32>
    %606 = math.exp %605 : vector<2x32xf32>
    %cst_179 = arith.constant 1.000000e+00 : f32
    %607 = vector.broadcast %cst_179 : f32 to vector<2x32xf32>
    %608 = arith.addf %607, %606 : vector<2x32xf32>
    %cst_180 = arith.constant 1.000000e+00 : f32
    %609 = vector.broadcast %cst_180 : f32 to vector<2x32xf32>
    %610 = arith.divf %609, %608 : vector<2x32xf32>
    %611 = vector.extract_strided_slice %602 {offsets = [0, 32], sizes = [2, 32], strides = [1, 1]} : vector<2x128xf32> to vector<2x32xf32>
    %cst_181 = arith.constant 0.000000e+00 : f32
    %612 = vector.broadcast %cst_181 : f32 to vector<2x32xf32>
    %613 = arith.subf %612, %611 : vector<2x32xf32>
    %614 = math.exp %613 : vector<2x32xf32>
    %cst_182 = arith.constant 1.000000e+00 : f32
    %615 = vector.broadcast %cst_182 : f32 to vector<2x32xf32>
    %616 = arith.addf %615, %614 : vector<2x32xf32>
    %cst_183 = arith.constant 1.000000e+00 : f32
    %617 = vector.broadcast %cst_183 : f32 to vector<2x32xf32>
    %618 = arith.divf %617, %616 : vector<2x32xf32>
    %619 = vector.extract_strided_slice %602 {offsets = [0, 64], sizes = [2, 32], strides = [1, 1]} : vector<2x128xf32> to vector<2x32xf32>
    %620 = math.tanh %619 : vector<2x32xf32>
    %621 = vector.extract_strided_slice %602 {offsets = [0, 96], sizes = [2, 32], strides = [1, 1]} : vector<2x128xf32> to vector<2x32xf32>
    %cst_184 = arith.constant 0.000000e+00 : f32
    %622 = vector.broadcast %cst_184 : f32 to vector<2x32xf32>
    %623 = arith.subf %622, %621 : vector<2x32xf32>
    %624 = math.exp %623 : vector<2x32xf32>
    %cst_185 = arith.constant 1.000000e+00 : f32
    %625 = vector.broadcast %cst_185 : f32 to vector<2x32xf32>
    %626 = arith.addf %625, %624 : vector<2x32xf32>
    %cst_186 = arith.constant 1.000000e+00 : f32
    %627 = vector.broadcast %cst_186 : f32 to vector<2x32xf32>
    %628 = arith.divf %627, %626 : vector<2x32xf32>
    %629 = arith.mulf %618, %591 : vector<2x32xf32>
    %630 = arith.mulf %610, %620 : vector<2x32xf32>
    %631 = arith.addf %629, %630 : vector<2x32xf32>
    %632 = math.tanh %631 : vector<2x32xf32>
    %633 = arith.mulf %628, %632 : vector<2x32xf32>
    %c5_i32_187 = arith.constant 5 : i32
    %634 = vector.broadcast %c5_i32_187 : i32 to vector<2x1xi32>
    %635 = arith.cmpi sgt, %1, %634 : vector<2x1xi32>
    %636 = arith.extui %635 : vector<2x1xi1> to vector<2x1xi32>
    %637 = arith.sitofp %636 : vector<2x1xi32> to vector<2x1xf32>
    %638 = vector.broadcast %637 : vector<2x1xf32> to vector<2x32xf32>
    %639 = arith.mulf %638, %633 : vector<2x32xf32>
    %cst_188 = arith.constant 1.000000e+00 : f32
    %640 = vector.broadcast %cst_188 : f32 to vector<2x1xf32>
    %641 = arith.subf %640, %637 : vector<2x1xf32>
    %642 = vector.broadcast %641 : vector<2x1xf32> to vector<2x32xf32>
    %643 = arith.mulf %642, %584 : vector<2x32xf32>
    %644 = arith.addf %639, %643 : vector<2x32xf32>
    %645 = vector.broadcast %637 : vector<2x1xf32> to vector<2x32xf32>
    %646 = arith.mulf %645, %631 : vector<2x32xf32>
    %cst_189 = arith.constant 1.000000e+00 : f32
    %647 = vector.broadcast %cst_189 : f32 to vector<2x1xf32>
    %648 = arith.subf %647, %637 : vector<2x1xf32>
    %649 = vector.broadcast %648 : vector<2x1xf32> to vector<2x32xf32>
    %650 = arith.mulf %649, %591 : vector<2x32xf32>
    %651 = arith.addf %646, %650 : vector<2x32xf32>
    %c5_190 = arith.constant 5 : index
    %c0_191 = arith.constant 0 : index
    %c0_192 = arith.constant 0 : index
    %652 = vector.load %arg9[%c5_190, %c0_191, %c0_192] : memref<8x2x32xf32, #tpu.memory_space<vmem>>, vector<1x2x32xf32>
    %653 = vector.shape_cast %652 : vector<1x2x32xf32> to vector<2x32xf32>
    %654 = vector.broadcast %637 : vector<2x1xf32> to vector<2x32xf32>
    %655 = arith.mulf %654, %633 : vector<2x32xf32>
    %656 = arith.addf %653, %655 : vector<2x32xf32>
    %c5_193 = arith.constant 5 : index
    %c0_194 = arith.constant 0 : index
    %c0_195 = arith.constant 0 : index
    %657 = vector.load %arg9[%c5_193, %c0_194, %c0_195] : memref<8x2x32xf32, #tpu.memory_space<vmem>>, vector<1x2x32xf32>
    %658 = vector.shape_cast %657 : vector<1x2x32xf32> to vector<2x32xf32>
    %659 = vector.shape_cast %656 : vector<2x32xf32> to vector<1x2x32xf32>
    tpu.vector_store %arg9[%c5_193, %c0_194, %c0_195], %659 {strides = array<i32>} : memref<8x2x32xf32, #tpu.memory_space<vmem>>, vector<1x2x32xf32>,
    %660 = vector.extract_strided_slice %11 {offsets = [8, 0], sizes = [2, 128], strides = [1, 1]} : vector<16x128xf32> to vector<2x128xf32>
    %cst_196 = arith.constant dense<0.000000e+00> : vector<2x128xf32>
    %661 = tpu.matmul %644, %13, %cst_196 {dimension_numbers = #tpu.dot_dimension_numbers<[1], [0], [0], [1], [0, 0, 1, 1], [], []>} : vector<2x32xf32>, vector<32x128xf32>, vector<2x128xf32> -> vector<2x128xf32>
    %662 = arith.addf %660, %661 : vector<2x128xf32>
    %663 = vector.extract_strided_slice %662 {offsets = [0, 0], sizes = [2, 32], strides = [1, 1]} : vector<2x128xf32> to vector<2x32xf32>
    %cst_197 = arith.constant 0.000000e+00 : f32
    %664 = vector.broadcast %cst_197 : f32 to vector<2x32xf32>
    %665 = arith.subf %664, %663 : vector<2x32xf32>
    %666 = math.exp %665 : vector<2x32xf32>
    %cst_198 = arith.constant 1.000000e+00 : f32
    %667 = vector.broadcast %cst_198 : f32 to vector<2x32xf32>
    %668 = arith.addf %667, %666 : vector<2x32xf32>
    %cst_199 = arith.constant 1.000000e+00 : f32
    %669 = vector.broadcast %cst_199 : f32 to vector<2x32xf32>
    %670 = arith.divf %669, %668 : vector<2x32xf32>
    %671 = vector.extract_strided_slice %662 {offsets = [0, 32], sizes = [2, 32], strides = [1, 1]} : vector<2x128xf32> to vector<2x32xf32>
    %cst_200 = arith.constant 0.000000e+00 : f32
    %672 = vector.broadcast %cst_200 : f32 to vector<2x32xf32>
    %673 = arith.subf %672, %671 : vector<2x32xf32>
    %674 = math.exp %673 : vector<2x32xf32>
    %cst_201 = arith.constant 1.000000e+00 : f32
    %675 = vector.broadcast %cst_201 : f32 to vector<2x32xf32>
    %676 = arith.addf %675, %674 : vector<2x32xf32>
    %cst_202 = arith.constant 1.000000e+00 : f32
    %677 = vector.broadcast %cst_202 : f32 to vector<2x32xf32>
    %678 = arith.divf %677, %676 : vector<2x32xf32>
    %679 = vector.extract_strided_slice %662 {offsets = [0, 64], sizes = [2, 32], strides = [1, 1]} : vector<2x128xf32> to vector<2x32xf32>
    %680 = math.tanh %679 : vector<2x32xf32>
    %681 = vector.extract_strided_slice %662 {offsets = [0, 96], sizes = [2, 32], strides = [1, 1]} : vector<2x128xf32> to vector<2x32xf32>
    %cst_203 = arith.constant 0.000000e+00 : f32
    %682 = vector.broadcast %cst_203 : f32 to vector<2x32xf32>
    %683 = arith.subf %682, %681 : vector<2x32xf32>
    %684 = math.exp %683 : vector<2x32xf32>
    %cst_204 = arith.constant 1.000000e+00 : f32
    %685 = vector.broadcast %cst_204 : f32 to vector<2x32xf32>
    %686 = arith.addf %685, %684 : vector<2x32xf32>
    %cst_205 = arith.constant 1.000000e+00 : f32
    %687 = vector.broadcast %cst_205 : f32 to vector<2x32xf32>
    %688 = arith.divf %687, %686 : vector<2x32xf32>
    %689 = arith.mulf %678, %651 : vector<2x32xf32>
    %690 = arith.mulf %670, %680 : vector<2x32xf32>
    %691 = arith.addf %689, %690 : vector<2x32xf32>
    %692 = math.tanh %691 : vector<2x32xf32>
    %693 = arith.mulf %688, %692 : vector<2x32xf32>
    %c4_i32_206 = arith.constant 4 : i32
    %694 = vector.broadcast %c4_i32_206 : i32 to vector<2x1xi32>
    %695 = arith.cmpi sgt, %1, %694 : vector<2x1xi32>
    %696 = arith.extui %695 : vector<2x1xi1> to vector<2x1xi32>
    %697 = arith.sitofp %696 : vector<2x1xi32> to vector<2x1xf32>
    %698 = vector.broadcast %697 : vector<2x1xf32> to vector<2x32xf32>
    %699 = arith.mulf %698, %693 : vector<2x32xf32>
    %cst_207 = arith.constant 1.000000e+00 : f32
    %700 = vector.broadcast %cst_207 : f32 to vector<2x1xf32>
    %701 = arith.subf %700, %697 : vector<2x1xf32>
    %702 = vector.broadcast %701 : vector<2x1xf32> to vector<2x32xf32>
    %703 = arith.mulf %702, %644 : vector<2x32xf32>
    %704 = arith.addf %699, %703 : vector<2x32xf32>
    %705 = vector.broadcast %697 : vector<2x1xf32> to vector<2x32xf32>
    %706 = arith.mulf %705, %691 : vector<2x32xf32>
    %cst_208 = arith.constant 1.000000e+00 : f32
    %707 = vector.broadcast %cst_208 : f32 to vector<2x1xf32>
    %708 = arith.subf %707, %697 : vector<2x1xf32>
    %709 = vector.broadcast %708 : vector<2x1xf32> to vector<2x32xf32>
    %710 = arith.mulf %709, %651 : vector<2x32xf32>
    %711 = arith.addf %706, %710 : vector<2x32xf32>
    %c4_209 = arith.constant 4 : index
    %c0_210 = arith.constant 0 : index
    %c0_211 = arith.constant 0 : index
    %712 = vector.load %arg9[%c4_209, %c0_210, %c0_211] : memref<8x2x32xf32, #tpu.memory_space<vmem>>, vector<1x2x32xf32>
    %713 = vector.shape_cast %712 : vector<1x2x32xf32> to vector<2x32xf32>
    %714 = vector.broadcast %697 : vector<2x1xf32> to vector<2x32xf32>
    %715 = arith.mulf %714, %693 : vector<2x32xf32>
    %716 = arith.addf %713, %715 : vector<2x32xf32>
    %c4_212 = arith.constant 4 : index
    %c0_213 = arith.constant 0 : index
    %c0_214 = arith.constant 0 : index
    %717 = vector.load %arg9[%c4_212, %c0_213, %c0_214] : memref<8x2x32xf32, #tpu.memory_space<vmem>>, vector<1x2x32xf32>
    %718 = vector.shape_cast %717 : vector<1x2x32xf32> to vector<2x32xf32>
    %719 = vector.shape_cast %716 : vector<2x32xf32> to vector<1x2x32xf32>
    tpu.vector_store %arg9[%c4_212, %c0_213, %c0_214], %719 {strides = array<i32>} : memref<8x2x32xf32, #tpu.memory_space<vmem>>, vector<1x2x32xf32>,
    %720 = vector.extract_strided_slice %11 {offsets = [6, 0], sizes = [2, 128], strides = [1, 1]} : vector<16x128xf32> to vector<2x128xf32>
    %cst_215 = arith.constant dense<0.000000e+00> : vector<2x128xf32>
    %721 = tpu.matmul %704, %13, %cst_215 {dimension_numbers = #tpu.dot_dimension_numbers<[1], [0], [0], [1], [0, 0, 1, 1], [], []>} : vector<2x32xf32>, vector<32x128xf32>, vector<2x128xf32> -> vector<2x128xf32>
    %722 = arith.addf %720, %721 : vector<2x128xf32>
    %723 = vector.extract_strided_slice %722 {offsets = [0, 0], sizes = [2, 32], strides = [1, 1]} : vector<2x128xf32> to vector<2x32xf32>
    %cst_216 = arith.constant 0.000000e+00 : f32
    %724 = vector.broadcast %cst_216 : f32 to vector<2x32xf32>
    %725 = arith.subf %724, %723 : vector<2x32xf32>
    %726 = math.exp %725 : vector<2x32xf32>
    %cst_217 = arith.constant 1.000000e+00 : f32
    %727 = vector.broadcast %cst_217 : f32 to vector<2x32xf32>
    %728 = arith.addf %727, %726 : vector<2x32xf32>
    %cst_218 = arith.constant 1.000000e+00 : f32
    %729 = vector.broadcast %cst_218 : f32 to vector<2x32xf32>
    %730 = arith.divf %729, %728 : vector<2x32xf32>
    %731 = vector.extract_strided_slice %722 {offsets = [0, 32], sizes = [2, 32], strides = [1, 1]} : vector<2x128xf32> to vector<2x32xf32>
    %cst_219 = arith.constant 0.000000e+00 : f32
    %732 = vector.broadcast %cst_219 : f32 to vector<2x32xf32>
    %733 = arith.subf %732, %731 : vector<2x32xf32>
    %734 = math.exp %733 : vector<2x32xf32>
    %cst_220 = arith.constant 1.000000e+00 : f32
    %735 = vector.broadcast %cst_220 : f32 to vector<2x32xf32>
    %736 = arith.addf %735, %734 : vector<2x32xf32>
    %cst_221 = arith.constant 1.000000e+00 : f32
    %737 = vector.broadcast %cst_221 : f32 to vector<2x32xf32>
    %738 = arith.divf %737, %736 : vector<2x32xf32>
    %739 = vector.extract_strided_slice %722 {offsets = [0, 64], sizes = [2, 32], strides = [1, 1]} : vector<2x128xf32> to vector<2x32xf32>
    %740 = math.tanh %739 : vector<2x32xf32>
    %741 = vector.extract_strided_slice %722 {offsets = [0, 96], sizes = [2, 32], strides = [1, 1]} : vector<2x128xf32> to vector<2x32xf32>
    %cst_222 = arith.constant 0.000000e+00 : f32
    %742 = vector.broadcast %cst_222 : f32 to vector<2x32xf32>
    %743 = arith.subf %742, %741 : vector<2x32xf32>
    %744 = math.exp %743 : vector<2x32xf32>
    %cst_223 = arith.constant 1.000000e+00 : f32
    %745 = vector.broadcast %cst_223 : f32 to vector<2x32xf32>
    %746 = arith.addf %745, %744 : vector<2x32xf32>
    %cst_224 = arith.constant 1.000000e+00 : f32
    %747 = vector.broadcast %cst_224 : f32 to vector<2x32xf32>
    %748 = arith.divf %747, %746 : vector<2x32xf32>
    %749 = arith.mulf %738, %711 : vector<2x32xf32>
    %750 = arith.mulf %730, %740 : vector<2x32xf32>
    %751 = arith.addf %749, %750 : vector<2x32xf32>
    %752 = math.tanh %751 : vector<2x32xf32>
    %753 = arith.mulf %748, %752 : vector<2x32xf32>
    %c3_i32_225 = arith.constant 3 : i32
    %754 = vector.broadcast %c3_i32_225 : i32 to vector<2x1xi32>
    %755 = arith.cmpi sgt, %1, %754 : vector<2x1xi32>
    %756 = arith.extui %755 : vector<2x1xi1> to vector<2x1xi32>
    %757 = arith.sitofp %756 : vector<2x1xi32> to vector<2x1xf32>
    %758 = vector.broadcast %757 : vector<2x1xf32> to vector<2x32xf32>
    %759 = arith.mulf %758, %753 : vector<2x32xf32>
    %cst_226 = arith.constant 1.000000e+00 : f32
    %760 = vector.broadcast %cst_226 : f32 to vector<2x1xf32>
    %761 = arith.subf %760, %757 : vector<2x1xf32>
    %762 = vector.broadcast %761 : vector<2x1xf32> to vector<2x32xf32>
    %763 = arith.mulf %762, %704 : vector<2x32xf32>
    %764 = arith.addf %759, %763 : vector<2x32xf32>
    %765 = vector.broadcast %757 : vector<2x1xf32> to vector<2x32xf32>
    %766 = arith.mulf %765, %751 : vector<2x32xf32>
    %cst_227 = arith.constant 1.000000e+00 : f32
    %767 = vector.broadcast %cst_227 : f32 to vector<2x1xf32>
    %768 = arith.subf %767, %757 : vector<2x1xf32>
    %769 = vector.broadcast %768 : vector<2x1xf32> to vector<2x32xf32>
    %770 = arith.mulf %769, %711 : vector<2x32xf32>
    %771 = arith.addf %766, %770 : vector<2x32xf32>
    %c3_228 = arith.constant 3 : index
    %c0_229 = arith.constant 0 : index
    %c0_230 = arith.constant 0 : index
    %772 = vector.load %arg9[%c3_228, %c0_229, %c0_230] : memref<8x2x32xf32, #tpu.memory_space<vmem>>, vector<1x2x32xf32>
    %773 = vector.shape_cast %772 : vector<1x2x32xf32> to vector<2x32xf32>
    %774 = vector.broadcast %757 : vector<2x1xf32> to vector<2x32xf32>
    %775 = arith.mulf %774, %753 : vector<2x32xf32>
    %776 = arith.addf %773, %775 : vector<2x32xf32>
    %c3_231 = arith.constant 3 : index
    %c0_232 = arith.constant 0 : index
    %c0_233 = arith.constant 0 : index
    %777 = vector.load %arg9[%c3_231, %c0_232, %c0_233] : memref<8x2x32xf32, #tpu.memory_space<vmem>>, vector<1x2x32xf32>
    %778 = vector.shape_cast %777 : vector<1x2x32xf32> to vector<2x32xf32>
    %779 = vector.shape_cast %776 : vector<2x32xf32> to vector<1x2x32xf32>
    tpu.vector_store %arg9[%c3_231, %c0_232, %c0_233], %779 {strides = array<i32>} : memref<8x2x32xf32, #tpu.memory_space<vmem>>, vector<1x2x32xf32>,
    %780 = vector.extract_strided_slice %11 {offsets = [4, 0], sizes = [2, 128], strides = [1, 1]} : vector<16x128xf32> to vector<2x128xf32>
    %cst_234 = arith.constant dense<0.000000e+00> : vector<2x128xf32>
    %781 = tpu.matmul %764, %13, %cst_234 {dimension_numbers = #tpu.dot_dimension_numbers<[1], [0], [0], [1], [0, 0, 1, 1], [], []>} : vector<2x32xf32>, vector<32x128xf32>, vector<2x128xf32> -> vector<2x128xf32>
    %782 = arith.addf %780, %781 : vector<2x128xf32>
    %783 = vector.extract_strided_slice %782 {offsets = [0, 0], sizes = [2, 32], strides = [1, 1]} : vector<2x128xf32> to vector<2x32xf32>
    %cst_235 = arith.constant 0.000000e+00 : f32
    %784 = vector.broadcast %cst_235 : f32 to vector<2x32xf32>
    %785 = arith.subf %784, %783 : vector<2x32xf32>
    %786 = math.exp %785 : vector<2x32xf32>
    %cst_236 = arith.constant 1.000000e+00 : f32
    %787 = vector.broadcast %cst_236 : f32 to vector<2x32xf32>
    %788 = arith.addf %787, %786 : vector<2x32xf32>
    %cst_237 = arith.constant 1.000000e+00 : f32
    %789 = vector.broadcast %cst_237 : f32 to vector<2x32xf32>
    %790 = arith.divf %789, %788 : vector<2x32xf32>
    %791 = vector.extract_strided_slice %782 {offsets = [0, 32], sizes = [2, 32], strides = [1, 1]} : vector<2x128xf32> to vector<2x32xf32>
    %cst_238 = arith.constant 0.000000e+00 : f32
    %792 = vector.broadcast %cst_238 : f32 to vector<2x32xf32>
    %793 = arith.subf %792, %791 : vector<2x32xf32>
    %794 = math.exp %793 : vector<2x32xf32>
    %cst_239 = arith.constant 1.000000e+00 : f32
    %795 = vector.broadcast %cst_239 : f32 to vector<2x32xf32>
    %796 = arith.addf %795, %794 : vector<2x32xf32>
    %cst_240 = arith.constant 1.000000e+00 : f32
    %797 = vector.broadcast %cst_240 : f32 to vector<2x32xf32>
    %798 = arith.divf %797, %796 : vector<2x32xf32>
    %799 = vector.extract_strided_slice %782 {offsets = [0, 64], sizes = [2, 32], strides = [1, 1]} : vector<2x128xf32> to vector<2x32xf32>
    %800 = math.tanh %799 : vector<2x32xf32>
    %801 = vector.extract_strided_slice %782 {offsets = [0, 96], sizes = [2, 32], strides = [1, 1]} : vector<2x128xf32> to vector<2x32xf32>
    %cst_241 = arith.constant 0.000000e+00 : f32
    %802 = vector.broadcast %cst_241 : f32 to vector<2x32xf32>
    %803 = arith.subf %802, %801 : vector<2x32xf32>
    %804 = math.exp %803 : vector<2x32xf32>
    %cst_242 = arith.constant 1.000000e+00 : f32
    %805 = vector.broadcast %cst_242 : f32 to vector<2x32xf32>
    %806 = arith.addf %805, %804 : vector<2x32xf32>
    %cst_243 = arith.constant 1.000000e+00 : f32
    %807 = vector.broadcast %cst_243 : f32 to vector<2x32xf32>
    %808 = arith.divf %807, %806 : vector<2x32xf32>
    %809 = arith.mulf %798, %771 : vector<2x32xf32>
    %810 = arith.mulf %790, %800 : vector<2x32xf32>
    %811 = arith.addf %809, %810 : vector<2x32xf32>
    %812 = math.tanh %811 : vector<2x32xf32>
    %813 = arith.mulf %808, %812 : vector<2x32xf32>
    %c2_i32_244 = arith.constant 2 : i32
    %814 = vector.broadcast %c2_i32_244 : i32 to vector<2x1xi32>
    %815 = arith.cmpi sgt, %1, %814 : vector<2x1xi32>
    %816 = arith.extui %815 : vector<2x1xi1> to vector<2x1xi32>
    %817 = arith.sitofp %816 : vector<2x1xi32> to vector<2x1xf32>
    %818 = vector.broadcast %817 : vector<2x1xf32> to vector<2x32xf32>
    %819 = arith.mulf %818, %813 : vector<2x32xf32>
    %cst_245 = arith.constant 1.000000e+00 : f32
    %820 = vector.broadcast %cst_245 : f32 to vector<2x1xf32>
    %821 = arith.subf %820, %817 : vector<2x1xf32>
    %822 = vector.broadcast %821 : vector<2x1xf32> to vector<2x32xf32>
    %823 = arith.mulf %822, %764 : vector<2x32xf32>
    %824 = arith.addf %819, %823 : vector<2x32xf32>
    %825 = vector.broadcast %817 : vector<2x1xf32> to vector<2x32xf32>
    %826 = arith.mulf %825, %811 : vector<2x32xf32>
    %cst_246 = arith.constant 1.000000e+00 : f32
    %827 = vector.broadcast %cst_246 : f32 to vector<2x1xf32>
    %828 = arith.subf %827, %817 : vector<2x1xf32>
    %829 = vector.broadcast %828 : vector<2x1xf32> to vector<2x32xf32>
    %830 = arith.mulf %829, %771 : vector<2x32xf32>
    %831 = arith.addf %826, %830 : vector<2x32xf32>
    %c2_247 = arith.constant 2 : index
    %c0_248 = arith.constant 0 : index
    %c0_249 = arith.constant 0 : index
    %832 = vector.load %arg9[%c2_247, %c0_248, %c0_249] : memref<8x2x32xf32, #tpu.memory_space<vmem>>, vector<1x2x32xf32>
    %833 = vector.shape_cast %832 : vector<1x2x32xf32> to vector<2x32xf32>
    %834 = vector.broadcast %817 : vector<2x1xf32> to vector<2x32xf32>
    %835 = arith.mulf %834, %813 : vector<2x32xf32>
    %836 = arith.addf %833, %835 : vector<2x32xf32>
    %c2_250 = arith.constant 2 : index
    %c0_251 = arith.constant 0 : index
    %c0_252 = arith.constant 0 : index
    %837 = vector.load %arg9[%c2_250, %c0_251, %c0_252] : memref<8x2x32xf32, #tpu.memory_space<vmem>>, vector<1x2x32xf32>
    %838 = vector.shape_cast %837 : vector<1x2x32xf32> to vector<2x32xf32>
    %839 = vector.shape_cast %836 : vector<2x32xf32> to vector<1x2x32xf32>
    tpu.vector_store %arg9[%c2_250, %c0_251, %c0_252], %839 {strides = array<i32>} : memref<8x2x32xf32, #tpu.memory_space<vmem>>, vector<1x2x32xf32>,
    %840 = vector.extract_strided_slice %11 {offsets = [2, 0], sizes = [2, 128], strides = [1, 1]} : vector<16x128xf32> to vector<2x128xf32>
    %cst_253 = arith.constant dense<0.000000e+00> : vector<2x128xf32>
    %841 = tpu.matmul %824, %13, %cst_253 {dimension_numbers = #tpu.dot_dimension_numbers<[1], [0], [0], [1], [0, 0, 1, 1], [], []>} : vector<2x32xf32>, vector<32x128xf32>, vector<2x128xf32> -> vector<2x128xf32>
    %842 = arith.addf %840, %841 : vector<2x128xf32>
    %843 = vector.extract_strided_slice %842 {offsets = [0, 0], sizes = [2, 32], strides = [1, 1]} : vector<2x128xf32> to vector<2x32xf32>
    %cst_254 = arith.constant 0.000000e+00 : f32
    %844 = vector.broadcast %cst_254 : f32 to vector<2x32xf32>
    %845 = arith.subf %844, %843 : vector<2x32xf32>
    %846 = math.exp %845 : vector<2x32xf32>
    %cst_255 = arith.constant 1.000000e+00 : f32
    %847 = vector.broadcast %cst_255 : f32 to vector<2x32xf32>
    %848 = arith.addf %847, %846 : vector<2x32xf32>
    %cst_256 = arith.constant 1.000000e+00 : f32
    %849 = vector.broadcast %cst_256 : f32 to vector<2x32xf32>
    %850 = arith.divf %849, %848 : vector<2x32xf32>
    %851 = vector.extract_strided_slice %842 {offsets = [0, 32], sizes = [2, 32], strides = [1, 1]} : vector<2x128xf32> to vector<2x32xf32>
    %cst_257 = arith.constant 0.000000e+00 : f32
    %852 = vector.broadcast %cst_257 : f32 to vector<2x32xf32>
    %853 = arith.subf %852, %851 : vector<2x32xf32>
    %854 = math.exp %853 : vector<2x32xf32>
    %cst_258 = arith.constant 1.000000e+00 : f32
    %855 = vector.broadcast %cst_258 : f32 to vector<2x32xf32>
    %856 = arith.addf %855, %854 : vector<2x32xf32>
    %cst_259 = arith.constant 1.000000e+00 : f32
    %857 = vector.broadcast %cst_259 : f32 to vector<2x32xf32>
    %858 = arith.divf %857, %856 : vector<2x32xf32>
    %859 = vector.extract_strided_slice %842 {offsets = [0, 64], sizes = [2, 32], strides = [1, 1]} : vector<2x128xf32> to vector<2x32xf32>
    %860 = math.tanh %859 : vector<2x32xf32>
    %861 = vector.extract_strided_slice %842 {offsets = [0, 96], sizes = [2, 32], strides = [1, 1]} : vector<2x128xf32> to vector<2x32xf32>
    %cst_260 = arith.constant 0.000000e+00 : f32
    %862 = vector.broadcast %cst_260 : f32 to vector<2x32xf32>
    %863 = arith.subf %862, %861 : vector<2x32xf32>
    %864 = math.exp %863 : vector<2x32xf32>
    %cst_261 = arith.constant 1.000000e+00 : f32
    %865 = vector.broadcast %cst_261 : f32 to vector<2x32xf32>
    %866 = arith.addf %865, %864 : vector<2x32xf32>
    %cst_262 = arith.constant 1.000000e+00 : f32
    %867 = vector.broadcast %cst_262 : f32 to vector<2x32xf32>
    %868 = arith.divf %867, %866 : vector<2x32xf32>
    %869 = arith.mulf %858, %831 : vector<2x32xf32>
    %870 = arith.mulf %850, %860 : vector<2x32xf32>
    %871 = arith.addf %869, %870 : vector<2x32xf32>
    %872 = math.tanh %871 : vector<2x32xf32>
    %873 = arith.mulf %868, %872 : vector<2x32xf32>
    %c1_i32_263 = arith.constant 1 : i32
    %874 = vector.broadcast %c1_i32_263 : i32 to vector<2x1xi32>
    %875 = arith.cmpi sgt, %1, %874 : vector<2x1xi32>
    %876 = arith.extui %875 : vector<2x1xi1> to vector<2x1xi32>
    %877 = arith.sitofp %876 : vector<2x1xi32> to vector<2x1xf32>
    %878 = vector.broadcast %877 : vector<2x1xf32> to vector<2x32xf32>
    %879 = arith.mulf %878, %873 : vector<2x32xf32>
    %cst_264 = arith.constant 1.000000e+00 : f32
    %880 = vector.broadcast %cst_264 : f32 to vector<2x1xf32>
    %881 = arith.subf %880, %877 : vector<2x1xf32>
    %882 = vector.broadcast %881 : vector<2x1xf32> to vector<2x32xf32>
    %883 = arith.mulf %882, %824 : vector<2x32xf32>
    %884 = arith.addf %879, %883 : vector<2x32xf32>
    %885 = vector.broadcast %877 : vector<2x1xf32> to vector<2x32xf32>
    %886 = arith.mulf %885, %871 : vector<2x32xf32>
    %cst_265 = arith.constant 1.000000e+00 : f32
    %887 = vector.broadcast %cst_265 : f32 to vector<2x1xf32>
    %888 = arith.subf %887, %877 : vector<2x1xf32>
    %889 = vector.broadcast %888 : vector<2x1xf32> to vector<2x32xf32>
    %890 = arith.mulf %889, %831 : vector<2x32xf32>
    %891 = arith.addf %886, %890 : vector<2x32xf32>
    %c1_266 = arith.constant 1 : index
    %c0_267 = arith.constant 0 : index
    %c0_268 = arith.constant 0 : index
    %892 = vector.load %arg9[%c1_266, %c0_267, %c0_268] : memref<8x2x32xf32, #tpu.memory_space<vmem>>, vector<1x2x32xf32>
    %893 = vector.shape_cast %892 : vector<1x2x32xf32> to vector<2x32xf32>
    %894 = vector.broadcast %877 : vector<2x1xf32> to vector<2x32xf32>
    %895 = arith.mulf %894, %873 : vector<2x32xf32>
    %896 = arith.addf %893, %895 : vector<2x32xf32>
    %c1_269 = arith.constant 1 : index
    %c0_270 = arith.constant 0 : index
    %c0_271 = arith.constant 0 : index
    %897 = vector.load %arg9[%c1_269, %c0_270, %c0_271] : memref<8x2x32xf32, #tpu.memory_space<vmem>>, vector<1x2x32xf32>
    %898 = vector.shape_cast %897 : vector<1x2x32xf32> to vector<2x32xf32>
    %899 = vector.shape_cast %896 : vector<2x32xf32> to vector<1x2x32xf32>
    tpu.vector_store %arg9[%c1_269, %c0_270, %c0_271], %899 {strides = array<i32>} : memref<8x2x32xf32, #tpu.memory_space<vmem>>, vector<1x2x32xf32>,
    %900 = vector.extract_strided_slice %11 {offsets = [0, 0], sizes = [2, 128], strides = [1, 1]} : vector<16x128xf32> to vector<2x128xf32>
    %cst_272 = arith.constant dense<0.000000e+00> : vector<2x128xf32>
    %901 = tpu.matmul %884, %13, %cst_272 {dimension_numbers = #tpu.dot_dimension_numbers<[1], [0], [0], [1], [0, 0, 1, 1], [], []>} : vector<2x32xf32>, vector<32x128xf32>, vector<2x128xf32> -> vector<2x128xf32>
    %902 = arith.addf %900, %901 : vector<2x128xf32>
    %903 = vector.extract_strided_slice %902 {offsets = [0, 0], sizes = [2, 32], strides = [1, 1]} : vector<2x128xf32> to vector<2x32xf32>
    %cst_273 = arith.constant 0.000000e+00 : f32
    %904 = vector.broadcast %cst_273 : f32 to vector<2x32xf32>
    %905 = arith.subf %904, %903 : vector<2x32xf32>
    %906 = math.exp %905 : vector<2x32xf32>
    %cst_274 = arith.constant 1.000000e+00 : f32
    %907 = vector.broadcast %cst_274 : f32 to vector<2x32xf32>
    %908 = arith.addf %907, %906 : vector<2x32xf32>
    %cst_275 = arith.constant 1.000000e+00 : f32
    %909 = vector.broadcast %cst_275 : f32 to vector<2x32xf32>
    %910 = arith.divf %909, %908 : vector<2x32xf32>
    %911 = vector.extract_strided_slice %902 {offsets = [0, 32], sizes = [2, 32], strides = [1, 1]} : vector<2x128xf32> to vector<2x32xf32>
    %cst_276 = arith.constant 0.000000e+00 : f32
    %912 = vector.broadcast %cst_276 : f32 to vector<2x32xf32>
    %913 = arith.subf %912, %911 : vector<2x32xf32>
    %914 = math.exp %913 : vector<2x32xf32>
    %cst_277 = arith.constant 1.000000e+00 : f32
    %915 = vector.broadcast %cst_277 : f32 to vector<2x32xf32>
    %916 = arith.addf %915, %914 : vector<2x32xf32>
    %cst_278 = arith.constant 1.000000e+00 : f32
    %917 = vector.broadcast %cst_278 : f32 to vector<2x32xf32>
    %918 = arith.divf %917, %916 : vector<2x32xf32>
    %919 = vector.extract_strided_slice %902 {offsets = [0, 64], sizes = [2, 32], strides = [1, 1]} : vector<2x128xf32> to vector<2x32xf32>
    %920 = math.tanh %919 : vector<2x32xf32>
    %921 = vector.extract_strided_slice %902 {offsets = [0, 96], sizes = [2, 32], strides = [1, 1]} : vector<2x128xf32> to vector<2x32xf32>
    %cst_279 = arith.constant 0.000000e+00 : f32
    %922 = vector.broadcast %cst_279 : f32 to vector<2x32xf32>
    %923 = arith.subf %922, %921 : vector<2x32xf32>
    %924 = math.exp %923 : vector<2x32xf32>
    %cst_280 = arith.constant 1.000000e+00 : f32
    %925 = vector.broadcast %cst_280 : f32 to vector<2x32xf32>
    %926 = arith.addf %925, %924 : vector<2x32xf32>
    %cst_281 = arith.constant 1.000000e+00 : f32
    %927 = vector.broadcast %cst_281 : f32 to vector<2x32xf32>
    %928 = arith.divf %927, %926 : vector<2x32xf32>
    %929 = arith.mulf %918, %891 : vector<2x32xf32>
    %930 = arith.mulf %910, %920 : vector<2x32xf32>
    %931 = arith.addf %929, %930 : vector<2x32xf32>
    %932 = math.tanh %931 : vector<2x32xf32>
    %933 = arith.mulf %928, %932 : vector<2x32xf32>
    %c0_i32_282 = arith.constant 0 : i32
    %934 = vector.broadcast %c0_i32_282 : i32 to vector<2x1xi32>
    %935 = arith.cmpi sgt, %1, %934 : vector<2x1xi32>
    %936 = arith.extui %935 : vector<2x1xi1> to vector<2x1xi32>
    %937 = arith.sitofp %936 : vector<2x1xi32> to vector<2x1xf32>
    %938 = vector.broadcast %937 : vector<2x1xf32> to vector<2x32xf32>
    %939 = arith.mulf %938, %933 : vector<2x32xf32>
    %cst_283 = arith.constant 1.000000e+00 : f32
    %940 = vector.broadcast %cst_283 : f32 to vector<2x1xf32>
    %941 = arith.subf %940, %937 : vector<2x1xf32>
    %942 = vector.broadcast %941 : vector<2x1xf32> to vector<2x32xf32>
    %943 = arith.mulf %942, %884 : vector<2x32xf32>
    %944 = arith.addf %939, %943 : vector<2x32xf32>
    %945 = vector.broadcast %937 : vector<2x1xf32> to vector<2x32xf32>
    %946 = arith.mulf %945, %931 : vector<2x32xf32>
    %cst_284 = arith.constant 1.000000e+00 : f32
    %947 = vector.broadcast %cst_284 : f32 to vector<2x1xf32>
    %948 = arith.subf %947, %937 : vector<2x1xf32>
    %949 = vector.broadcast %948 : vector<2x1xf32> to vector<2x32xf32>
    %950 = arith.mulf %949, %891 : vector<2x32xf32>
    %951 = arith.addf %946, %950 : vector<2x32xf32>
    %c0_285 = arith.constant 0 : index
    %c0_286 = arith.constant 0 : index
    %c0_287 = arith.constant 0 : index
    %952 = vector.load %arg9[%c0_285, %c0_286, %c0_287] : memref<8x2x32xf32, #tpu.memory_space<vmem>>, vector<1x2x32xf32>
    %953 = vector.shape_cast %952 : vector<1x2x32xf32> to vector<2x32xf32>
    %954 = vector.broadcast %937 : vector<2x1xf32> to vector<2x32xf32>
    %955 = arith.mulf %954, %933 : vector<2x32xf32>
    %956 = arith.addf %953, %955 : vector<2x32xf32>
    %c0_288 = arith.constant 0 : index
    %c0_289 = arith.constant 0 : index
    %c0_290 = arith.constant 0 : index
    %957 = vector.load %arg9[%c0_288, %c0_289, %c0_290] : memref<8x2x32xf32, #tpu.memory_space<vmem>>, vector<1x2x32xf32>
    %958 = vector.shape_cast %957 : vector<1x2x32xf32> to vector<2x32xf32>
    %959 = vector.shape_cast %956 : vector<2x32xf32> to vector<1x2x32xf32>
    tpu.vector_store %arg9[%c0_288, %c0_289, %c0_290], %959 {strides = array<i32>} : memref<8x2x32xf32, #tpu.memory_space<vmem>>, vector<1x2x32xf32>,
    %c1_291 = arith.constant 1 : index
    %c0_292 = arith.constant 0 : index
    %c0_293 = arith.constant 0 : index
    %960 = vector.load %arg10[%c1_291, %c0_292, %c0_293] : memref<2x2x32xf32, #tpu.memory_space<vmem>>, vector<1x2x32xf32>
    %961 = vector.shape_cast %960 : vector<1x2x32xf32> to vector<2x32xf32>
    %962 = vector.shape_cast %944 : vector<2x32xf32> to vector<1x2x32xf32>
    tpu.vector_store %arg10[%c1_291, %c0_292, %c0_293], %962 {strides = array<i32>} : memref<2x2x32xf32, #tpu.memory_space<vmem>>, vector<1x2x32xf32>,
    %c1_294 = arith.constant 1 : index
    %c0_295 = arith.constant 0 : index
    %c0_296 = arith.constant 0 : index
    %963 = vector.load %arg11[%c1_294, %c0_295, %c0_296] : memref<2x2x32xf32, #tpu.memory_space<vmem>>, vector<1x2x32xf32>
    %964 = vector.shape_cast %963 : vector<1x2x32xf32> to vector<2x32xf32>
    %965 = vector.shape_cast %951 : vector<2x32xf32> to vector<1x2x32xf32>
    tpu.vector_store %arg11[%c1_294, %c0_295, %c0_296], %965 {strides = array<i32>} : memref<2x2x32xf32, #tpu.memory_space<vmem>>, vector<1x2x32xf32>,
    return
  }
  func.func @transform_0(%arg0: i32) -> (i32, i32) {
    %c0_i32 = arith.constant 0 : i32
    %c0_i32_0 = arith.constant 0 : i32
    %c0_i32_1 = arith.constant 0 : i32
    return %c0_i32, %c0_i32_0 : i32, i32
  }
  func.func @transform_1(%arg0: i32) -> (i32, i32) {
    %c0_i32 = arith.constant 0 : i32
    %c0_i32_0 = arith.constant 0 : i32
    %c0_i32_1 = arith.constant 0 : i32
    return %c0_i32, %c0_i32_0 : i32, i32
  }
  func.func @transform_2(%arg0: i32) -> (i32, i32) {
    %c0_i32 = arith.constant 0 : i32
    %c0_i32_0 = arith.constant 0 : i32
    %c0_i32_1 = arith.constant 0 : i32
    return %c0_i32, %c0_i32_0 : i32, i32
  }
  func.func @transform_3(%arg0: i32) -> (i32, i32) {
    %c0_i32 = arith.constant 0 : i32
    %c0_i32_0 = arith.constant 0 : i32
    %c0_i32_1 = arith.constant 0 : i32
    return %c0_i32, %c0_i32_0 : i32, i32
  }
  func.func @transform_4(%arg0: i32) -> (i32, i32) {
    %c0_i32 = arith.constant 0 : i32
    %c0_i32_0 = arith.constant 0 : i32
    %c0_i32_1 = arith.constant 0 : i32
    return %c0_i32, %c0_i32_0 : i32, i32
  }
  func.func @transform_5(%arg0: i32) -> (i32, i32) {
    %c0_i32 = arith.constant 0 : i32
    %c0_i32_0 = arith.constant 0 : i32
    %c0_i32_1 = arith.constant 0 : i32
    return %c0_i32, %c0_i32_0 : i32, i32
  }
  func.func @transform_6(%arg0: i32) -> (i32, i32) {
    %c0_i32 = arith.constant 0 : i32
    %c0_i32_0 = arith.constant 0 : i32
    %c0_i32_1 = arith.constant 0 : i32
    return %c0_i32, %c0_i32_0 : i32, i32
  }
  func.func @transform_7(%arg0: i32) -> (i32, i32) {
    %c0_i32 = arith.constant 0 : i32
    %c0_i32_0 = arith.constant 0 : i32
    %c0_i32_1 = arith.constant 0 : i32
    return %c0_i32, %c0_i32_0 : i32, i32
  }
  func.func @transform_8(%arg0: i32) -> (i32, i32, i32) {
    %c0_i32 = arith.constant 0 : i32
    %c0_i32_0 = arith.constant 0 : i32
    %c0_i32_1 = arith.constant 0 : i32
    %c0_i32_2 = arith.constant 0 : i32
    return %c0_i32, %c0_i32_0, %c0_i32_1 : i32, i32, i32
  }
  func.func @transform_9(%arg0: i32) -> (i32, i32, i32) {
    %c0_i32 = arith.constant 0 : i32
    %c0_i32_0 = arith.constant 0 : i32
    %c0_i32_1 = arith.constant 0 : i32
    %c0_i32_2 = arith.constant 0 : i32
    return %c0_i32, %c0_i32_0, %c0_i32_1 : i32, i32, i32
  }
  func.func @transform_10(%arg0: i32) -> (i32, i32, i32) {
    %c0_i32 = arith.constant 0 : i32
    %c0_i32_0 = arith.constant 0 : i32
    %c0_i32_1 = arith.constant 0 : i32
    %c0_i32_2 = arith.constant 0 : i32
    return %c0_i32, %c0_i32_0, %c0_i32_1 : i32, i32, i32
  }
}

</mosaic_0001>

<llo_original>
// kernel: tpu_custom_call.1
$region0: #{tpu_custom_call.1}
  #allocation0 [shape = 'u32[]', space=smem, size = 0x4, offset = 0x4, fixed_abs, tag = 'smem constant byte address 0x4 - core index']
  #allocation1 [shape = 'u32[144,128]{1,0:T(1,128)}', space=vmem, size = 0x12000, scoped, tag = 'internal scratch']
  %s0 = inlined_call_operand.hbm [shape: f32[16,32], index: 0, kind: input, shape index: {}]
  %s1 = inlined_call_operand.vmem [shape: s32[2,1], index: 1, kind: input, shape index: {}]
  %s2 = inlined_call_operand.hbm [shape: f32[32,128], index: 2, kind: input, shape index: {}]
  %s3 = inlined_call_operand.hbm [shape: f32[32,128], index: 3, kind: input, shape index: {}]
  %s4 = inlined_call_operand.vmem [shape: f32[1,128], index: 4, kind: input, shape index: {}]
  %s5 = inlined_call_operand.hbm [shape: f32[32,128], index: 5, kind: input, shape index: {}]
  %s6 = inlined_call_operand.hbm [shape: f32[32,128], index: 6, kind: input, shape index: {}]
  %s7 = inlined_call_operand.vmem [shape: f32[1,128], index: 7, kind: input, shape index: {}]
  %s8 = inlined_call_operand.hbm [shape: f32[8,2,32], index: 8, kind: output, shape index: {0}]
  %s9 = inlined_call_operand.hbm [shape: f32[2,2,32], index: 9, kind: output, shape index: {1}]
  %s10 = inlined_call_operand.hbm [shape: f32[2,2,32], index: 10, kind: output, shape index: {2}]
  %11 = xla_tuple %s8, %s9, %s10
  %s12 = sld [smem:[#allocation0]]
  $region78: #{tpu_custom_call.1} parent=0
    _
  %s14 = ssub.s32 1, %s12
  %s15 = scalar_select 0, %s14, %s12
  $region1: #{tpu_custom_call.1} parent=0
    #allocation2 [shape = 'u8[8192]{0}', space=vmem, size = 0x2000, scoped, tag = 'input window, operand 0, single buffered']
    #allocation3 [shape = 's32[1]{0}', space=sflag, size = 0x4, scoped, tag = 'scoped memory for tpu_custom_call.1']
    #allocation4 [shape = 's32[1]{0}', space=sflag, size = 0x4, scoped, tag = 'scoped memory for tpu_custom_call.1']
    #allocation5 [shape = 'u8[16384]{0}', space=vmem, size = 0x4000, scoped, tag = 'input window, operand 2, single buffered']
    #allocation6 [shape = 's32[1]{0}', space=sflag, size = 0x4, scoped, tag = 'scoped memory for tpu_custom_call.1']
    #allocation7 [shape = 'u8[16384]{0}', space=vmem, size = 0x4000, scoped, tag = 'input window, operand 3, single buffered']
    #allocation8 [shape = 'u8[16384]{0}', space=vmem, size = 0x4000, scoped, tag = 'input window, operand 5, single buffered']
    #allocation9 [shape = 's32[1]{0}', space=sflag, size = 0x4, scoped, tag = 'scoped memory for tpu_custom_call.1']
    #allocation10 [shape = 'u8[16384]{0}', space=vmem, size = 0x4000, scoped, tag = 'input window, operand 6, single buffered']
    #allocation11 [shape = 'u8[8192]{0}', space=vmem, size = 0x2000, scoped, tag = 'output window, operand 0, single buffered']
    #allocation12 [shape = 'u8[2048]{0}', space=vmem, size = 0x800, scoped, tag = 'output window, operand 1, single buffered']
    #allocation13 [shape = 's32[1]{0}', space=sflag, size = 0x4, scoped, tag = 'scoped memory for tpu_custom_call.1']
    #allocation14 [shape = 'u8[2048]{0}', space=vmem, size = 0x800, scoped, tag = 'output window, operand 2, single buffered']
    %16 = vsyncpa [#allocation3], 0
    %17 = vsyncpa [#allocation6], 0
    %18 = vsyncpa [#allocation9], 0
    %19 = vsyncpa [#allocation4], 0
    %20 = vsyncpa [#allocation13], 0
    // Predicated region
    $region2: #{tpu_custom_call.1} parent=1 // pred_check
      _
    $region3: #{tpu_custom_call.1} parent=1 // pred_check_branch
      %22 = sbr.rel (0) target = $region5
    $region4: #{tpu_custom_call.1} parent=1 // pred_region
      %s24 = ssub.s32 256, 256
      %25 = vsyncadd [#allocation3], %s24
      %s26 = sshll.u32 [#allocation2], 4
      %s27 = int_to_ptr.vmem [resolvable:$true] %s26
      %32 = dma.hbm_to_vmem [thread:$0]  %s0, 256, %s27, [#allocation3], 128, 128, 8
    $region5: #{tpu_custom_call.1} parent=1 // pred_fallthru
      _
    // Predicated region
    $region6: #{tpu_custom_call.1} parent=1 // pred_check
      _
    $region7: #{tpu_custom_call.1} parent=1 // pred_check_branch
      %34 = sbr.rel (0) target = $region9
    $region8: #{tpu_custom_call.1} parent=1 // pred_region
      _
    $region9: #{tpu_custom_call.1} parent=1 // pred_fallthru
      _
    // Predicated region
    $region10: #{tpu_custom_call.1} parent=1 // pred_check
      _
    $region11: #{tpu_custom_call.1} parent=1 // pred_check_branch
      %36 = sbr.rel (0) target = $region13
    $region12: #{tpu_custom_call.1} parent=1 // pred_region
      %s38 = ssub.s32 512, 512
      %39 = vsyncadd [#allocation6], %s38
      %s40 = sshll.u32 [#allocation5], 4
      %s41 = int_to_ptr.vmem [resolvable:$true] %s40
      %46 = dma.hbm_to_vmem [thread:$0]  %s2, 512, %s41, [#allocation6], 128, 128, 8
    $region13: #{tpu_custom_call.1} parent=1 // pred_fallthru
      _
    // Predicated region
    $region14: #{tpu_custom_call.1} parent=1 // pred_check
      _
    $region15: #{tpu_custom_call.1} parent=1 // pred_check_branch
      %48 = sbr.rel (0) target = $region17
    $region16: #{tpu_custom_call.1} parent=1 // pred_region
      %s50 = ssub.s32 512, 512
      %51 = vsyncadd [#allocation6], %s50
      %s52 = sshll.u32 [#allocation7], 4
      %s53 = int_to_ptr.vmem [resolvable:$true] %s52
      %58 = dma.hbm_to_vmem [thread:$0]  %s3, 512, %s53, [#allocation6], 128, 128, 8
    $region17: #{tpu_custom_call.1} parent=1 // pred_fallthru
      _
    // Predicated region
    $region18: #{tpu_custom_call.1} parent=1 // pred_check
      _
    $region19: #{tpu_custom_call.1} parent=1 // pred_check_branch
      %60 = sbr.rel (0) target = $region21
    $region20: #{tpu_custom_call.1} parent=1 // pred_region
      _
    $region21: #{tpu_custom_call.1} parent=1 // pred_fallthru
      _
    // Predicated region
    $region22: #{tpu_custom_call.1} parent=1 // pred_check
      _
    $region23: #{tpu_custom_call.1} parent=1 // pred_check_branch
      %62 = sbr.rel (0) target = $region25
    $region24: #{tpu_custom_call.1} parent=1 // pred_region
      %s64 = ssub.s32 512, 512
      %65 = vsyncadd [#allocation9], %s64
      %s66 = sshll.u32 [#allocation8], 4
      %s67 = int_to_ptr.vmem [resolvable:$true] %s66
      %72 = dma.hbm_to_vmem [thread:$0]  %s5, 512, %s67, [#allocation9], 128, 128, 8
    $region25: #{tpu_custom_call.1} parent=1 // pred_fallthru
      _
    // Predicated region
    $region26: #{tpu_custom_call.1} parent=1 // pred_check
      _
    $region27: #{tpu_custom_call.1} parent=1 // pred_check_branch
      %74 = sbr.rel (0) target = $region29
    $region28: #{tpu_custom_call.1} parent=1 // pred_region
      %s76 = ssub.s32 512, 512
      %77 = vsyncadd [#allocation9], %s76
      %s78 = sshll.u32 [#allocation10], 4
      %s79 = int_to_ptr.vmem [resolvable:$true] %s78
      %84 = dma.hbm_to_vmem [thread:$0]  %s6, 512, %s79, [#allocation9], 128, 128, 8
    $region29: #{tpu_custom_call.1} parent=1 // pred_fallthru
      _
    // Predicated region
    $region30: #{tpu_custom_call.1} parent=1 // pred_check
      _
    $region31: #{tpu_custom_call.1} parent=1 // pred_check_branch
      %86 = sbr.rel (0) target = $region33
    $region32: #{tpu_custom_call.1} parent=1 // pred_region
      _
    $region33: #{tpu_custom_call.1} parent=1 // pred_fallthru
      _
    // Predicated region
    $region34: #{tpu_custom_call.1} parent=1 // pred_check
      _
    $region35: #{tpu_custom_call.1} parent=1 // pred_check_branch
      %88 = sbr.rel (0) target = $region37
    $region36: #{tpu_custom_call.1} parent=1 // pred_region
      %89 = dma.done [#allocation3], 256
    $region37: #{tpu_custom_call.1} parent=1 // pred_fallthru
      _
    // Predicated region
    $region38: #{tpu_custom_call.1} parent=1 // pred_check
      _
    $region39: #{tpu_custom_call.1} parent=1 // pred_check_branch
      %91 = sbr.rel (0) target = $region41
    $region40: #{tpu_custom_call.1} parent=1 // pred_region
      %92 = dma.done [#allocation6], 512
    $region41: #{tpu_custom_call.1} parent=1 // pred_fallthru
      _
    // Predicated region
    $region42: #{tpu_custom_call.1} parent=1 // pred_check
      _
    $region43: #{tpu_custom_call.1} parent=1 // pred_check_branch
      %94 = sbr.rel (0) target = $region45
    $region44: #{tpu_custom_call.1} parent=1 // pred_region
      %95 = dma.done [#allocation6], 512
    $region45: #{tpu_custom_call.1} parent=1 // pred_fallthru
      _
    // Predicated region
    $region46: #{tpu_custom_call.1} parent=1 // pred_check
      _
    $region47: #{tpu_custom_call.1} parent=1 // pred_check_branch
      %97 = sbr.rel (0) target = $region49
    $region48: #{tpu_custom_call.1} parent=1 // pred_region
      %98 = dma.done [#allocation9], 512
    $region49: #{tpu_custom_call.1} parent=1 // pred_fallthru
      _
    // Predicated region
    $region50: #{tpu_custom_call.1} parent=1 // pred_check
      _
    $region51: #{tpu_custom_call.1} parent=1 // pred_check_branch
      %100 = sbr.rel (0) target = $region53
    $region52: #{tpu_custom_call.1} parent=1 // pred_region
      %101 = dma.done [#allocation9], 512
    $region53: #{tpu_custom_call.1} parent=1 // pred_fallthru
      _
    %v102 = vld [vmem:[#allocation2] sm:$0xff]
    %v103 = vld [vmem:[#allocation2 + $0x8] sm:$0xff]
    %v104 = vld [vmem:[%s1] sm:$0x3]
    %v105 = vld [vmem:[#allocation5] sm:$0xff]
    %v106 = vld [vmem:[#allocation5 + $0x8] sm:$0xff]
    %v107 = vld [vmem:[#allocation5 + $0x10] sm:$0xff]
    %v108 = vld [vmem:[#allocation5 + $0x18] sm:$0xff]
    %v109 = vld [vmem:[%s4] sm:$0x1]
    %v111 = vlaneseq
    %v112 = vshrl.u32 %v111, 7
    %v113 = vsub.s32 0, %v112
    %v114 = vrot.slane %v109, %v113
    %vm116 = vcmask 261120
    %v118 = vsel %vm116, %v102, 0
    %v121 = vsel %vm116, %v103, 0
    %123 = vmatprep.subr.mxu0 0.0
    %124 = vmatpush1.msra.mxu0 %v105
    %125 = vmatprep.subr.mxu0 0.0
    %126 = vmatpush1.msra.mxu0 %v106
    %127 = vmatprep.subr.mxu0 0.0
    %128 = vmatpush1.msra.mxu0 %v107
    %129 = vmatprep.subr.mxu0 0.0
    %130 = vmatpush1.msra.mxu0 %v108
    %131 = vmatprep.subr.mxu0 0.0
    %132 = vmatpush1.msra.mxu0 0.0
    %133 = vmatprep.subr.mxu0 0.0
    %134 = vmatpush1.msra.mxu0 0.0
    %135 = vmatprep.subr.mxu0 0.0
    %136 = vmatpush1.msra.mxu0 0.0
    %137 = vmatprep.subr.mxu0 0.0
    %138 = vmatpush1.msra.mxu0 0.0
    %139 = vmatprep.subr.mxu0 0.0
    %140 = vmatpush1.msra.mxu0 0.0
    %141 = vmatprep.subr.mxu0 0.0
    %142 = vmatpush1.msra.mxu0 0.0
    %143 = vmatprep.subr.mxu0 0.0
    %144 = vmatpush1.msra.mxu0 0.0
    %145 = vmatprep.subr.mxu0 0.0
    %146 = vmatpush1.msra.mxu0 0.0
    %147 = vmatprep.subr.mxu0 0.0
    %148 = vmatpush1.msra.mxu0 0.0
    %149 = vmatprep.subr.mxu0 0.0
    %150 = vmatpush1.msra.mxu0 0.0
    %151 = vmatprep.subr.mxu0 0.0
    %152 = vmatpush1.msra.mxu0 0.0
    %153 = vmatprep.subr.mxu0 0.0
    %154 = vmatpush1.msra.mxu0 0.0
    %155 = vmatprep.subr.mxu0 0.0
    %156 = vmatpush1.msra.mxu0 0.0
    %157 = vmatprep.subr.mxu0 0.0
    %158 = vmatpush1.msra.mxu0 0.0
    %159 = vmatprep.subr.mxu0 0.0
    %160 = vmatpush1.msra.mxu0 0.0
    %161 = vmatprep.subr.mxu0 0.0
    %162 = vmatpush1.msra.mxu0 0.0
    %163 = vmatprep.subr.mxu0 0.0
    %164 = vmatpush1.msra.mxu0 0.0
    %165 = vmatprep.subr.mxu0 0.0
    %166 = vmatpush1.msra.mxu0 0.0
    %167 = vmatprep.subr.mxu0 0.0
    %168 = vmatpush1.msra.mxu0 0.0
    %169 = vmatprep.subr.mxu0 0.0
    %170 = vmatpush1.msra.mxu0 0.0
    %171 = vmatprep.subr.mxu0 0.0
    %172 = vmatpush1.msra.mxu0 0.0
    %173 = vmatprep.subr.mxu0 0.0
    %174 = vmatpush1.msra.mxu0 0.0
    %175 = vmatprep.subr.mxu0 0.0
    %176 = vmatpush1.msra.mxu0 0.0
    %177 = vmatprep.subr.mxu0 0.0
    %178 = vmatpush1.msra.mxu0 0.0
    %179 = vmatprep.subr.mxu0 0.0
    %180 = vmatpush1.msra.mxu0 0.0
    %181 = vmatprep.subr.mxu0 0.0
    %182 = vmatpush1.msra.mxu0 0.0
    %183 = vmatprep.subr.mxu0 0.0
    %184 = vmatpush1.msra.mxu0 0.0
    %185 = vmatprep.subr.mxu0 0.0
    %186 = vmatpush1.msra.mxu0 0.0
    %187 = vmatprep.mubr.f32.mxu0 0.0
    %188 = vmatmul.mubr.f32.gmra.mrb[0].mxu0 %v118
    %v189 = vpop.f32.mrb[0].mxu0
    %v190 = vadd.f32 %v114, %v189
    %v191 = vpop.f32.mrb[0].mxu0
    %192 = vmatprep.mubr.f32.mxu0 0.0
    %193 = vmatmul.mubr.f32.gmra.mrb[0].mxu0 %v121
    %v194 = vpop.f32.mrb[0].mxu0
    %v195 = vadd.f32 %v114, %v194
    %v196 = vpop.f32.mrb[0].mxu0
    %197 = vdwg.mxu0
    %v198 = vld [vmem:[#allocation8] sm:$0xff]
    %v199 = vld [vmem:[#allocation8 + $0x8] sm:$0xff]
    %v200 = vld [vmem:[#allocation8 + $0x10] sm:$0xff]
    %v201 = vld [vmem:[#allocation8 + $0x18] sm:$0xff]
    %v202 = vld [vmem:[%s7] sm:$0x1]
    %v204 = vlaneseq
    %v205 = vshrl.u32 %v204, 7
    %v206 = vsub.s32 0, %v205
    %v207 = vrot.slane %v202, %v206
    %209 = vmatprep.subr.mxu0 0.0
    %210 = vmatpush1.msra.mxu0 %v198
    %211 = vmatprep.subr.mxu0 0.0
    %212 = vmatpush1.msra.mxu0 %v199
    %213 = vmatprep.subr.mxu0 0.0
    %214 = vmatpush1.msra.mxu0 %v200
    %215 = vmatprep.subr.mxu0 0.0
    %216 = vmatpush1.msra.mxu0 %v201
    %217 = vmatprep.subr.mxu0 0.0
    %218 = vmatpush1.msra.mxu0 0.0
    %219 = vmatprep.subr.mxu0 0.0
    %220 = vmatpush1.msra.mxu0 0.0
    %221 = vmatprep.subr.mxu0 0.0
    %222 = vmatpush1.msra.mxu0 0.0
    %223 = vmatprep.subr.mxu0 0.0
    %224 = vmatpush1.msra.mxu0 0.0
    %225 = vmatprep.subr.mxu0 0.0
    %226 = vmatpush1.msra.mxu0 0.0
    %227 = vmatprep.subr.mxu0 0.0
    %228 = vmatpush1.msra.mxu0 0.0
    %229 = vmatprep.subr.mxu0 0.0
    %230 = vmatpush1.msra.mxu0 0.0
    %231 = vmatprep.subr.mxu0 0.0
    %232 = vmatpush1.msra.mxu0 0.0
    %233 = vmatprep.subr.mxu0 0.0
    %234 = vmatpush1.msra.mxu0 0.0
    %235 = vmatprep.subr.mxu0 0.0
    %236 = vmatpush1.msra.mxu0 0.0
    %237 = vmatprep.subr.mxu0 0.0
    %238 = vmatpush1.msra.mxu0 0.0
    %239 = vmatprep.subr.mxu0 0.0
    %240 = vmatpush1.msra.mxu0 0.0
    %241 = vmatprep.subr.mxu0 0.0
    %242 = vmatpush1.msra.mxu0 0.0
    %243 = vmatprep.subr.mxu0 0.0
    %244 = vmatpush1.msra.mxu0 0.0
    %245 = vmatprep.subr.mxu0 0.0
    %246 = vmatpush1.msra.mxu0 0.0
    %247 = vmatprep.subr.mxu0 0.0
    %248 = vmatpush1.msra.mxu0 0.0
    %249 = vmatprep.subr.mxu0 0.0
    %250 = vmatpush1.msra.mxu0 0.0
    %251 = vmatprep.subr.mxu0 0.0
    %252 = vmatpush1.msra.mxu0 0.0
    %253 = vmatprep.subr.mxu0 0.0
    %254 = vmatpush1.msra.mxu0 0.0
    %255 = vmatprep.subr.mxu0 0.0
    %256 = vmatpush1.msra.mxu0 0.0
    %257 = vmatprep.subr.mxu0 0.0
    %258 = vmatpush1.msra.mxu0 0.0
    %259 = vmatprep.subr.mxu0 0.0
    %260 = vmatpush1.msra.mxu0 0.0
    %261 = vmatprep.subr.mxu0 0.0
    %262 = vmatpush1.msra.mxu0 0.0
    %263 = vmatprep.subr.mxu0 0.0
    %264 = vmatpush1.msra.mxu0 0.0
    %265 = vmatprep.subr.mxu0 0.0
    %266 = vmatpush1.msra.mxu0 0.0
    %267 = vmatprep.subr.mxu0 0.0
    %268 = vmatpush1.msra.mxu0 0.0
    %269 = vmatprep.subr.mxu0 0.0
    %270 = vmatpush1.msra.mxu0 0.0
    %271 = vmatprep.subr.mxu0 0.0
    %272 = vmatpush1.msra.mxu0 0.0
    %273 = vmatprep.mubr.f32.mxu0 0.0
    %274 = vmatmul.mubr.f32.gmra.mrb[0].mxu0 %v118
    %v275 = vpop.f32.mrb[0].mxu0
    %v276 = vadd.f32 %v207, %v275
    %v277 = vpop.f32.mrb[0].mxu0
    %278 = vmatprep.mubr.f32.mxu0 0.0
    %279 = vmatmul.mubr.f32.gmra.mrb[0].mxu0 %v121
    %v280 = vpop.f32.mrb[0].mxu0
    %v281 = vadd.f32 %v207, %v280
    %v282 = vpop.f32.mrb[0].mxu0
    %283 = vdwg.mxu0
    %v284 = vld [vmem:[#allocation7] sm:$0xff]
    %v285 = vld [vmem:[#allocation7 + $0x8] sm:$0xff]
    %v286 = vld [vmem:[#allocation7 + $0x10] sm:$0xff]
    %v287 = vld [vmem:[#allocation7 + $0x18] sm:$0xff]
    %v288 = vld [vmem:[#allocation10] sm:$0xff]
    %v289 = vld [vmem:[#allocation10 + $0x8] sm:$0xff]
    %v290 = vld [vmem:[#allocation10 + $0x10] sm:$0xff]
    %v291 = vld [vmem:[#allocation10 + $0x18] sm:$0xff]
    %v293 = vsel %vm116, 0.0, 0
    %295 = vmatprep.subr.mxu0 0.0
    %296 = vmatpush1.msra.mxu0 %v284
    %297 = vmatprep.subr.mxu0 0.0
    %298 = vmatpush1.msra.mxu0 %v285
    %299 = vmatprep.subr.mxu0 0.0
    %300 = vmatpush1.msra.mxu0 %v286
    %301 = vmatprep.subr.mxu0 0.0
    %302 = vmatpush1.msra.mxu0 %v287
    %303 = vmatprep.subr.mxu0 0.0
    %304 = vmatpush1.msra.mxu0 0.0
    %305 = vmatprep.subr.mxu0 0.0
    %306 = vmatpush1.msra.mxu0 0.0
    %307 = vmatprep.subr.mxu0 0.0
    %308 = vmatpush1.msra.mxu0 0.0
    %309 = vmatprep.subr.mxu0 0.0
    %310 = vmatpush1.msra.mxu0 0.0
    %311 = vmatprep.subr.mxu0 0.0
    %312 = vmatpush1.msra.mxu0 0.0
    %313 = vmatprep.subr.mxu0 0.0
    %314 = vmatpush1.msra.mxu0 0.0
    %315 = vmatprep.subr.mxu0 0.0
    %316 = vmatpush1.msra.mxu0 0.0
    %317 = vmatprep.subr.mxu0 0.0
    %318 = vmatpush1.msra.mxu0 0.0
    %319 = vmatprep.subr.mxu0 0.0
    %320 = vmatpush1.msra.mxu0 0.0
    %321 = vmatprep.subr.mxu0 0.0
    %322 = vmatpush1.msra.mxu0 0.0
    %323 = vmatprep.subr.mxu0 0.0
    %324 = vmatpush1.msra.mxu0 0.0
    %325 = vmatprep.subr.mxu0 0.0
    %326 = vmatpush1.msra.mxu0 0.0
    %327 = vmatprep.subr.mxu0 0.0
    %328 = vmatpush1.msra.mxu0 0.0
    %329 = vmatprep.subr.mxu0 0.0
    %330 = vmatpush1.msra.mxu0 0.0
    %331 = vmatprep.subr.mxu0 0.0
    %332 = vmatpush1.msra.mxu0 0.0
    %333 = vmatprep.subr.mxu0 0.0
    %334 = vmatpush1.msra.mxu0 0.0
    %335 = vmatprep.subr.mxu0 0.0
    %336 = vmatpush1.msra.mxu0 0.0
    %337 = vmatprep.subr.mxu0 0.0
    %338 = vmatpush1.msra.mxu0 0.0
    %339 = vmatprep.subr.mxu0 0.0
    %340 = vmatpush1.msra.mxu0 0.0
    %341 = vmatprep.subr.mxu0 0.0
    %342 = vmatpush1.msra.mxu0 0.0
    %343 = vmatprep.subr.mxu0 0.0
    %344 = vmatpush1.msra.mxu0 0.0
    %345 = vmatprep.subr.mxu0 0.0
    %346 = vmatpush1.msra.mxu0 0.0
    %347 = vmatprep.subr.mxu0 0.0
    %348 = vmatpush1.msra.mxu0 0.0
    %349 = vmatprep.subr.mxu0 0.0
    %350 = vmatpush1.msra.mxu0 0.0
    %351 = vmatprep.subr.mxu0 0.0
    %352 = vmatpush1.msra.mxu0 0.0
    %353 = vmatprep.subr.mxu0 0.0
    %354 = vmatpush1.msra.mxu0 0.0
    %355 = vmatprep.subr.mxu0 0.0
    %356 = vmatpush1.msra.mxu0 0.0
    %357 = vmatprep.subr.mxu0 0.0
    %358 = vmatpush1.msra.mxu0 0.0
    %359 = vmatprep.mubr.f32.mxu0 0.0
    %360 = vmatmul.mubr.f32.gmra.mrb[0].mxu0 %v293
    %v361 = vpop.f32.mrb[0].mxu0
    %v362 = vadd.f32 0.0, %v361
    %v363 = vpop.f32.mrb[0].mxu0
    %364 = vdwg.mxu0
    %v365 = vadd.f32 %v190, %v362
    %v366 = vsub.f32 0.0, %v365
    %v367 = vmul.f32 %v366, 1.442695
    %v368 = vpow.pop %v367
    %v369 = vadd.f32 %v368, 1.0
    %v370 = vrcp.pop %v369
    %v371 = vmul.f32 1.0, %v370
    %v372 = vtanh.pop %v365
    %v373 = vmul.f32 %v371, 0.0
    %375 = vrot.lane.b32.xlu0 %v372, 64
    %v376 = vpop.permute.xlu0 %375
    %v378 = vmul.f32 %v371, %v376
    %380 = vrot.lane.b32.xlu0 %v378, 32
    %v381 = vpop.permute.xlu0 %380
    %v383 = vadd.f32 %v373, %v381
    %v384 = vtanh.pop %v383
    %386 = vrot.lane.b32.xlu0 %v384, 64
    %v387 = vpop.permute.xlu0 %386
    %v389 = vmul.f32 %v371, %v387
    %vm390 = vcmp.gt.s32.totalorder %v104, 0
    %v391 = vsel %vm390, 1, 0
    %v392 = vcvt.s32.f32 %v391
    %394 = vset.pattern.permute.xlu0 0
    %395 = vperm.xlu0 %394, %v392
    %v396 = vpop.permute.xlu0 %395
    %v398 = vmul.f32 %v396, %v389
    %v399 = vsub.f32 1.0, %v392
    %401 = vset.pattern.permute.xlu0 0
    %402 = vperm.xlu0 %401, %v399
    %v403 = vpop.permute.xlu0 %402
    %v405 = vmul.f32 %v403, 0.0
    %v406 = vadd.f32 %v398, %v405
    %v407 = vmul.f32 %v396, %v383
    %v408 = vadd.f32 %v407, %v405
    %410 = vrot.lane.b32.xlu0 %v398, 32
    %v411 = vpop.permute.xlu0 %410
    %vm413 = vcmask 254976
    %414 = vst.msk [vmem:[#allocation11] sm:$0x3] %vm413, %v411
    %416 = vrot.lane.b32.xlu0 %v406, 32
    %v417 = vpop.permute.xlu0 %416
    %v418 = vsel %vm116, %v417, 0
    %420 = vmatprep.subr.mxu0 0.0
    %421 = vmatpush1.msra.mxu0 %v284
    %422 = vmatprep.subr.mxu0 0.0
    %423 = vmatpush1.msra.mxu0 %v285
    %424 = vmatprep.subr.mxu0 0.0
    %425 = vmatpush1.msra.mxu0 %v286
    %426 = vmatprep.subr.mxu0 0.0
    %427 = vmatpush1.msra.mxu0 %v287
    %428 = vmatprep.subr.mxu0 0.0
    %429 = vmatpush1.msra.mxu0 0.0
    %430 = vmatprep.subr.mxu0 0.0
    %431 = vmatpush1.msra.mxu0 0.0
    %432 = vmatprep.subr.mxu0 0.0
    %433 = vmatpush1.msra.mxu0 0.0
    %434 = vmatprep.subr.mxu0 0.0
    %435 = vmatpush1.msra.mxu0 0.0
    %436 = vmatprep.subr.mxu0 0.0
    %437 = vmatpush1.msra.mxu0 0.0
    %438 = vmatprep.subr.mxu0 0.0
    %439 = vmatpush1.msra.mxu0 0.0
    %440 = vmatprep.subr.mxu0 0.0
    %441 = vmatpush1.msra.mxu0 0.0
    %442 = vmatprep.subr.mxu0 0.0
    %443 = vmatpush1.msra.mxu0 0.0
    %444 = vmatprep.subr.mxu0 0.0
    %445 = vmatpush1.msra.mxu0 0.0
    %446 = vmatprep.subr.mxu0 0.0
    %447 = vmatpush1.msra.mxu0 0.0
    %448 = vmatprep.subr.mxu0 0.0
    %449 = vmatpush1.msra.mxu0 0.0
    %450 = vmatprep.subr.mxu0 0.0
    %451 = vmatpush1.msra.mxu0 0.0
    %452 = vmatprep.subr.mxu0 0.0
    %453 = vmatpush1.msra.mxu0 0.0
    %454 = vmatprep.subr.mxu0 0.0
    %455 = vmatpush1.msra.mxu0 0.0
    %456 = vmatprep.subr.mxu0 0.0
    %457 = vmatpush1.msra.mxu0 0.0
    %458 = vmatprep.subr.mxu0 0.0
    %459 = vmatpush1.msra.mxu0 0.0
    %460 = vmatprep.subr.mxu0 0.0
    %461 = vmatpush1.msra.mxu0 0.0
    %462 = vmatprep.subr.mxu0 0.0
    %463 = vmatpush1.msra.mxu0 0.0
    %464 = vmatprep.subr.mxu0 0.0
    %465 = vmatpush1.msra.mxu0 0.0
    %466 = vmatprep.subr.mxu0 0.0
    %467 = vmatpush1.msra.mxu0 0.0
    %468 = vmatprep.subr.mxu0 0.0
    %469 = vmatpush1.msra.mxu0 0.0
    %470 = vmatprep.subr.mxu0 0.0
    %471 = vmatpush1.msra.mxu0 0.0
    %472 = vmatprep.subr.mxu0 0.0
    %473 = vmatpush1.msra.mxu0 0.0
    %474 = vmatprep.subr.mxu0 0.0
    %475 = vmatpush1.msra.mxu0 0.0
    %476 = vmatprep.subr.mxu0 0.0
    %477 = vmatpush1.msra.mxu0 0.0
    %478 = vmatprep.subr.mxu0 0.0
    %479 = vmatpush1.msra.mxu0 0.0
    %480 = vmatprep.subr.mxu0 0.0
    %481 = vmatpush1.msra.mxu0 0.0
    %482 = vmatprep.subr.mxu0 0.0
    %483 = vmatpush1.msra.mxu0 0.0
    %484 = vmatprep.mubr.f32.mxu0 0.0
    %485 = vmatmul.mubr.f32.gmra.mrb[0].mxu0 %v418
    %v486 = vpop.f32.mrb[0].mxu0
    %v487 = vadd.f32 0.0, %v486
    %v488 = vpop.f32.mrb[0].mxu0
    %489 = vdwg.mxu0
    %v491 = vrot.slane %v487, 6
    %v493 = vadd.f32 %v190, %v491
    %v494 = vsub.f32 0.0, %v493
    %v495 = vmul.f32 %v494, 1.442695
    %v496 = vpow.pop %v495
    %v497 = vadd.f32 %v496, 1.0
    %v498 = vrcp.pop %v497
    %v499 = vmul.f32 1.0, %v498
    %v500 = vtanh.pop %v493
    %v502 = vrot.slane %v408, 6
    %v504 = vmul.f32 %v499, %v502
    %506 = vrot.lane.b32.xlu0 %v500, 64
    %v507 = vpop.permute.xlu0 %506
    %v509 = vmul.f32 %v499, %v507
    %511 = vrot.lane.b32.xlu0 %v509, 32
    %v512 = vpop.permute.xlu0 %511
    %v514 = vadd.f32 %v504, %v512
    %v515 = vtanh.pop %v514
    %517 = vrot.lane.b32.xlu0 %v515, 64
    %v518 = vpop.permute.xlu0 %517
    %v520 = vmul.f32 %v499, %v518
    %vm521 = vcmp.gt.s32.totalorder %v104, 1
    %v522 = vsel %vm521, 1, 0
    %v523 = vcvt.s32.f32 %v522
    %525 = vset.pattern.permute.xlu0 0
    %526 = vperm.xlu0 %525, %v523
    %v527 = vpop.permute.xlu0 %526
    %v530 = vrot.slane %v520, 2
    %531 = vrot.lane.b32.xlu0 %v530, 32
    %v532 = vpop.permute.xlu0 %531
    %v534 = vmul.f32 %v527, %v532
    %v535 = vsub.f32 1.0, %v523
    %537 = vset.pattern.permute.xlu0 0
    %538 = vperm.xlu0 %537, %v535
    %v539 = vpop.permute.xlu0 %538
    %v541 = vmul.f32 %v539, %v406
    %543 = vrot.lane.b32.xlu0 %v541, 32
    %v544 = vpop.permute.xlu0 %543
    %v546 = vadd.f32 %v534, %v544
    %v548 = vrot.slane %v514, 2
    %549 = vrot.lane.b32.xlu0 %v548, 96
    %v550 = vpop.permute.xlu0 %549
    %v552 = vmul.f32 %v527, %v550
    %v553 = vmul.f32 %v539, %v408
    %555 = vrot.lane.b32.xlu0 %v553, 96
    %v556 = vpop.permute.xlu0 %555
    %v558 = vadd.f32 %v552, %v556
    %s559 = scalar_lea.vmem [#allocation11], 2
    %560 = vst.msk [vmem:[%s559] sm:$0x3] %vm413, %v534
    %v562 = vsel %vm116, %v546, 0
    %564 = vmatprep.subr.mxu0 0.0
    %565 = vmatpush1.msra.mxu0 %v284
    %566 = vmatprep.subr.mxu0 0.0
    %567 = vmatpush1.msra.mxu0 %v285
    %568 = vmatprep.subr.mxu0 0.0
    %569 = vmatpush1.msra.mxu0 %v286
    %570 = vmatprep.subr.mxu0 0.0
    %571 = vmatpush1.msra.mxu0 %v287
    %572 = vmatprep.subr.mxu0 0.0
    %573 = vmatpush1.msra.mxu0 0.0
    %574 = vmatprep.subr.mxu0 0.0
    %575 = vmatpush1.msra.mxu0 0.0
    %576 = vmatprep.subr.mxu0 0.0
    %577 = vmatpush1.msra.mxu0 0.0
    %578 = vmatprep.subr.mxu0 0.0
    %579 = vmatpush1.msra.mxu0 0.0
    %580 = vmatprep.subr.mxu0 0.0
    %581 = vmatpush1.msra.mxu0 0.0
    %582 = vmatprep.subr.mxu0 0.0
    %583 = vmatpush1.msra.mxu0 0.0
    %584 = vmatprep.subr.mxu0 0.0
    %585 = vmatpush1.msra.mxu0 0.0
    %586 = vmatprep.subr.mxu0 0.0
    %587 = vmatpush1.msra.mxu0 0.0
    %588 = vmatprep.subr.mxu0 0.0
    %589 = vmatpush1.msra.mxu0 0.0
    %590 = vmatprep.subr.mxu0 0.0
    %591 = vmatpush1.msra.mxu0 0.0
    %592 = vmatprep.subr.mxu0 0.0
    %593 = vmatpush1.msra.mxu0 0.0
    %594 = vmatprep.subr.mxu0 0.0
    %595 = vmatpush1.msra.mxu0 0.0
    %596 = vmatprep.subr.mxu0 0.0
    %597 = vmatpush1.msra.mxu0 0.0
    %598 = vmatprep.subr.mxu0 0.0
    %599 = vmatpush1.msra.mxu0 0.0
    %600 = vmatprep.subr.mxu0 0.0
    %601 = vmatpush1.msra.mxu0 0.0
    %602 = vmatprep.subr.mxu0 0.0
    %603 = vmatpush1.msra.mxu0 0.0
    %604 = vmatprep.subr.mxu0 0.0
    %605 = vmatpush1.msra.mxu0 0.0
    %606 = vmatprep.subr.mxu0 0.0
    %607 = vmatpush1.msra.mxu0 0.0
    %608 = vmatprep.subr.mxu0 0.0
    %609 = vmatpush1.msra.mxu0 0.0
    %610 = vmatprep.subr.mxu0 0.0
    %611 = vmatpush1.msra.mxu0 0.0
    %612 = vmatprep.subr.mxu0 0.0
    %613 = vmatpush1.msra.mxu0 0.0
    %614 = vmatprep.subr.mxu0 0.0
    %615 = vmatpush1.msra.mxu0 0.0
    %616 = vmatprep.subr.mxu0 0.0
    %617 = vmatpush1.msra.mxu0 0.0
    %618 = vmatprep.subr.mxu0 0.0
    %619 = vmatpush1.msra.mxu0 0.0
    %620 = vmatprep.subr.mxu0 0.0
    %621 = vmatpush1.msra.mxu0 0.0
    %622 = vmatprep.subr.mxu0 0.0
    %623 = vmatpush1.msra.mxu0 0.0
    %624 = vmatprep.subr.mxu0 0.0
    %625 = vmatpush1.msra.mxu0 0.0
    %626 = vmatprep.subr.mxu0 0.0
    %627 = vmatpush1.msra.mxu0 0.0
    %628 = vmatprep.mubr.f32.mxu0 0.0
    %629 = vmatmul.mubr.f32.gmra.mrb[0].mxu0 %v562
    %v630 = vpop.f32.mrb[0].mxu0
    %v631 = vadd.f32 0.0, %v630
    %v632 = vpop.f32.mrb[0].mxu0
    %633 = vdwg.mxu0
    %v635 = vrot.slane %v631, 4
    %v637 = vadd.f32 %v190, %v635
    %v638 = vsub.f32 0.0, %v637
    %v639 = vmul.f32 %v638, 1.442695
    %v640 = vpow.pop %v639
    %v641 = vadd.f32 %v640, 1.0
    %v642 = vrcp.pop %v641
    %v643 = vmul.f32 1.0, %v642
    %v644 = vtanh.pop %v637
    %v646 = vrot.slane %v558, 4
    %647 = vrot.lane.b32.xlu0 %v646, 32
    %v648 = vpop.permute.xlu0 %647
    %v650 = vmul.f32 %v643, %v648
    %652 = vrot.lane.b32.xlu0 %v644, 64
    %v653 = vpop.permute.xlu0 %652
    %v655 = vmul.f32 %v643, %v653
    %657 = vrot.lane.b32.xlu0 %v655, 32
    %v658 = vpop.permute.xlu0 %657
    %v660 = vadd.f32 %v650, %v658
    %v661 = vtanh.pop %v660
    %663 = vrot.lane.b32.xlu0 %v661, 64
    %v664 = vpop.permute.xlu0 %663
    %v666 = vmul.f32 %v643, %v664
    %vm667 = vcmp.gt.s32.totalorder %v104, 2
    %v668 = vsel %vm667, 1, 0
    %v669 = vcvt.s32.f32 %v668
    %671 = vset.pattern.permute.xlu0 0
    %672 = vperm.xlu0 %671, %v669
    %v673 = vpop.permute.xlu0 %672
    %v676 = vrot.slane %v666, 4
    %677 = vrot.lane.b32.xlu0 %v676, 32
    %v678 = vpop.permute.xlu0 %677
    %v680 = vmul.f32 %v673, %v678
    %v681 = vsub.f32 1.0, %v669
    %683 = vset.pattern.permute.xlu0 0
    %684 = vperm.xlu0 %683, %v681
    %v685 = vpop.permute.xlu0 %684
    %v687 = vmul.f32 %v685, %v546
    %v688 = vadd.f32 %v680, %v687
    %v690 = vrot.slane %v660, 4
    %691 = vrot.lane.b32.xlu0 %v690, 96
    %v692 = vpop.permute.xlu0 %691
    %v694 = vmul.f32 %v673, %v692
    %v695 = vmul.f32 %v685, %v558
    %v696 = vadd.f32 %v694, %v695
    %s697 = scalar_lea.vmem [#allocation11], 4
    %698 = vst.msk [vmem:[%s697] sm:$0x3] %vm413, %v680
    %v700 = vsel %vm116, %v688, 0
    %702 = vmatprep.subr.mxu0 0.0
    %703 = vmatpush1.msra.mxu0 %v284
    %704 = vmatprep.subr.mxu0 0.0
    %705 = vmatpush1.msra.mxu0 %v285
    %706 = vmatprep.subr.mxu0 0.0
    %707 = vmatpush1.msra.mxu0 %v286
    %708 = vmatprep.subr.mxu0 0.0
    %709 = vmatpush1.msra.mxu0 %v287
    %710 = vmatprep.subr.mxu0 0.0
    %711 = vmatpush1.msra.mxu0 0.0
    %712 = vmatprep.subr.mxu0 0.0
    %713 = vmatpush1.msra.mxu0 0.0
    %714 = vmatprep.subr.mxu0 0.0
    %715 = vmatpush1.msra.mxu0 0.0
    %716 = vmatprep.subr.mxu0 0.0
    %717 = vmatpush1.msra.mxu0 0.0
    %718 = vmatprep.subr.mxu0 0.0
    %719 = vmatpush1.msra.mxu0 0.0
    %720 = vmatprep.subr.mxu0 0.0
    %721 = vmatpush1.msra.mxu0 0.0
    %722 = vmatprep.subr.mxu0 0.0
    %723 = vmatpush1.msra.mxu0 0.0
    %724 = vmatprep.subr.mxu0 0.0
    %725 = vmatpush1.msra.mxu0 0.0
    %726 = vmatprep.subr.mxu0 0.0
    %727 = vmatpush1.msra.mxu0 0.0
    %728 = vmatprep.subr.mxu0 0.0
    %729 = vmatpush1.msra.mxu0 0.0
    %730 = vmatprep.subr.mxu0 0.0
    %731 = vmatpush1.msra.mxu0 0.0
    %732 = vmatprep.subr.mxu0 0.0
    %733 = vmatpush1.msra.mxu0 0.0
    %734 = vmatprep.subr.mxu0 0.0
    %735 = vmatpush1.msra.mxu0 0.0
    %736 = vmatprep.subr.mxu0 0.0
    %737 = vmatpush1.msra.mxu0 0.0
    %738 = vmatprep.subr.mxu0 0.0
    %739 = vmatpush1.msra.mxu0 0.0
    %740 = vmatprep.subr.mxu0 0.0
    %741 = vmatpush1.msra.mxu0 0.0
    %742 = vmatprep.subr.mxu0 0.0
    %743 = vmatpush1.msra.mxu0 0.0
    %744 = vmatprep.subr.mxu0 0.0
    %745 = vmatpush1.msra.mxu0 0.0
    %746 = vmatprep.subr.mxu0 0.0
    %747 = vmatpush1.msra.mxu0 0.0
    %748 = vmatprep.subr.mxu0 0.0
    %749 = vmatpush1.msra.mxu0 0.0
    %750 = vmatprep.subr.mxu0 0.0
    %751 = vmatpush1.msra.mxu0 0.0
    %752 = vmatprep.subr.mxu0 0.0
    %753 = vmatpush1.msra.mxu0 0.0
    %754 = vmatprep.subr.mxu0 0.0
    %755 = vmatpush1.msra.mxu0 0.0
    %756 = vmatprep.subr.mxu0 0.0
    %757 = vmatpush1.msra.mxu0 0.0
    %758 = vmatprep.subr.mxu0 0.0
    %759 = vmatpush1.msra.mxu0 0.0
    %760 = vmatprep.subr.mxu0 0.0
    %761 = vmatpush1.msra.mxu0 0.0
    %762 = vmatprep.subr.mxu0 0.0
    %763 = vmatpush1.msra.mxu0 0.0
    %764 = vmatprep.subr.mxu0 0.0
    %765 = vmatpush1.msra.mxu0 0.0
    %766 = vmatprep.mubr.f32.mxu0 0.0
    %767 = vmatmul.mubr.f32.gmra.mrb[0].mxu0 %v700
    %v768 = vpop.f32.mrb[0].mxu0
    %v769 = vadd.f32 0.0, %v768
    %v770 = vpop.f32.mrb[0].mxu0
    %771 = vdwg.mxu0
    %v773 = vrot.slane %v769, 2
    %v775 = vadd.f32 %v190, %v773
    %v776 = vsub.f32 0.0, %v775
    %v777 = vmul.f32 %v776, 1.442695
    %v778 = vpow.pop %v777
    %v779 = vadd.f32 %v778, 1.0
    %v780 = vrcp.pop %v779
    %v781 = vmul.f32 1.0, %v780
    %v782 = vtanh.pop %v775
    %v784 = vrot.slane %v696, 2
    %785 = vrot.lane.b32.xlu0 %v784, 32
    %v786 = vpop.permute.xlu0 %785
    %v788 = vmul.f32 %v781, %v786
    %790 = vrot.lane.b32.xlu0 %v782, 64
    %v791 = vpop.permute.xlu0 %790
    %v793 = vmul.f32 %v781, %v791
    %795 = vrot.lane.b32.xlu0 %v793, 32
    %v796 = vpop.permute.xlu0 %795
    %v798 = vadd.f32 %v788, %v796
    %v799 = vtanh.pop %v798
    %801 = vrot.lane.b32.xlu0 %v799, 64
    %v802 = vpop.permute.xlu0 %801
    %v804 = vmul.f32 %v781, %v802
    %vm805 = vcmp.gt.s32.totalorder %v104, 3
    %v806 = vsel %vm805, 1, 0
    %v807 = vcvt.s32.f32 %v806
    %809 = vset.pattern.permute.xlu0 0
    %810 = vperm.xlu0 %809, %v807
    %v811 = vpop.permute.xlu0 %810
    %v814 = vrot.slane %v804, 6
    %815 = vrot.lane.b32.xlu0 %v814, 32
    %v816 = vpop.permute.xlu0 %815
    %v818 = vmul.f32 %v811, %v816
    %v819 = vsub.f32 1.0, %v807
    %821 = vset.pattern.permute.xlu0 0
    %822 = vperm.xlu0 %821, %v819
    %v823 = vpop.permute.xlu0 %822
    %v825 = vmul.f32 %v823, %v688
    %v826 = vadd.f32 %v818, %v825
    %v828 = vrot.slane %v798, 6
    %829 = vrot.lane.b32.xlu0 %v828, 96
    %v830 = vpop.permute.xlu0 %829
    %v832 = vmul.f32 %v811, %v830
    %v833 = vmul.f32 %v823, %v696
    %v834 = vadd.f32 %v832, %v833
    %s835 = scalar_lea.vmem [#allocation11], 6
    %836 = vst.msk [vmem:[%s835] sm:$0x3] %vm413, %v818
    %v838 = vsel %vm116, %v826, 0
    %840 = vmatprep.subr.mxu0 0.0
    %841 = vmatpush1.msra.mxu0 %v284
    %842 = vmatprep.subr.mxu0 0.0
    %843 = vmatpush1.msra.mxu0 %v285
    %844 = vmatprep.subr.mxu0 0.0
    %845 = vmatpush1.msra.mxu0 %v286
    %846 = vmatprep.subr.mxu0 0.0
    %847 = vmatpush1.msra.mxu0 %v287
    %848 = vmatprep.subr.mxu0 0.0
    %849 = vmatpush1.msra.mxu0 0.0
    %850 = vmatprep.subr.mxu0 0.0
    %851 = vmatpush1.msra.mxu0 0.0
    %852 = vmatprep.subr.mxu0 0.0
    %853 = vmatpush1.msra.mxu0 0.0
    %854 = vmatprep.subr.mxu0 0.0
    %855 = vmatpush1.msra.mxu0 0.0
    %856 = vmatprep.subr.mxu0 0.0
    %857 = vmatpush1.msra.mxu0 0.0
    %858 = vmatprep.subr.mxu0 0.0
    %859 = vmatpush1.msra.mxu0 0.0
    %860 = vmatprep.subr.mxu0 0.0
    %861 = vmatpush1.msra.mxu0 0.0
    %862 = vmatprep.subr.mxu0 0.0
    %863 = vmatpush1.msra.mxu0 0.0
    %864 = vmatprep.subr.mxu0 0.0
    %865 = vmatpush1.msra.mxu0 0.0
    %866 = vmatprep.subr.mxu0 0.0
    %867 = vmatpush1.msra.mxu0 0.0
    %868 = vmatprep.subr.mxu0 0.0
    %869 = vmatpush1.msra.mxu0 0.0
    %870 = vmatprep.subr.mxu0 0.0
    %871 = vmatpush1.msra.mxu0 0.0
    %872 = vmatprep.subr.mxu0 0.0
    %873 = vmatpush1.msra.mxu0 0.0
    %874 = vmatprep.subr.mxu0 0.0
    %875 = vmatpush1.msra.mxu0 0.0
    %876 = vmatprep.subr.mxu0 0.0
    %877 = vmatpush1.msra.mxu0 0.0
    %878 = vmatprep.subr.mxu0 0.0
    %879 = vmatpush1.msra.mxu0 0.0
    %880 = vmatprep.subr.mxu0 0.0
    %881 = vmatpush1.msra.mxu0 0.0
    %882 = vmatprep.subr.mxu0 0.0
    %883 = vmatpush1.msra.mxu0 0.0
    %884 = vmatprep.subr.mxu0 0.0
    %885 = vmatpush1.msra.mxu0 0.0
    %886 = vmatprep.subr.mxu0 0.0
    %887 = vmatpush1.msra.mxu0 0.0
    %888 = vmatprep.subr.mxu0 0.0
    %889 = vmatpush1.msra.mxu0 0.0
    %890 = vmatprep.subr.mxu0 0.0
    %891 = vmatpush1.msra.mxu0 0.0
    %892 = vmatprep.subr.mxu0 0.0
    %893 = vmatpush1.msra.mxu0 0.0
    %894 = vmatprep.subr.mxu0 0.0
    %895 = vmatpush1.msra.mxu0 0.0
    %896 = vmatprep.subr.mxu0 0.0
    %897 = vmatpush1.msra.mxu0 0.0
    %898 = vmatprep.subr.mxu0 0.0
    %899 = vmatpush1.msra.mxu0 0.0
    %900 = vmatprep.subr.mxu0 0.0
    %901 = vmatpush1.msra.mxu0 0.0
    %902 = vmatprep.subr.mxu0 0.0
    %903 = vmatpush1.msra.mxu0 0.0
    %904 = vmatprep.mubr.f32.mxu0 0.0
    %905 = vmatmul.mubr.f32.gmra.mrb[0].mxu0 %v838
    %v906 = vpop.f32.mrb[0].mxu0
    %v907 = vadd.f32 0.0, %v906
    %v908 = vpop.f32.mrb[0].mxu0
    %909 = vdwg.mxu0
    %v910 = vadd.f32 %v195, %v907
    %v911 = vsub.f32 0.0, %v910
    %v912 = vmul.f32 %v911, 1.442695
    %v913 = vpow.pop %v912
    %v914 = vadd.f32 %v913, 1.0
    %v915 = vrcp.pop %v914
    %v916 = vmul.f32 1.0, %v915
    %v917 = vtanh.pop %v910
    %919 = vrot.lane.b32.xlu0 %v834, 32
    %v920 = vpop.permute.xlu0 %919
    %v922 = vmul.f32 %v916, %v920
    %924 = vrot.lane.b32.xlu0 %v917, 64
    %v925 = vpop.permute.xlu0 %924
    %v927 = vmul.f32 %v916, %v925
    %929 = vrot.lane.b32.xlu0 %v927, 32
    %v930 = vpop.permute.xlu0 %929
    %v932 = vadd.f32 %v922, %v930
    %v933 = vtanh.pop %v932
    %935 = vrot.lane.b32.xlu0 %v933, 64
    %v936 = vpop.permute.xlu0 %935
    %v938 = vmul.f32 %v916, %v936
    %vm939 = vcmp.gt.s32.totalorder %v104, 4
    %v940 = vsel %vm939, 1, 0
    %v941 = vcvt.s32.f32 %v940
    %943 = vset.pattern.permute.xlu0 0
    %944 = vperm.xlu0 %943, %v941
    %v945 = vpop.permute.xlu0 %944
    %v947 = vmul.f32 %v945, %v938
    %v948 = vsub.f32 1.0, %v941
    %950 = vset.pattern.permute.xlu0 0
    %951 = vperm.xlu0 %950, %v948
    %v952 = vpop.permute.xlu0 %951
    %v954 = vmul.f32 %v952, %v826
    %956 = vrot.lane.b32.xlu0 %v954, 96
    %v957 = vpop.permute.xlu0 %956
    %v959 = vadd.f32 %v947, %v957
    %v960 = vmul.f32 %v945, %v932
    %v961 = vmul.f32 %v952, %v834
    %963 = vrot.lane.b32.xlu0 %v961, 32
    %v964 = vpop.permute.xlu0 %963
    %v966 = vadd.f32 %v960, %v964
    %968 = vrot.lane.b32.xlu0 %v947, 32
    %v969 = vpop.permute.xlu0 %968
    %s971 = scalar_lea.vmem [#allocation11], 8
    %972 = vst.msk [vmem:[%s971] sm:$0x3] %vm413, %v969
    %974 = vrot.lane.b32.xlu0 %v959, 32
    %v975 = vpop.permute.xlu0 %974
    %v976 = vsel %vm116, %v975, 0
    %978 = vmatprep.subr.mxu0 0.0
    %979 = vmatpush1.msra.mxu0 %v284
    %980 = vmatprep.subr.mxu0 0.0
    %981 = vmatpush1.msra.mxu0 %v285
    %982 = vmatprep.subr.mxu0 0.0
    %983 = vmatpush1.msra.mxu0 %v286
    %984 = vmatprep.subr.mxu0 0.0
    %985 = vmatpush1.msra.mxu0 %v287
    %986 = vmatprep.subr.mxu0 0.0
    %987 = vmatpush1.msra.mxu0 0.0
    %988 = vmatprep.subr.mxu0 0.0
    %989 = vmatpush1.msra.mxu0 0.0
    %990 = vmatprep.subr.mxu0 0.0
    %991 = vmatpush1.msra.mxu0 0.0
    %992 = vmatprep.subr.mxu0 0.0
    %993 = vmatpush1.msra.mxu0 0.0
    %994 = vmatprep.subr.mxu0 0.0
    %995 = vmatpush1.msra.mxu0 0.0
    %996 = vmatprep.subr.mxu0 0.0
    %997 = vmatpush1.msra.mxu0 0.0
    %998 = vmatprep.subr.mxu0 0.0
    %999 = vmatpush1.msra.mxu0 0.0
    %1000 = vmatprep.subr.mxu0 0.0
    %1001 = vmatpush1.msra.mxu0 0.0
    %1002 = vmatprep.subr.mxu0 0.0
    %1003 = vmatpush1.msra.mxu0 0.0
    %1004 = vmatprep.subr.mxu0 0.0
    %1005 = vmatpush1.msra.mxu0 0.0
    %1006 = vmatprep.subr.mxu0 0.0
    %1007 = vmatpush1.msra.mxu0 0.0
    %1008 = vmatprep.subr.mxu0 0.0
    %1009 = vmatpush1.msra.mxu0 0.0
    %1010 = vmatprep.subr.mxu0 0.0
    %1011 = vmatpush1.msra.mxu0 0.0
    %1012 = vmatprep.subr.mxu0 0.0
    %1013 = vmatpush1.msra.mxu0 0.0
    %1014 = vmatprep.subr.mxu0 0.0
    %1015 = vmatpush1.msra.mxu0 0.0
    %1016 = vmatprep.subr.mxu0 0.0
    %1017 = vmatpush1.msra.mxu0 0.0
    %1018 = vmatprep.subr.mxu0 0.0
    %1019 = vmatpush1.msra.mxu0 0.0
    %1020 = vmatprep.subr.mxu0 0.0
    %1021 = vmatpush1.msra.mxu0 0.0
    %1022 = vmatprep.subr.mxu0 0.0
    %1023 = vmatpush1.msra.mxu0 0.0
    %1024 = vmatprep.subr.mxu0 0.0
    %1025 = vmatpush1.msra.mxu0 0.0
    %1026 = vmatprep.subr.mxu0 0.0
    %1027 = vmatpush1.msra.mxu0 0.0
    %1028 = vmatprep.subr.mxu0 0.0
    %1029 = vmatpush1.msra.mxu0 0.0
    %1030 = vmatprep.subr.mxu0 0.0
    %1031 = vmatpush1.msra.mxu0 0.0
    %1032 = vmatprep.subr.mxu0 0.0
    %1033 = vmatpush1.msra.mxu0 0.0
    %1034 = vmatprep.subr.mxu0 0.0
    %1035 = vmatpush1.msra.mxu0 0.0
    %1036 = vmatprep.subr.mxu0 0.0
    %1037 = vmatpush1.msra.mxu0 0.0
    %1038 = vmatprep.subr.mxu0 0.0
    %1039 = vmatpush1.msra.mxu0 0.0
    %1040 = vmatprep.subr.mxu0 0.0
    %1041 = vmatpush1.msra.mxu0 0.0
    %1042 = vmatprep.mubr.f32.mxu0 0.0
    %1043 = vmatmul.mubr.f32.gmra.mrb[0].mxu0 %v976
    %v1044 = vpop.f32.mrb[0].mxu0
    %v1045 = vadd.f32 0.0, %v1044
    %v1046 = vpop.f32.mrb[0].mxu0
    %1047 = vdwg.mxu0
    %v1049 = vrot.slane %v1045, 6
    %v1051 = vadd.f32 %v195, %v1049
    %v1052 = vsub.f32 0.0, %v1051
    %v1053 = vmul.f32 %v1052, 1.442695
    %v1054 = vpow.pop %v1053
    %v1055 = vadd.f32 %v1054, 1.0
    %v1056 = vrcp.pop %v1055
    %v1057 = vmul.f32 1.0, %v1056
    %v1058 = vtanh.pop %v1051
    %v1060 = vrot.slane %v966, 6
    %v1062 = vmul.f32 %v1057, %v1060
    %1064 = vrot.lane.b32.xlu0 %v1058, 64
    %v1065 = vpop.permute.xlu0 %1064
    %v1067 = vmul.f32 %v1057, %v1065
    %1069 = vrot.lane.b32.xlu0 %v1067, 32
    %v1070 = vpop.permute.xlu0 %1069
    %v1072 = vadd.f32 %v1062, %v1070
    %v1073 = vtanh.pop %v1072
    %1075 = vrot.lane.b32.xlu0 %v1073, 64
    %v1076 = vpop.permute.xlu0 %1075
    %v1078 = vmul.f32 %v1057, %v1076
    %vm1079 = vcmp.gt.s32.totalorder %v104, 5
    %v1080 = vsel %vm1079, 1, 0
    %v1081 = vcvt.s32.f32 %v1080
    %1083 = vset.pattern.permute.xlu0 0
    %1084 = vperm.xlu0 %1083, %v1081
    %v1085 = vpop.permute.xlu0 %1084
    %v1088 = vrot.slane %v1078, 2
    %1089 = vrot.lane.b32.xlu0 %v1088, 32
    %v1090 = vpop.permute.xlu0 %1089
    %v1092 = vmul.f32 %v1085, %v1090
    %v1093 = vsub.f32 1.0, %v1081
    %1095 = vset.pattern.permute.xlu0 0
    %1096 = vperm.xlu0 %1095, %v1093
    %v1097 = vpop.permute.xlu0 %1096
    %v1099 = vmul.f32 %v1097, %v959
    %1101 = vrot.lane.b32.xlu0 %v1099, 32
    %v1102 = vpop.permute.xlu0 %1101
    %v1104 = vadd.f32 %v1092, %v1102
    %v1106 = vrot.slane %v1072, 2
    %1107 = vrot.lane.b32.xlu0 %v1106, 96
    %v1108 = vpop.permute.xlu0 %1107
    %v1110 = vmul.f32 %v1085, %v1108
    %v1111 = vmul.f32 %v1097, %v966
    %1113 = vrot.lane.b32.xlu0 %v1111, 96
    %v1114 = vpop.permute.xlu0 %1113
    %v1116 = vadd.f32 %v1110, %v1114
    %s1117 = scalar_lea.vmem [#allocation11], 10
    %1118 = vst.msk [vmem:[%s1117] sm:$0x3] %vm413, %v1092
    %v1120 = vsel %vm116, %v1104, 0
    %1122 = vmatprep.subr.mxu0 0.0
    %1123 = vmatpush1.msra.mxu0 %v284
    %1124 = vmatprep.subr.mxu0 0.0
    %1125 = vmatpush1.msra.mxu0 %v285
    %1126 = vmatprep.subr.mxu0 0.0
    %1127 = vmatpush1.msra.mxu0 %v286
    %1128 = vmatprep.subr.mxu0 0.0
    %1129 = vmatpush1.msra.mxu0 %v287
    %1130 = vmatprep.subr.mxu0 0.0
    %1131 = vmatpush1.msra.mxu0 0.0
    %1132 = vmatprep.subr.mxu0 0.0
    %1133 = vmatpush1.msra.mxu0 0.0
    %1134 = vmatprep.subr.mxu0 0.0
    %1135 = vmatpush1.msra.mxu0 0.0
    %1136 = vmatprep.subr.mxu0 0.0
    %1137 = vmatpush1.msra.mxu0 0.0
    %1138 = vmatprep.subr.mxu0 0.0
    %1139 = vmatpush1.msra.mxu0 0.0
    %1140 = vmatprep.subr.mxu0 0.0
    %1141 = vmatpush1.msra.mxu0 0.0
    %1142 = vmatprep.subr.mxu0 0.0
    %1143 = vmatpush1.msra.mxu0 0.0
    %1144 = vmatprep.subr.mxu0 0.0
    %1145 = vmatpush1.msra.mxu0 0.0
    %1146 = vmatprep.subr.mxu0 0.0
    %1147 = vmatpush1.msra.mxu0 0.0
    %1148 = vmatprep.subr.mxu0 0.0
    %1149 = vmatpush1.msra.mxu0 0.0
    %1150 = vmatprep.subr.mxu0 0.0
    %1151 = vmatpush1.msra.mxu0 0.0
    %1152 = vmatprep.subr.mxu0 0.0
    %1153 = vmatpush1.msra.mxu0 0.0
    %1154 = vmatprep.subr.mxu0 0.0
    %1155 = vmatpush1.msra.mxu0 0.0
    %1156 = vmatprep.subr.mxu0 0.0
    %1157 = vmatpush1.msra.mxu0 0.0
    %1158 = vmatprep.subr.mxu0 0.0
    %1159 = vmatpush1.msra.mxu0 0.0
    %1160 = vmatprep.subr.mxu0 0.0
    %1161 = vmatpush1.msra.mxu0 0.0
    %1162 = vmatprep.subr.mxu0 0.0
    %1163 = vmatpush1.msra.mxu0 0.0
    %1164 = vmatprep.subr.mxu0 0.0
    %1165 = vmatpush1.msra.mxu0 0.0
    %1166 = vmatprep.subr.mxu0 0.0
    %1167 = vmatpush1.msra.mxu0 0.0
    %1168 = vmatprep.subr.mxu0 0.0
    %1169 = vmatpush1.msra.mxu0 0.0
    %1170 = vmatprep.subr.mxu0 0.0
    %1171 = vmatpush1.msra.mxu0 0.0
    %1172 = vmatprep.subr.mxu0 0.0
    %1173 = vmatpush1.msra.mxu0 0.0
    %1174 = vmatprep.subr.mxu0 0.0
    %1175 = vmatpush1.msra.mxu0 0.0
    %1176 = vmatprep.subr.mxu0 0.0
    %1177 = vmatpush1.msra.mxu0 0.0
    %1178 = vmatprep.subr.mxu0 0.0
    %1179 = vmatpush1.msra.mxu0 0.0
    %1180 = vmatprep.subr.mxu0 0.0
    %1181 = vmatpush1.msra.mxu0 0.0
    %1182 = vmatprep.subr.mxu0 0.0
    %1183 = vmatpush1.msra.mxu0 0.0
    %1184 = vmatprep.subr.mxu0 0.0
    %1185 = vmatpush1.msra.mxu0 0.0
    %1186 = vmatprep.mubr.f32.mxu0 0.0
    %1187 = vmatmul.mubr.f32.gmra.mrb[0].mxu0 %v1120
    %v1188 = vpop.f32.mrb[0].mxu0
    %v1189 = vadd.f32 0.0, %v1188
    %v1190 = vpop.f32.mrb[0].mxu0
    %1191 = vdwg.mxu0
    %v1193 = vrot.slane %v1189, 4
    %v1195 = vadd.f32 %v195, %v1193
    %v1196 = vsub.f32 0.0, %v1195
    %v1197 = vmul.f32 %v1196, 1.442695
    %v1198 = vpow.pop %v1197
    %v1199 = vadd.f32 %v1198, 1.0
    %v1200 = vrcp.pop %v1199
    %v1201 = vmul.f32 1.0, %v1200
    %v1202 = vtanh.pop %v1195
    %v1204 = vrot.slane %v1116, 4
    %1205 = vrot.lane.b32.xlu0 %v1204, 32
    %v1206 = vpop.permute.xlu0 %1205
    %v1208 = vmul.f32 %v1201, %v1206
    %1210 = vrot.lane.b32.xlu0 %v1202, 64
    %v1211 = vpop.permute.xlu0 %1210
    %v1213 = vmul.f32 %v1201, %v1211
    %1215 = vrot.lane.b32.xlu0 %v1213, 32
    %v1216 = vpop.permute.xlu0 %1215
    %v1218 = vadd.f32 %v1208, %v1216
    %v1219 = vtanh.pop %v1218
    %1221 = vrot.lane.b32.xlu0 %v1219, 64
    %v1222 = vpop.permute.xlu0 %1221
    %v1224 = vmul.f32 %v1201, %v1222
    %vm1225 = vcmp.gt.s32.totalorder %v104, 6
    %v1226 = vsel %vm1225, 1, 0
    %v1227 = vcvt.s32.f32 %v1226
    %1229 = vset.pattern.permute.xlu0 0
    %1230 = vperm.xlu0 %1229, %v1227
    %v1231 = vpop.permute.xlu0 %1230
    %v1234 = vrot.slane %v1224, 4
    %1235 = vrot.lane.b32.xlu0 %v1234, 32
    %v1236 = vpop.permute.xlu0 %1235
    %v1238 = vmul.f32 %v1231, %v1236
    %v1239 = vsub.f32 1.0, %v1227
    %1241 = vset.pattern.permute.xlu0 0
    %1242 = vperm.xlu0 %1241, %v1239
    %v1243 = vpop.permute.xlu0 %1242
    %v1245 = vmul.f32 %v1243, %v1104
    %v1246 = vadd.f32 %v1238, %v1245
    %v1248 = vrot.slane %v1218, 4
    %1249 = vrot.lane.b32.xlu0 %v1248, 96
    %v1250 = vpop.permute.xlu0 %1249
    %v1252 = vmul.f32 %v1231, %v1250
    %v1253 = vmul.f32 %v1243, %v1116
    %v1254 = vadd.f32 %v1252, %v1253
    %s1255 = scalar_lea.vmem [#allocation11], 12
    %1256 = vst.msk [vmem:[%s1255] sm:$0x3] %vm413, %v1238
    %v1258 = vsel %vm116, %v1246, 0
    %1260 = vmatprep.subr.mxu0 0.0
    %1261 = vmatpush1.msra.mxu0 %v284
    %1262 = vmatprep.subr.mxu0 0.0
    %1263 = vmatpush1.msra.mxu0 %v285
    %1264 = vmatprep.subr.mxu0 0.0
    %1265 = vmatpush1.msra.mxu0 %v286
    %1266 = vmatprep.subr.mxu0 0.0
    %1267 = vmatpush1.msra.mxu0 %v287
    %1268 = vmatprep.subr.mxu0 0.0
    %1269 = vmatpush1.msra.mxu0 0.0
    %1270 = vmatprep.subr.mxu0 0.0
    %1271 = vmatpush1.msra.mxu0 0.0
    %1272 = vmatprep.subr.mxu0 0.0
    %1273 = vmatpush1.msra.mxu0 0.0
    %1274 = vmatprep.subr.mxu0 0.0
    %1275 = vmatpush1.msra.mxu0 0.0
    %1276 = vmatprep.subr.mxu0 0.0
    %1277 = vmatpush1.msra.mxu0 0.0
    %1278 = vmatprep.subr.mxu0 0.0
    %1279 = vmatpush1.msra.mxu0 0.0
    %1280 = vmatprep.subr.mxu0 0.0
    %1281 = vmatpush1.msra.mxu0 0.0
    %1282 = vmatprep.subr.mxu0 0.0
    %1283 = vmatpush1.msra.mxu0 0.0
    %1284 = vmatprep.subr.mxu0 0.0
    %1285 = vmatpush1.msra.mxu0 0.0
    %1286 = vmatprep.subr.mxu0 0.0
    %1287 = vmatpush1.msra.mxu0 0.0
    %1288 = vmatprep.subr.mxu0 0.0
    %1289 = vmatpush1.msra.mxu0 0.0
    %1290 = vmatprep.subr.mxu0 0.0
    %1291 = vmatpush1.msra.mxu0 0.0
    %1292 = vmatprep.subr.mxu0 0.0
    %1293 = vmatpush1.msra.mxu0 0.0
    %1294 = vmatprep.subr.mxu0 0.0
    %1295 = vmatpush1.msra.mxu0 0.0
    %1296 = vmatprep.subr.mxu0 0.0
    %1297 = vmatpush1.msra.mxu0 0.0
    %1298 = vmatprep.subr.mxu0 0.0
    %1299 = vmatpush1.msra.mxu0 0.0
    %1300 = vmatprep.subr.mxu0 0.0
    %1301 = vmatpush1.msra.mxu0 0.0
    %1302 = vmatprep.subr.mxu0 0.0
    %1303 = vmatpush1.msra.mxu0 0.0
    %1304 = vmatprep.subr.mxu0 0.0
    %1305 = vmatpush1.msra.mxu0 0.0
    %1306 = vmatprep.subr.mxu0 0.0
    %1307 = vmatpush1.msra.mxu0 0.0
    %1308 = vmatprep.subr.mxu0 0.0
    %1309 = vmatpush1.msra.mxu0 0.0
    %1310 = vmatprep.subr.mxu0 0.0
    %1311 = vmatpush1.msra.mxu0 0.0
    %1312 = vmatprep.subr.mxu0 0.0
    %1313 = vmatpush1.msra.mxu0 0.0
    %1314 = vmatprep.subr.mxu0 0.0
    %1315 = vmatpush1.msra.mxu0 0.0
    %1316 = vmatprep.subr.mxu0 0.0
    %1317 = vmatpush1.msra.mxu0 0.0
    %1318 = vmatprep.subr.mxu0 0.0
    %1319 = vmatpush1.msra.mxu0 0.0
    %1320 = vmatprep.subr.mxu0 0.0
    %1321 = vmatpush1.msra.mxu0 0.0
    %1322 = vmatprep.subr.mxu0 0.0
    %1323 = vmatpush1.msra.mxu0 0.0
    %1324 = vmatprep.mubr.f32.mxu0 0.0
    %1325 = vmatmul.mubr.f32.gmra.mrb[0].mxu0 %v1258
    %v1326 = vpop.f32.mrb[0].mxu0
    %v1327 = vadd.f32 0.0, %v1326
    %v1328 = vpop.f32.mrb[0].mxu0
    %1329 = vdwg.mxu0
    %v1331 = vrot.slane %v1327, 2
    %v1333 = vadd.f32 %v195, %v1331
    %v1334 = vsub.f32 0.0, %v1333
    %v1335 = vmul.f32 %v1334, 1.442695
    %v1336 = vpow.pop %v1335
    %v1337 = vadd.f32 %v1336, 1.0
    %v1338 = vrcp.pop %v1337
    %v1339 = vmul.f32 1.0, %v1338
    %v1340 = vtanh.pop %v1333
    %v1342 = vrot.slane %v1254, 2
    %1343 = vrot.lane.b32.xlu0 %v1342, 32
    %v1344 = vpop.permute.xlu0 %1343
    %v1346 = vmul.f32 %v1339, %v1344
    %1348 = vrot.lane.b32.xlu0 %v1340, 64
    %v1349 = vpop.permute.xlu0 %1348
    %v1351 = vmul.f32 %v1339, %v1349
    %1353 = vrot.lane.b32.xlu0 %v1351, 32
    %v1354 = vpop.permute.xlu0 %1353
    %v1356 = vadd.f32 %v1346, %v1354
    %v1357 = vtanh.pop %v1356
    %1359 = vrot.lane.b32.xlu0 %v1357, 64
    %v1360 = vpop.permute.xlu0 %1359
    %v1362 = vmul.f32 %v1339, %v1360
    %vm1363 = vcmp.gt.s32.totalorder %v104, 7
    %v1364 = vsel %vm1363, 1, 0
    %v1365 = vcvt.s32.f32 %v1364
    %1367 = vset.pattern.permute.xlu0 0
    %1368 = vperm.xlu0 %1367, %v1365
    %v1369 = vpop.permute.xlu0 %1368
    %v1372 = vrot.slane %v1362, 6
    %1373 = vrot.lane.b32.xlu0 %v1372, 32
    %v1374 = vpop.permute.xlu0 %1373
    %v1376 = vmul.f32 %v1369, %v1374
    %v1377 = vsub.f32 1.0, %v1365
    %1379 = vset.pattern.permute.xlu0 0
    %1380 = vperm.xlu0 %1379, %v1377
    %v1381 = vpop.permute.xlu0 %1380
    %v1383 = vmul.f32 %v1381, %v1246
    %v1384 = vadd.f32 %v1376, %v1383
    %v1386 = vrot.slane %v1356, 6
    %1387 = vrot.lane.b32.xlu0 %v1386, 96
    %v1388 = vpop.permute.xlu0 %1387
    %v1390 = vmul.f32 %v1369, %v1388
    %v1391 = vmul.f32 %v1381, %v1254
    %v1392 = vadd.f32 %v1390, %v1391
    %s1393 = scalar_lea.vmem [#allocation11], 14
    %1394 = vst.msk [vmem:[%s1393] sm:$0x3] %vm413, %v1376
    %1395 = vst.msk [vmem:[#allocation12] sm:$0x3] %vm413, %v1384
    %1396 = vst.msk [vmem:[#allocation14] sm:$0x3] %vm413, %v1392
    %1397 = vmatprep.subr.mxu0 0.0
    %1398 = vmatpush1.msra.mxu0 %v288
    %1399 = vmatprep.subr.mxu0 0.0
    %1400 = vmatpush1.msra.mxu0 %v289
    %1401 = vmatprep.subr.mxu0 0.0
    %1402 = vmatpush1.msra.mxu0 %v290
    %1403 = vmatprep.subr.mxu0 0.0
    %1404 = vmatpush1.msra.mxu0 %v291
    %1405 = vmatprep.subr.mxu0 0.0
    %1406 = vmatpush1.msra.mxu0 0.0
    %1407 = vmatprep.subr.mxu0 0.0
    %1408 = vmatpush1.msra.mxu0 0.0
    %1409 = vmatprep.subr.mxu0 0.0
    %1410 = vmatpush1.msra.mxu0 0.0
    %1411 = vmatprep.subr.mxu0 0.0
    %1412 = vmatpush1.msra.mxu0 0.0
    %1413 = vmatprep.subr.mxu0 0.0
    %1414 = vmatpush1.msra.mxu0 0.0
    %1415 = vmatprep.subr.mxu0 0.0
    %1416 = vmatpush1.msra.mxu0 0.0
    %1417 = vmatprep.subr.mxu0 0.0
    %1418 = vmatpush1.msra.mxu0 0.0
    %1419 = vmatprep.subr.mxu0 0.0
    %1420 = vmatpush1.msra.mxu0 0.0
    %1421 = vmatprep.subr.mxu0 0.0
    %1422 = vmatpush1.msra.mxu0 0.0
    %1423 = vmatprep.subr.mxu0 0.0
    %1424 = vmatpush1.msra.mxu0 0.0
    %1425 = vmatprep.subr.mxu0 0.0
    %1426 = vmatpush1.msra.mxu0 0.0
    %1427 = vmatprep.subr.mxu0 0.0
    %1428 = vmatpush1.msra.mxu0 0.0
    %1429 = vmatprep.subr.mxu0 0.0
    %1430 = vmatpush1.msra.mxu0 0.0
    %1431 = vmatprep.subr.mxu0 0.0
    %1432 = vmatpush1.msra.mxu0 0.0
    %1433 = vmatprep.subr.mxu0 0.0
    %1434 = vmatpush1.msra.mxu0 0.0
    %1435 = vmatprep.subr.mxu0 0.0
    %1436 = vmatpush1.msra.mxu0 0.0
    %1437 = vmatprep.subr.mxu0 0.0
    %1438 = vmatpush1.msra.mxu0 0.0
    %1439 = vmatprep.subr.mxu0 0.0
    %1440 = vmatpush1.msra.mxu0 0.0
    %1441 = vmatprep.subr.mxu0 0.0
    %1442 = vmatpush1.msra.mxu0 0.0
    %1443 = vmatprep.subr.mxu0 0.0
    %1444 = vmatpush1.msra.mxu0 0.0
    %1445 = vmatprep.subr.mxu0 0.0
    %1446 = vmatpush1.msra.mxu0 0.0
    %1447 = vmatprep.subr.mxu0 0.0
    %1448 = vmatpush1.msra.mxu0 0.0
    %1449 = vmatprep.subr.mxu0 0.0
    %1450 = vmatpush1.msra.mxu0 0.0
    %1451 = vmatprep.subr.mxu0 0.0
    %1452 = vmatpush1.msra.mxu0 0.0
    %1453 = vmatprep.subr.mxu0 0.0
    %1454 = vmatpush1.msra.mxu0 0.0
    %1455 = vmatprep.subr.mxu0 0.0
    %1456 = vmatpush1.msra.mxu0 0.0
    %1457 = vmatprep.subr.mxu0 0.0
    %1458 = vmatpush1.msra.mxu0 0.0
    %1459 = vmatprep.subr.mxu0 0.0
    %1460 = vmatpush1.msra.mxu0 0.0
    %1461 = vmatprep.mubr.f32.mxu0 0.0
    %1462 = vmatmul.mubr.f32.gmra.mrb[0].mxu0 %v293
    %v1463 = vpop.f32.mrb[0].mxu0
    %v1464 = vadd.f32 0.0, %v1463
    %v1465 = vpop.f32.mrb[0].mxu0
    %1466 = vdwg.mxu0
    %v1468 = vrot.slane %v1464, 2
    %v1470 = vadd.f32 %v281, %v1468
    %v1471 = vsub.f32 0.0, %v1470
    %v1472 = vmul.f32 %v1471, 1.442695
    %v1473 = vpow.pop %v1472
    %v1474 = vadd.f32 %v1473, 1.0
    %v1475 = vrcp.pop %v1474
    %v1476 = vmul.f32 1.0, %v1475
    %v1477 = vtanh.pop %v1470
    %v1478 = vmul.f32 %v1476, 0.0
    %1480 = vrot.lane.b32.xlu0 %v1477, 64
    %v1481 = vpop.permute.xlu0 %1480
    %v1483 = vmul.f32 %v1476, %v1481
    %1485 = vrot.lane.b32.xlu0 %v1483, 32
    %v1486 = vpop.permute.xlu0 %1485
    %v1488 = vadd.f32 %v1478, %v1486
    %v1489 = vtanh.pop %v1488
    %1491 = vrot.lane.b32.xlu0 %v1489, 64
    %v1492 = vpop.permute.xlu0 %1491
    %v1494 = vmul.f32 %v1476, %v1492
    %v1496 = vrot.slane %v1494, 6
    %1497 = vrot.lane.b32.xlu0 %v1496, 32
    %v1498 = vpop.permute.xlu0 %1497
    %v1500 = vmul.f32 %v1369, %v1498
    %v1501 = vmul.f32 %v1381, 0.0
    %v1502 = vadd.f32 %v1500, %v1501
    %v1504 = vrot.slane %v1488, 6
    %1505 = vrot.lane.b32.xlu0 %v1504, 96
    %v1506 = vpop.permute.xlu0 %1505
    %v1508 = vmul.f32 %v1369, %v1506
    %v1509 = vadd.f32 %v1508, %v1501
    %v1510 = vld [vmem:[%s1393] sm:$0x3]
    %v1511 = vadd.f32 %v1510, %v1500
    %1512 = vst.msk [vmem:[%s1393] sm:$0x3] %vm413, %v1511
    %v1514 = vsel %vm116, %v1502, 0
    %1516 = vmatprep.subr.mxu0 0.0
    %1517 = vmatpush1.msra.mxu0 %v288
    %1518 = vmatprep.subr.mxu0 0.0
    %1519 = vmatpush1.msra.mxu0 %v289
    %1520 = vmatprep.subr.mxu0 0.0
    %1521 = vmatpush1.msra.mxu0 %v290
    %1522 = vmatprep.subr.mxu0 0.0
    %1523 = vmatpush1.msra.mxu0 %v291
    %1524 = vmatprep.subr.mxu0 0.0
    %1525 = vmatpush1.msra.mxu0 0.0
    %1526 = vmatprep.subr.mxu0 0.0
    %1527 = vmatpush1.msra.mxu0 0.0
    %1528 = vmatprep.subr.mxu0 0.0
    %1529 = vmatpush1.msra.mxu0 0.0
    %1530 = vmatprep.subr.mxu0 0.0
    %1531 = vmatpush1.msra.mxu0 0.0
    %1532 = vmatprep.subr.mxu0 0.0
    %1533 = vmatpush1.msra.mxu0 0.0
    %1534 = vmatprep.subr.mxu0 0.0
    %1535 = vmatpush1.msra.mxu0 0.0
    %1536 = vmatprep.subr.mxu0 0.0
    %1537 = vmatpush1.msra.mxu0 0.0
    %1538 = vmatprep.subr.mxu0 0.0
    %1539 = vmatpush1.msra.mxu0 0.0
    %1540 = vmatprep.subr.mxu0 0.0
    %1541 = vmatpush1.msra.mxu0 0.0
    %1542 = vmatprep.subr.mxu0 0.0
    %1543 = vmatpush1.msra.mxu0 0.0
    %1544 = vmatprep.subr.mxu0 0.0
    %1545 = vmatpush1.msra.mxu0 0.0
    %1546 = vmatprep.subr.mxu0 0.0
    %1547 = vmatpush1.msra.mxu0 0.0
    %1548 = vmatprep.subr.mxu0 0.0
    %1549 = vmatpush1.msra.mxu0 0.0
    %1550 = vmatprep.subr.mxu0 0.0
    %1551 = vmatpush1.msra.mxu0 0.0
    %1552 = vmatprep.subr.mxu0 0.0
    %1553 = vmatpush1.msra.mxu0 0.0
    %1554 = vmatprep.subr.mxu0 0.0
    %1555 = vmatpush1.msra.mxu0 0.0
    %1556 = vmatprep.subr.mxu0 0.0
    %1557 = vmatpush1.msra.mxu0 0.0
    %1558 = vmatprep.subr.mxu0 0.0
    %1559 = vmatpush1.msra.mxu0 0.0
    %1560 = vmatprep.subr.mxu0 0.0
    %1561 = vmatpush1.msra.mxu0 0.0
    %1562 = vmatprep.subr.mxu0 0.0
    %1563 = vmatpush1.msra.mxu0 0.0
    %1564 = vmatprep.subr.mxu0 0.0
    %1565 = vmatpush1.msra.mxu0 0.0
    %1566 = vmatprep.subr.mxu0 0.0
    %1567 = vmatpush1.msra.mxu0 0.0
    %1568 = vmatprep.subr.mxu0 0.0
    %1569 = vmatpush1.msra.mxu0 0.0
    %1570 = vmatprep.subr.mxu0 0.0
    %1571 = vmatpush1.msra.mxu0 0.0
    %1572 = vmatprep.subr.mxu0 0.0
    %1573 = vmatpush1.msra.mxu0 0.0
    %1574 = vmatprep.subr.mxu0 0.0
    %1575 = vmatpush1.msra.mxu0 0.0
    %1576 = vmatprep.subr.mxu0 0.0
    %1577 = vmatpush1.msra.mxu0 0.0
    %1578 = vmatprep.subr.mxu0 0.0
    %1579 = vmatpush1.msra.mxu0 0.0
    %1580 = vmatprep.mubr.f32.mxu0 0.0
    %1581 = vmatmul.mubr.f32.gmra.mrb[0].mxu0 %v1514
    %v1582 = vpop.f32.mrb[0].mxu0
    %v1583 = vadd.f32 0.0, %v1582
    %v1584 = vpop.f32.mrb[0].mxu0
    %1585 = vdwg.mxu0
    %v1587 = vrot.slane %v1583, 4
    %v1589 = vadd.f32 %v281, %v1587
    %v1590 = vsub.f32 0.0, %v1589
    %v1591 = vmul.f32 %v1590, 1.442695
    %v1592 = vpow.pop %v1591
    %v1593 = vadd.f32 %v1592, 1.0
    %v1594 = vrcp.pop %v1593
    %v1595 = vmul.f32 1.0, %v1594
    %v1596 = vtanh.pop %v1589
    %v1598 = vrot.slane %v1509, 4
    %1599 = vrot.lane.b32.xlu0 %v1598, 32
    %v1600 = vpop.permute.xlu0 %1599
    %v1602 = vmul.f32 %v1595, %v1600
    %1604 = vrot.lane.b32.xlu0 %v1596, 64
    %v1605 = vpop.permute.xlu0 %1604
    %v1607 = vmul.f32 %v1595, %v1605
    %1609 = vrot.lane.b32.xlu0 %v1607, 32
    %v1610 = vpop.permute.xlu0 %1609
    %v1612 = vadd.f32 %v1602, %v1610
    %v1613 = vtanh.pop %v1612
    %1615 = vrot.lane.b32.xlu0 %v1613, 64
    %v1616 = vpop.permute.xlu0 %1615
    %v1618 = vmul.f32 %v1595, %v1616
    %v1620 = vrot.slane %v1618, 4
    %1621 = vrot.lane.b32.xlu0 %v1620, 32
    %v1622 = vpop.permute.xlu0 %1621
    %v1624 = vmul.f32 %v1231, %v1622
    %v1625 = vmul.f32 %v1243, %v1502
    %v1626 = vadd.f32 %v1624, %v1625
    %v1628 = vrot.slane %v1612, 4
    %1629 = vrot.lane.b32.xlu0 %v1628, 96
    %v1630 = vpop.permute.xlu0 %1629
    %v1632 = vmul.f32 %v1231, %v1630
    %v1633 = vmul.f32 %v1243, %v1509
    %v1634 = vadd.f32 %v1632, %v1633
    %v1635 = vld [vmem:[%s1255] sm:$0x3]
    %v1636 = vadd.f32 %v1635, %v1624
    %1637 = vst.msk [vmem:[%s1255] sm:$0x3] %vm413, %v1636
    %v1639 = vsel %vm116, %v1626, 0
    %1641 = vmatprep.subr.mxu0 0.0
    %1642 = vmatpush1.msra.mxu0 %v288
    %1643 = vmatprep.subr.mxu0 0.0
    %1644 = vmatpush1.msra.mxu0 %v289
    %1645 = vmatprep.subr.mxu0 0.0
    %1646 = vmatpush1.msra.mxu0 %v290
    %1647 = vmatprep.subr.mxu0 0.0
    %1648 = vmatpush1.msra.mxu0 %v291
    %1649 = vmatprep.subr.mxu0 0.0
    %1650 = vmatpush1.msra.mxu0 0.0
    %1651 = vmatprep.subr.mxu0 0.0
    %1652 = vmatpush1.msra.mxu0 0.0
    %1653 = vmatprep.subr.mxu0 0.0
    %1654 = vmatpush1.msra.mxu0 0.0
    %1655 = vmatprep.subr.mxu0 0.0
    %1656 = vmatpush1.msra.mxu0 0.0
    %1657 = vmatprep.subr.mxu0 0.0
    %1658 = vmatpush1.msra.mxu0 0.0
    %1659 = vmatprep.subr.mxu0 0.0
    %1660 = vmatpush1.msra.mxu0 0.0
    %1661 = vmatprep.subr.mxu0 0.0
    %1662 = vmatpush1.msra.mxu0 0.0
    %1663 = vmatprep.subr.mxu0 0.0
    %1664 = vmatpush1.msra.mxu0 0.0
    %1665 = vmatprep.subr.mxu0 0.0
    %1666 = vmatpush1.msra.mxu0 0.0
    %1667 = vmatprep.subr.mxu0 0.0
    %1668 = vmatpush1.msra.mxu0 0.0
    %1669 = vmatprep.subr.mxu0 0.0
    %1670 = vmatpush1.msra.mxu0 0.0
    %1671 = vmatprep.subr.mxu0 0.0
    %1672 = vmatpush1.msra.mxu0 0.0
    %1673 = vmatprep.subr.mxu0 0.0
    %1674 = vmatpush1.msra.mxu0 0.0
    %1675 = vmatprep.subr.mxu0 0.0
    %1676 = vmatpush1.msra.mxu0 0.0
    %1677 = vmatprep.subr.mxu0 0.0
    %1678 = vmatpush1.msra.mxu0 0.0
    %1679 = vmatprep.subr.mxu0 0.0
    %1680 = vmatpush1.msra.mxu0 0.0
    %1681 = vmatprep.subr.mxu0 0.0
    %1682 = vmatpush1.msra.mxu0 0.0
    %1683 = vmatprep.subr.mxu0 0.0
    %1684 = vmatpush1.msra.mxu0 0.0
    %1685 = vmatprep.subr.mxu0 0.0
    %1686 = vmatpush1.msra.mxu0 0.0
    %1687 = vmatprep.subr.mxu0 0.0
    %1688 = vmatpush1.msra.mxu0 0.0
    %1689 = vmatprep.subr.mxu0 0.0
    %1690 = vmatpush1.msra.mxu0 0.0
    %1691 = vmatprep.subr.mxu0 0.0
    %1692 = vmatpush1.msra.mxu0 0.0
    %1693 = vmatprep.subr.mxu0 0.0
    %1694 = vmatpush1.msra.mxu0 0.0
    %1695 = vmatprep.subr.mxu0 0.0
    %1696 = vmatpush1.msra.mxu0 0.0
    %1697 = vmatprep.subr.mxu0 0.0
    %1698 = vmatpush1.msra.mxu0 0.0
    %1699 = vmatprep.subr.mxu0 0.0
    %1700 = vmatpush1.msra.mxu0 0.0
    %1701 = vmatprep.subr.mxu0 0.0
    %1702 = vmatpush1.msra.mxu0 0.0
    %1703 = vmatprep.subr.mxu0 0.0
    %1704 = vmatpush1.msra.mxu0 0.0
    %1705 = vmatprep.mubr.f32.mxu0 0.0
    %1706 = vmatmul.mubr.f32.gmra.mrb[0].mxu0 %v1639
    %v1707 = vpop.f32.mrb[0].mxu0
    %v1708 = vadd.f32 0.0, %v1707
    %v1709 = vpop.f32.mrb[0].mxu0
    %1710 = vdwg.mxu0
    %v1712 = vrot.slane %v1708, 6
    %v1714 = vadd.f32 %v281, %v1712
    %v1715 = vsub.f32 0.0, %v1714
    %v1716 = vmul.f32 %v1715, 1.442695
    %v1717 = vpow.pop %v1716
    %v1718 = vadd.f32 %v1717, 1.0
    %v1719 = vrcp.pop %v1718
    %v1720 = vmul.f32 1.0, %v1719
    %v1721 = vtanh.pop %v1714
    %v1723 = vrot.slane %v1634, 6
    %1724 = vrot.lane.b32.xlu0 %v1723, 32
    %v1725 = vpop.permute.xlu0 %1724
    %v1727 = vmul.f32 %v1720, %v1725
    %1729 = vrot.lane.b32.xlu0 %v1721, 64
    %v1730 = vpop.permute.xlu0 %1729
    %v1732 = vmul.f32 %v1720, %v1730
    %1734 = vrot.lane.b32.xlu0 %v1732, 32
    %v1735 = vpop.permute.xlu0 %1734
    %v1737 = vadd.f32 %v1727, %v1735
    %v1738 = vtanh.pop %v1737
    %1740 = vrot.lane.b32.xlu0 %v1738, 64
    %v1741 = vpop.permute.xlu0 %1740
    %v1743 = vmul.f32 %v1720, %v1741
    %v1745 = vrot.slane %v1743, 2
    %1746 = vrot.lane.b32.xlu0 %v1745, 32
    %v1747 = vpop.permute.xlu0 %1746
    %v1749 = vmul.f32 %v1085, %v1747
    %v1750 = vmul.f32 %v1097, %v1626
    %v1751 = vadd.f32 %v1749, %v1750
    %v1753 = vrot.slane %v1737, 2
    %1754 = vrot.lane.b32.xlu0 %v1753, 96
    %v1755 = vpop.permute.xlu0 %1754
    %v1757 = vmul.f32 %v1085, %v1755
    %v1758 = vmul.f32 %v1097, %v1634
    %v1759 = vadd.f32 %v1757, %v1758
    %v1760 = vld [vmem:[%s1117] sm:$0x3]
    %v1761 = vadd.f32 %v1760, %v1749
    %1762 = vst.msk [vmem:[%s1117] sm:$0x3] %vm413, %v1761
    %v1764 = vsel %vm116, %v1751, 0
    %1766 = vmatprep.subr.mxu0 0.0
    %1767 = vmatpush1.msra.mxu0 %v288
    %1768 = vmatprep.subr.mxu0 0.0
    %1769 = vmatpush1.msra.mxu0 %v289
    %1770 = vmatprep.subr.mxu0 0.0
    %1771 = vmatpush1.msra.mxu0 %v290
    %1772 = vmatprep.subr.mxu0 0.0
    %1773 = vmatpush1.msra.mxu0 %v291
    %1774 = vmatprep.subr.mxu0 0.0
    %1775 = vmatpush1.msra.mxu0 0.0
    %1776 = vmatprep.subr.mxu0 0.0
    %1777 = vmatpush1.msra.mxu0 0.0
    %1778 = vmatprep.subr.mxu0 0.0
    %1779 = vmatpush1.msra.mxu0 0.0
    %1780 = vmatprep.subr.mxu0 0.0
    %1781 = vmatpush1.msra.mxu0 0.0
    %1782 = vmatprep.subr.mxu0 0.0
    %1783 = vmatpush1.msra.mxu0 0.0
    %1784 = vmatprep.subr.mxu0 0.0
    %1785 = vmatpush1.msra.mxu0 0.0
    %1786 = vmatprep.subr.mxu0 0.0
    %1787 = vmatpush1.msra.mxu0 0.0
    %1788 = vmatprep.subr.mxu0 0.0
    %1789 = vmatpush1.msra.mxu0 0.0
    %1790 = vmatprep.subr.mxu0 0.0
    %1791 = vmatpush1.msra.mxu0 0.0
    %1792 = vmatprep.subr.mxu0 0.0
    %1793 = vmatpush1.msra.mxu0 0.0
    %1794 = vmatprep.subr.mxu0 0.0
    %1795 = vmatpush1.msra.mxu0 0.0
    %1796 = vmatprep.subr.mxu0 0.0
    %1797 = vmatpush1.msra.mxu0 0.0
    %1798 = vmatprep.subr.mxu0 0.0
    %1799 = vmatpush1.msra.mxu0 0.0
    %1800 = vmatprep.subr.mxu0 0.0
    %1801 = vmatpush1.msra.mxu0 0.0
    %1802 = vmatprep.subr.mxu0 0.0
    %1803 = vmatpush1.msra.mxu0 0.0
    %1804 = vmatprep.subr.mxu0 0.0
    %1805 = vmatpush1.msra.mxu0 0.0
    %1806 = vmatprep.subr.mxu0 0.0
    %1807 = vmatpush1.msra.mxu0 0.0
    %1808 = vmatprep.subr.mxu0 0.0
    %1809 = vmatpush1.msra.mxu0 0.0
    %1810 = vmatprep.subr.mxu0 0.0
    %1811 = vmatpush1.msra.mxu0 0.0
    %1812 = vmatprep.subr.mxu0 0.0
    %1813 = vmatpush1.msra.mxu0 0.0
    %1814 = vmatprep.subr.mxu0 0.0
    %1815 = vmatpush1.msra.mxu0 0.0
    %1816 = vmatprep.subr.mxu0 0.0
    %1817 = vmatpush1.msra.mxu0 0.0
    %1818 = vmatprep.subr.mxu0 0.0
    %1819 = vmatpush1.msra.mxu0 0.0
    %1820 = vmatprep.subr.mxu0 0.0
    %1821 = vmatpush1.msra.mxu0 0.0
    %1822 = vmatprep.subr.mxu0 0.0
    %1823 = vmatpush1.msra.mxu0 0.0
    %1824 = vmatprep.subr.mxu0 0.0
    %1825 = vmatpush1.msra.mxu0 0.0
    %1826 = vmatprep.subr.mxu0 0.0
    %1827 = vmatpush1.msra.mxu0 0.0
    %1828 = vmatprep.subr.mxu0 0.0
    %1829 = vmatpush1.msra.mxu0 0.0
    %1830 = vmatprep.mubr.f32.mxu0 0.0
    %1831 = vmatmul.mubr.f32.gmra.mrb[0].mxu0 %v1764
    %v1832 = vpop.f32.mrb[0].mxu0
    %v1833 = vadd.f32 0.0, %v1832
    %v1834 = vpop.f32.mrb[0].mxu0
    %1835 = vdwg.mxu0
    %v1836 = vadd.f32 %v281, %v1833
    %v1837 = vsub.f32 0.0, %v1836
    %v1838 = vmul.f32 %v1837, 1.442695
    %v1839 = vpow.pop %v1838
    %v1840 = vadd.f32 %v1839, 1.0
    %v1841 = vrcp.pop %v1840
    %v1842 = vmul.f32 1.0, %v1841
    %v1843 = vtanh.pop %v1836
    %1845 = vrot.lane.b32.xlu0 %v1759, 32
    %v1846 = vpop.permute.xlu0 %1845
    %v1848 = vmul.f32 %v1842, %v1846
    %1850 = vrot.lane.b32.xlu0 %v1843, 64
    %v1851 = vpop.permute.xlu0 %1850
    %v1853 = vmul.f32 %v1842, %v1851
    %1855 = vrot.lane.b32.xlu0 %v1853, 32
    %v1856 = vpop.permute.xlu0 %1855
    %v1858 = vadd.f32 %v1848, %v1856
    %v1859 = vtanh.pop %v1858
    %1861 = vrot.lane.b32.xlu0 %v1859, 64
    %v1862 = vpop.permute.xlu0 %1861
    %v1864 = vmul.f32 %v1842, %v1862
    %v1865 = vmul.f32 %v945, %v1864
    %v1866 = vmul.f32 %v952, %v1751
    %1868 = vrot.lane.b32.xlu0 %v1866, 96
    %v1869 = vpop.permute.xlu0 %1868
    %v1871 = vadd.f32 %v1865, %v1869
    %v1872 = vmul.f32 %v945, %v1858
    %v1873 = vmul.f32 %v952, %v1759
    %1875 = vrot.lane.b32.xlu0 %v1873, 32
    %v1876 = vpop.permute.xlu0 %1875
    %v1878 = vadd.f32 %v1872, %v1876
    %v1879 = vld [vmem:[%s971] sm:$0x3]
    %1881 = vrot.lane.b32.xlu0 %v1865, 32
    %v1882 = vpop.permute.xlu0 %1881
    %v1884 = vadd.f32 %v1879, %v1882
    %1885 = vst.msk [vmem:[%s971] sm:$0x3] %vm413, %v1884
    %1887 = vrot.lane.b32.xlu0 %v1871, 32
    %v1888 = vpop.permute.xlu0 %1887
    %v1889 = vsel %vm116, %v1888, 0
    %1891 = vmatprep.subr.mxu0 0.0
    %1892 = vmatpush1.msra.mxu0 %v288
    %1893 = vmatprep.subr.mxu0 0.0
    %1894 = vmatpush1.msra.mxu0 %v289
    %1895 = vmatprep.subr.mxu0 0.0
    %1896 = vmatpush1.msra.mxu0 %v290
    %1897 = vmatprep.subr.mxu0 0.0
    %1898 = vmatpush1.msra.mxu0 %v291
    %1899 = vmatprep.subr.mxu0 0.0
    %1900 = vmatpush1.msra.mxu0 0.0
    %1901 = vmatprep.subr.mxu0 0.0
    %1902 = vmatpush1.msra.mxu0 0.0
    %1903 = vmatprep.subr.mxu0 0.0
    %1904 = vmatpush1.msra.mxu0 0.0
    %1905 = vmatprep.subr.mxu0 0.0
    %1906 = vmatpush1.msra.mxu0 0.0
    %1907 = vmatprep.subr.mxu0 0.0
    %1908 = vmatpush1.msra.mxu0 0.0
    %1909 = vmatprep.subr.mxu0 0.0
    %1910 = vmatpush1.msra.mxu0 0.0
    %1911 = vmatprep.subr.mxu0 0.0
    %1912 = vmatpush1.msra.mxu0 0.0
    %1913 = vmatprep.subr.mxu0 0.0
    %1914 = vmatpush1.msra.mxu0 0.0
    %1915 = vmatprep.subr.mxu0 0.0
    %1916 = vmatpush1.msra.mxu0 0.0
    %1917 = vmatprep.subr.mxu0 0.0
    %1918 = vmatpush1.msra.mxu0 0.0
    %1919 = vmatprep.subr.mxu0 0.0
    %1920 = vmatpush1.msra.mxu0 0.0
    %1921 = vmatprep.subr.mxu0 0.0
    %1922 = vmatpush1.msra.mxu0 0.0
    %1923 = vmatprep.subr.mxu0 0.0
    %1924 = vmatpush1.msra.mxu0 0.0
    %1925 = vmatprep.subr.mxu0 0.0
    %1926 = vmatpush1.msra.mxu0 0.0
    %1927 = vmatprep.subr.mxu0 0.0
    %1928 = vmatpush1.msra.mxu0 0.0
    %1929 = vmatprep.subr.mxu0 0.0
    %1930 = vmatpush1.msra.mxu0 0.0
    %1931 = vmatprep.subr.mxu0 0.0
    %1932 = vmatpush1.msra.mxu0 0.0
    %1933 = vmatprep.subr.mxu0 0.0
    %1934 = vmatpush1.msra.mxu0 0.0
    %1935 = vmatprep.subr.mxu0 0.0
    %1936 = vmatpush1.msra.mxu0 0.0
    %1937 = vmatprep.subr.mxu0 0.0
    %1938 = vmatpush1.msra.mxu0 0.0
    %1939 = vmatprep.subr.mxu0 0.0
    %1940 = vmatpush1.msra.mxu0 0.0
    %1941 = vmatprep.subr.mxu0 0.0
    %1942 = vmatpush1.msra.mxu0 0.0
    %1943 = vmatprep.subr.mxu0 0.0
    %1944 = vmatpush1.msra.mxu0 0.0
    %1945 = vmatprep.subr.mxu0 0.0
    %1946 = vmatpush1.msra.mxu0 0.0
    %1947 = vmatprep.subr.mxu0 0.0
    %1948 = vmatpush1.msra.mxu0 0.0
    %1949 = vmatprep.subr.mxu0 0.0
    %1950 = vmatpush1.msra.mxu0 0.0
    %1951 = vmatprep.subr.mxu0 0.0
    %1952 = vmatpush1.msra.mxu0 0.0
    %1953 = vmatprep.subr.mxu0 0.0
    %1954 = vmatpush1.msra.mxu0 0.0
    %1955 = vmatprep.mubr.f32.mxu0 0.0
    %1956 = vmatmul.mubr.f32.gmra.mrb[0].mxu0 %v1889
    %v1957 = vpop.f32.mrb[0].mxu0
    %v1958 = vadd.f32 0.0, %v1957
    %v1959 = vpop.f32.mrb[0].mxu0
    %1960 = vdwg.mxu0
    %v1962 = vrot.slane %v1958, 2
    %v1964 = vadd.f32 %v276, %v1962
    %v1965 = vsub.f32 0.0, %v1964
    %v1966 = vmul.f32 %v1965, 1.442695
    %v1967 = vpow.pop %v1966
    %v1968 = vadd.f32 %v1967, 1.0
    %v1969 = vrcp.pop %v1968
    %v1970 = vmul.f32 1.0, %v1969
    %v1971 = vtanh.pop %v1964
    %v1973 = vrot.slane %v1878, 2
    %v1975 = vmul.f32 %v1970, %v1973
    %1977 = vrot.lane.b32.xlu0 %v1971, 64
    %v1978 = vpop.permute.xlu0 %1977
    %v1980 = vmul.f32 %v1970, %v1978
    %1982 = vrot.lane.b32.xlu0 %v1980, 32
    %v1983 = vpop.permute.xlu0 %1982
    %v1985 = vadd.f32 %v1975, %v1983
    %v1986 = vtanh.pop %v1985
    %1988 = vrot.lane.b32.xlu0 %v1986, 64
    %v1989 = vpop.permute.xlu0 %1988
    %v1991 = vmul.f32 %v1970, %v1989
    %v1993 = vrot.slane %v1991, 6
    %1994 = vrot.lane.b32.xlu0 %v1993, 32
    %v1995 = vpop.permute.xlu0 %1994
    %v1997 = vmul.f32 %v811, %v1995
    %v1998 = vmul.f32 %v823, %v1871
    %2000 = vrot.lane.b32.xlu0 %v1998, 32
    %v2001 = vpop.permute.xlu0 %2000
    %v2003 = vadd.f32 %v1997, %v2001
    %v2005 = vrot.slane %v1985, 6
    %2006 = vrot.lane.b32.xlu0 %v2005, 96
    %v2007 = vpop.permute.xlu0 %2006
    %v2009 = vmul.f32 %v811, %v2007
    %v2010 = vmul.f32 %v823, %v1878
    %2012 = vrot.lane.b32.xlu0 %v2010, 96
    %v2013 = vpop.permute.xlu0 %2012
    %v2015 = vadd.f32 %v2009, %v2013
    %v2016 = vld [vmem:[%s835] sm:$0x3]
    %v2017 = vadd.f32 %v2016, %v1997
    %2018 = vst.msk [vmem:[%s835] sm:$0x3] %vm413, %v2017
    %v2020 = vsel %vm116, %v2003, 0
    %2022 = vmatprep.subr.mxu0 0.0
    %2023 = vmatpush1.msra.mxu0 %v288
    %2024 = vmatprep.subr.mxu0 0.0
    %2025 = vmatpush1.msra.mxu0 %v289
    %2026 = vmatprep.subr.mxu0 0.0
    %2027 = vmatpush1.msra.mxu0 %v290
    %2028 = vmatprep.subr.mxu0 0.0
    %2029 = vmatpush1.msra.mxu0 %v291
    %2030 = vmatprep.subr.mxu0 0.0
    %2031 = vmatpush1.msra.mxu0 0.0
    %2032 = vmatprep.subr.mxu0 0.0
    %2033 = vmatpush1.msra.mxu0 0.0
    %2034 = vmatprep.subr.mxu0 0.0
    %2035 = vmatpush1.msra.mxu0 0.0
    %2036 = vmatprep.subr.mxu0 0.0
    %2037 = vmatpush1.msra.mxu0 0.0
    %2038 = vmatprep.subr.mxu0 0.0
    %2039 = vmatpush1.msra.mxu0 0.0
    %2040 = vmatprep.subr.mxu0 0.0
    %2041 = vmatpush1.msra.mxu0 0.0
    %2042 = vmatprep.subr.mxu0 0.0
    %2043 = vmatpush1.msra.mxu0 0.0
    %2044 = vmatprep.subr.mxu0 0.0
    %2045 = vmatpush1.msra.mxu0 0.0
    %2046 = vmatprep.subr.mxu0 0.0
    %2047 = vmatpush1.msra.mxu0 0.0
    %2048 = vmatprep.subr.mxu0 0.0
    %2049 = vmatpush1.msra.mxu0 0.0
    %2050 = vmatprep.subr.mxu0 0.0
    %2051 = vmatpush1.msra.mxu0 0.0
    %2052 = vmatprep.subr.mxu0 0.0
    %2053 = vmatpush1.msra.mxu0 0.0
    %2054 = vmatprep.subr.mxu0 0.0
    %2055 = vmatpush1.msra.mxu0 0.0
    %2056 = vmatprep.subr.mxu0 0.0
    %2057 = vmatpush1.msra.mxu0 0.0
    %2058 = vmatprep.subr.mxu0 0.0
    %2059 = vmatpush1.msra.mxu0 0.0
    %2060 = vmatprep.subr.mxu0 0.0
    %2061 = vmatpush1.msra.mxu0 0.0
    %2062 = vmatprep.subr.mxu0 0.0
    %2063 = vmatpush1.msra.mxu0 0.0
    %2064 = vmatprep.subr.mxu0 0.0
    %2065 = vmatpush1.msra.mxu0 0.0
    %2066 = vmatprep.subr.mxu0 0.0
    %2067 = vmatpush1.msra.mxu0 0.0
    %2068 = vmatprep.subr.mxu0 0.0
    %2069 = vmatpush1.msra.mxu0 0.0
    %2070 = vmatprep.subr.mxu0 0.0
    %2071 = vmatpush1.msra.mxu0 0.0
    %2072 = vmatprep.subr.mxu0 0.0
    %2073 = vmatpush1.msra.mxu0 0.0
    %2074 = vmatprep.subr.mxu0 0.0
    %2075 = vmatpush1.msra.mxu0 0.0
    %2076 = vmatprep.subr.mxu0 0.0
    %2077 = vmatpush1.msra.mxu0 0.0
    %2078 = vmatprep.subr.mxu0 0.0
    %2079 = vmatpush1.msra.mxu0 0.0
    %2080 = vmatprep.subr.mxu0 0.0
    %2081 = vmatpush1.msra.mxu0 0.0
    %2082 = vmatprep.subr.mxu0 0.0
    %2083 = vmatpush1.msra.mxu0 0.0
    %2084 = vmatprep.subr.mxu0 0.0
    %2085 = vmatpush1.msra.mxu0 0.0
    %2086 = vmatprep.mubr.f32.mxu0 0.0
    %2087 = vmatmul.mubr.f32.gmra.mrb[0].mxu0 %v2020
    %v2088 = vpop.f32.mrb[0].mxu0
    %v2089 = vadd.f32 0.0, %v2088
    %v2090 = vpop.f32.mrb[0].mxu0
    %2091 = vdwg.mxu0
    %v2093 = vrot.slane %v2089, 4
    %v2095 = vadd.f32 %v276, %v2093
    %v2096 = vsub.f32 0.0, %v2095
    %v2097 = vmul.f32 %v2096, 1.442695
    %v2098 = vpow.pop %v2097
    %v2099 = vadd.f32 %v2098, 1.0
    %v2100 = vrcp.pop %v2099
    %v2101 = vmul.f32 1.0, %v2100
    %v2102 = vtanh.pop %v2095
    %v2104 = vrot.slane %v2015, 4
    %2105 = vrot.lane.b32.xlu0 %v2104, 32
    %v2106 = vpop.permute.xlu0 %2105
    %v2108 = vmul.f32 %v2101, %v2106
    %2110 = vrot.lane.b32.xlu0 %v2102, 64
    %v2111 = vpop.permute.xlu0 %2110
    %v2113 = vmul.f32 %v2101, %v2111
    %2115 = vrot.lane.b32.xlu0 %v2113, 32
    %v2116 = vpop.permute.xlu0 %2115
    %v2118 = vadd.f32 %v2108, %v2116
    %v2119 = vtanh.pop %v2118
    %2121 = vrot.lane.b32.xlu0 %v2119, 64
    %v2122 = vpop.permute.xlu0 %2121
    %v2124 = vmul.f32 %v2101, %v2122
    %v2126 = vrot.slane %v2124, 4
    %2127 = vrot.lane.b32.xlu0 %v2126, 32
    %v2128 = vpop.permute.xlu0 %2127
    %v2130 = vmul.f32 %v673, %v2128
    %v2131 = vmul.f32 %v685, %v2003
    %v2132 = vadd.f32 %v2130, %v2131
    %v2134 = vrot.slane %v2118, 4
    %2135 = vrot.lane.b32.xlu0 %v2134, 96
    %v2136 = vpop.permute.xlu0 %2135
    %v2138 = vmul.f32 %v673, %v2136
    %v2139 = vmul.f32 %v685, %v2015
    %v2140 = vadd.f32 %v2138, %v2139
    %v2141 = vld [vmem:[%s697] sm:$0x3]
    %v2142 = vadd.f32 %v2141, %v2130
    %2143 = vst.msk [vmem:[%s697] sm:$0x3] %vm413, %v2142
    %v2145 = vsel %vm116, %v2132, 0
    %2147 = vmatprep.subr.mxu0 0.0
    %2148 = vmatpush1.msra.mxu0 %v288
    %2149 = vmatprep.subr.mxu0 0.0
    %2150 = vmatpush1.msra.mxu0 %v289
    %2151 = vmatprep.subr.mxu0 0.0
    %2152 = vmatpush1.msra.mxu0 %v290
    %2153 = vmatprep.subr.mxu0 0.0
    %2154 = vmatpush1.msra.mxu0 %v291
    %2155 = vmatprep.subr.mxu0 0.0
    %2156 = vmatpush1.msra.mxu0 0.0
    %2157 = vmatprep.subr.mxu0 0.0
    %2158 = vmatpush1.msra.mxu0 0.0
    %2159 = vmatprep.subr.mxu0 0.0
    %2160 = vmatpush1.msra.mxu0 0.0
    %2161 = vmatprep.subr.mxu0 0.0
    %2162 = vmatpush1.msra.mxu0 0.0
    %2163 = vmatprep.subr.mxu0 0.0
    %2164 = vmatpush1.msra.mxu0 0.0
    %2165 = vmatprep.subr.mxu0 0.0
    %2166 = vmatpush1.msra.mxu0 0.0
    %2167 = vmatprep.subr.mxu0 0.0
    %2168 = vmatpush1.msra.mxu0 0.0
    %2169 = vmatprep.subr.mxu0 0.0
    %2170 = vmatpush1.msra.mxu0 0.0
    %2171 = vmatprep.subr.mxu0 0.0
    %2172 = vmatpush1.msra.mxu0 0.0
    %2173 = vmatprep.subr.mxu0 0.0
    %2174 = vmatpush1.msra.mxu0 0.0
    %2175 = vmatprep.subr.mxu0 0.0
    %2176 = vmatpush1.msra.mxu0 0.0
    %2177 = vmatprep.subr.mxu0 0.0
    %2178 = vmatpush1.msra.mxu0 0.0
    %2179 = vmatprep.subr.mxu0 0.0
    %2180 = vmatpush1.msra.mxu0 0.0
    %2181 = vmatprep.subr.mxu0 0.0
    %2182 = vmatpush1.msra.mxu0 0.0
    %2183 = vmatprep.subr.mxu0 0.0
    %2184 = vmatpush1.msra.mxu0 0.0
    %2185 = vmatprep.subr.mxu0 0.0
    %2186 = vmatpush1.msra.mxu0 0.0
    %2187 = vmatprep.subr.mxu0 0.0
    %2188 = vmatpush1.msra.mxu0 0.0
    %2189 = vmatprep.subr.mxu0 0.0
    %2190 = vmatpush1.msra.mxu0 0.0
    %2191 = vmatprep.subr.mxu0 0.0
    %2192 = vmatpush1.msra.mxu0 0.0
    %2193 = vmatprep.subr.mxu0 0.0
    %2194 = vmatpush1.msra.mxu0 0.0
    %2195 = vmatprep.subr.mxu0 0.0
    %2196 = vmatpush1.msra.mxu0 0.0
    %2197 = vmatprep.subr.mxu0 0.0
    %2198 = vmatpush1.msra.mxu0 0.0
    %2199 = vmatprep.subr.mxu0 0.0
    %2200 = vmatpush1.msra.mxu0 0.0
    %2201 = vmatprep.subr.mxu0 0.0
    %2202 = vmatpush1.msra.mxu0 0.0
    %2203 = vmatprep.subr.mxu0 0.0
    %2204 = vmatpush1.msra.mxu0 0.0
    %2205 = vmatprep.subr.mxu0 0.0
    %2206 = vmatpush1.msra.mxu0 0.0
    %2207 = vmatprep.subr.mxu0 0.0
    %2208 = vmatpush1.msra.mxu0 0.0
    %2209 = vmatprep.subr.mxu0 0.0
    %2210 = vmatpush1.msra.mxu0 0.0
    %2211 = vmatprep.mubr.f32.mxu0 0.0
    %2212 = vmatmul.mubr.f32.gmra.mrb[0].mxu0 %v2145
    %v2213 = vpop.f32.mrb[0].mxu0
    %v2214 = vadd.f32 0.0, %v2213
    %v2215 = vpop.f32.mrb[0].mxu0
    %2216 = vdwg.mxu0
    %v2218 = vrot.slane %v2214, 6
    %v2220 = vadd.f32 %v276, %v2218
    %v2221 = vsub.f32 0.0, %v2220
    %v2222 = vmul.f32 %v2221, 1.442695
    %v2223 = vpow.pop %v2222
    %v2224 = vadd.f32 %v2223, 1.0
    %v2225 = vrcp.pop %v2224
    %v2226 = vmul.f32 1.0, %v2225
    %v2227 = vtanh.pop %v2220
    %v2229 = vrot.slane %v2140, 6
    %2230 = vrot.lane.b32.xlu0 %v2229, 32
    %v2231 = vpop.permute.xlu0 %2230
    %v2233 = vmul.f32 %v2226, %v2231
    %2235 = vrot.lane.b32.xlu0 %v2227, 64
    %v2236 = vpop.permute.xlu0 %2235
    %v2238 = vmul.f32 %v2226, %v2236
    %2240 = vrot.lane.b32.xlu0 %v2238, 32
    %v2241 = vpop.permute.xlu0 %2240
    %v2243 = vadd.f32 %v2233, %v2241
    %v2244 = vtanh.pop %v2243
    %2246 = vrot.lane.b32.xlu0 %v2244, 64
    %v2247 = vpop.permute.xlu0 %2246
    %v2249 = vmul.f32 %v2226, %v2247
    %v2251 = vrot.slane %v2249, 2
    %2252 = vrot.lane.b32.xlu0 %v2251, 32
    %v2253 = vpop.permute.xlu0 %2252
    %v2255 = vmul.f32 %v527, %v2253
    %v2256 = vmul.f32 %v539, %v2132
    %v2257 = vadd.f32 %v2255, %v2256
    %v2259 = vrot.slane %v2243, 2
    %2260 = vrot.lane.b32.xlu0 %v2259, 96
    %v2261 = vpop.permute.xlu0 %2260
    %v2263 = vmul.f32 %v527, %v2261
    %v2264 = vmul.f32 %v539, %v2140
    %v2265 = vadd.f32 %v2263, %v2264
    %v2266 = vld [vmem:[%s559] sm:$0x3]
    %v2267 = vadd.f32 %v2266, %v2255
    %2268 = vst.msk [vmem:[%s559] sm:$0x3] %vm413, %v2267
    %v2270 = vsel %vm116, %v2257, 0
    %2272 = vmatprep.subr.mxu0 0.0
    %2273 = vmatpush1.msra.mxu0 %v288
    %2274 = vmatprep.subr.mxu0 0.0
    %2275 = vmatpush1.msra.mxu0 %v289
    %2276 = vmatprep.subr.mxu0 0.0
    %2277 = vmatpush1.msra.mxu0 %v290
    %2278 = vmatprep.subr.mxu0 0.0
    %2279 = vmatpush1.msra.mxu0 %v291
    %2280 = vmatprep.subr.mxu0 0.0
    %2281 = vmatpush1.msra.mxu0 0.0
    %2282 = vmatprep.subr.mxu0 0.0
    %2283 = vmatpush1.msra.mxu0 0.0
    %2284 = vmatprep.subr.mxu0 0.0
    %2285 = vmatpush1.msra.mxu0 0.0
    %2286 = vmatprep.subr.mxu0 0.0
    %2287 = vmatpush1.msra.mxu0 0.0
    %2288 = vmatprep.subr.mxu0 0.0
    %2289 = vmatpush1.msra.mxu0 0.0
    %2290 = vmatprep.subr.mxu0 0.0
    %2291 = vmatpush1.msra.mxu0 0.0
    %2292 = vmatprep.subr.mxu0 0.0
    %2293 = vmatpush1.msra.mxu0 0.0
    %2294 = vmatprep.subr.mxu0 0.0
    %2295 = vmatpush1.msra.mxu0 0.0
    %2296 = vmatprep.subr.mxu0 0.0
    %2297 = vmatpush1.msra.mxu0 0.0
    %2298 = vmatprep.subr.mxu0 0.0
    %2299 = vmatpush1.msra.mxu0 0.0
    %2300 = vmatprep.subr.mxu0 0.0
    %2301 = vmatpush1.msra.mxu0 0.0
    %2302 = vmatprep.subr.mxu0 0.0
    %2303 = vmatpush1.msra.mxu0 0.0
    %2304 = vmatprep.subr.mxu0 0.0
    %2305 = vmatpush1.msra.mxu0 0.0
    %2306 = vmatprep.subr.mxu0 0.0
    %2307 = vmatpush1.msra.mxu0 0.0
    %2308 = vmatprep.subr.mxu0 0.0
    %2309 = vmatpush1.msra.mxu0 0.0
    %2310 = vmatprep.subr.mxu0 0.0
    %2311 = vmatpush1.msra.mxu0 0.0
    %2312 = vmatprep.subr.mxu0 0.0
    %2313 = vmatpush1.msra.mxu0 0.0
    %2314 = vmatprep.subr.mxu0 0.0
    %2315 = vmatpush1.msra.mxu0 0.0
    %2316 = vmatprep.subr.mxu0 0.0
    %2317 = vmatpush1.msra.mxu0 0.0
    %2318 = vmatprep.subr.mxu0 0.0
    %2319 = vmatpush1.msra.mxu0 0.0
    %2320 = vmatprep.subr.mxu0 0.0
    %2321 = vmatpush1.msra.mxu0 0.0
    %2322 = vmatprep.subr.mxu0 0.0
    %2323 = vmatpush1.msra.mxu0 0.0
    %2324 = vmatprep.subr.mxu0 0.0
    %2325 = vmatpush1.msra.mxu0 0.0
    %2326 = vmatprep.subr.mxu0 0.0
    %2327 = vmatpush1.msra.mxu0 0.0
    %2328 = vmatprep.subr.mxu0 0.0
    %2329 = vmatpush1.msra.mxu0 0.0
    %2330 = vmatprep.subr.mxu0 0.0
    %2331 = vmatpush1.msra.mxu0 0.0
    %2332 = vmatprep.subr.mxu0 0.0
    %2333 = vmatpush1.msra.mxu0 0.0
    %2334 = vmatprep.subr.mxu0 0.0
    %2335 = vmatpush1.msra.mxu0 0.0
    %2336 = vmatprep.mubr.f32.mxu0 0.0
    %2337 = vmatmul.mubr.f32.gmra.mrb[0].mxu0 %v2270
    %v2338 = vpop.f32.mrb[0].mxu0
    %v2339 = vadd.f32 0.0, %v2338
    %v2340 = vpop.f32.mrb[0].mxu0
    %2341 = vdwg.mxu0
    %v2342 = vadd.f32 %v276, %v2339
    %v2343 = vsub.f32 0.0, %v2342
    %v2344 = vmul.f32 %v2343, 1.442695
    %v2345 = vpow.pop %v2344
    %v2346 = vadd.f32 %v2345, 1.0
    %v2347 = vrcp.pop %v2346
    %v2348 = vmul.f32 1.0, %v2347
    %v2349 = vtanh.pop %v2342
    %2351 = vrot.lane.b32.xlu0 %v2265, 32
    %v2352 = vpop.permute.xlu0 %2351
    %v2354 = vmul.f32 %v2348, %v2352
    %2356 = vrot.lane.b32.xlu0 %v2349, 64
    %v2357 = vpop.permute.xlu0 %2356
    %v2359 = vmul.f32 %v2348, %v2357
    %2361 = vrot.lane.b32.xlu0 %v2359, 32
    %v2362 = vpop.permute.xlu0 %2361
    %v2364 = vadd.f32 %v2354, %v2362
    %v2365 = vtanh.pop %v2364
    %2367 = vrot.lane.b32.xlu0 %v2365, 64
    %v2368 = vpop.permute.xlu0 %2367
    %v2370 = vmul.f32 %v2348, %v2368
    %v2371 = vmul.f32 %v396, %v2370
    %v2372 = vmul.f32 %v403, %v2257
    %2374 = vrot.lane.b32.xlu0 %v2372, 96
    %v2375 = vpop.permute.xlu0 %2374
    %v2377 = vadd.f32 %v2371, %v2375
    %v2378 = vmul.f32 %v396, %v2364
    %v2379 = vmul.f32 %v403, %v2265
    %2381 = vrot.lane.b32.xlu0 %v2379, 32
    %v2382 = vpop.permute.xlu0 %2381
    %v2384 = vadd.f32 %v2378, %v2382
    %v2385 = vld [vmem:[#allocation11] sm:$0x3]
    %2387 = vrot.lane.b32.xlu0 %v2371, 32
    %v2388 = vpop.permute.xlu0 %2387
    %v2390 = vadd.f32 %v2385, %v2388
    %2391 = vst.msk [vmem:[#allocation11] sm:$0x3] %vm413, %v2390
    %2393 = vrot.lane.b32.xlu0 %v2377, 32
    %v2394 = vpop.permute.xlu0 %2393
    %s2396 = scalar_lea.vmem [#allocation12], 2
    %2397 = vst.msk [vmem:[%s2396] sm:$0x3] %vm413, %v2394
    %2399 = vrot.lane.b32.xlu0 %v2384, 96
    %v2400 = vpop.permute.xlu0 %2399
    %s2402 = scalar_lea.vmem [#allocation14], 2
    %2403 = vst.msk [vmem:[%s2402] sm:$0x3] %vm413, %v2400
    // Predicated region
    $region54: #{tpu_custom_call.1} parent=1 // pred_check
      _
    $region55: #{tpu_custom_call.1} parent=1 // pred_check_branch
      %2405 = sbr.rel (0) target = $region57
    $region56: #{tpu_custom_call.1} parent=1 // pred_region
      %s2407 = ssub.s32 256, 256
      %2408 = vsyncadd [#allocation4], %s2407
      %s2409 = sshll.u32 [#allocation11], 4
      %s2410 = int_to_ptr.vmem [resolvable:$true] %s2409
      %2415 = dma.vmem_to_hbm [thread:$0]  %s2410, 256, %s8, [#allocation4], 32, 32, 2
    $region57: #{tpu_custom_call.1} parent=1 // pred_fallthru
      _
    // Predicated region
    $region58: #{tpu_custom_call.1} parent=1 // pred_check
      _
    $region59: #{tpu_custom_call.1} parent=1 // pred_check_branch
      %2417 = sbr.rel (0) target = $region61
    $region60: #{tpu_custom_call.1} parent=1 // pred_region
      %s2419 = ssub.s32 64, 64
      %2420 = vsyncadd [#allocation13], %s2419
      %s2421 = sshll.u32 [#allocation12], 4
      %s2422 = int_to_ptr.vmem [resolvable:$true] %s2421
      %2427 = dma.vmem_to_hbm [thread:$0]  %s2422, 64, %s9, [#allocation13], 32, 32, 2
    $region61: #{tpu_custom_call.1} parent=1 // pred_fallthru
      _
    // Predicated region
    $region62: #{tpu_custom_call.1} parent=1 // pred_check
      _
    $region63: #{tpu_custom_call.1} parent=1 // pred_check_branch
      %2429 = sbr.rel (0) target = $region65
    $region64: #{tpu_custom_call.1} parent=1 // pred_region
      %s2431 = ssub.s32 64, 64
      %2432 = vsyncadd [#allocation13], %s2431
      %s2433 = sshll.u32 [#allocation14], 4
      %s2434 = int_to_ptr.vmem [resolvable:$true] %s2433
      %2439 = dma.vmem_to_hbm [thread:$0]  %s2434, 64, %s10, [#allocation13], 32, 32, 2
    $region65: #{tpu_custom_call.1} parent=1 // pred_fallthru
      _
    // Predicated region
    $region66: #{tpu_custom_call.1} parent=1 // pred_check
      _
    $region67: #{tpu_custom_call.1} parent=1 // pred_check_branch
      %2441 = sbr.rel (0) target = $region69
    $region68: #{tpu_custom_call.1} parent=1 // pred_region
      %2442 = dma.done [#allocation4], 256
    $region69: #{tpu_custom_call.1} parent=1 // pred_fallthru
      _
    // Predicated region
    $region70: #{tpu_custom_call.1} parent=1 // pred_check
      _
    $region71: #{tpu_custom_call.1} parent=1 // pred_check_branch
      %2444 = sbr.rel (0) target = $region73
    $region72: #{tpu_custom_call.1} parent=1 // pred_region
      %2445 = dma.done [#allocation13], 64
    $region73: #{tpu_custom_call.1} parent=1 // pred_fallthru
      _
    // Predicated region
    $region74: #{tpu_custom_call.1} parent=1 // pred_check
      _
    $region75: #{tpu_custom_call.1} parent=1 // pred_check_branch
      %2447 = sbr.rel (0) target = $region77
    $region76: #{tpu_custom_call.1} parent=1 // pred_region
      %2448 = dma.done [#allocation13], 64
    $region77: #{tpu_custom_call.1} parent=1 // pred_fallthru
      _
    %2449 = vsyncpa [#allocation3], 1
    %2450 = vsyncpa [#allocation6], 1
    %2451 = vsyncpa [#allocation9], 1
    %2452 = vsyncpa [#allocation4], 1
    %2453 = vsyncpa [#allocation13], 1

</llo_original>
